<compile_context>
chip_gen: v6e
topology: v6e:2x2x1
jax: 0.10.0
libtpu: 0.0.40
codegen_flags: <defaults>
</compile_context>

<pallas_src>
import functools

import jax
import jax.numpy as jnp
from jax.experimental import pallas as pl
from jax.experimental.pallas import tpu as pltpu


# ----------------------------------------------------------------------------
# small helpers
# ----------------------------------------------------------------------------
def _round_up(v, mult):
    return ((v + mult - 1) // mult) * mult


def _pad_last(a, target):
    pad = target - a.shape[-1]
    if pad == 0:
        return a
    cfg = [(0, 0)] * (a.ndim - 1) + [(0, pad)]
    return jnp.pad(a, cfg)


def _taps_per_side(ntaps):
    return {1: 1, 4: 2, 9: 3}[ntaps]


# ----------------------------------------------------------------------------
# Pallas kernels
#   y_ref : (1, L, Cin)      bf16  flattened zero-padded input plane
#   w_ref : (ntaps, Cin, TC) bf16  per-tap weights, BN scale folded in
#   b_ref : (1, TC)          f32   folded BN bias
#   o_ref : (1, M, TC)             M = ho * wq  (junk columns sliced off later)
# ----------------------------------------------------------------------------
def _accum_taps(y_ref, w_ref, b_ref, *, ntaps, wq, m, cout):
    """f32 accumulator: folded-BN bias + sum over shifted-tap MXU matmuls."""
    k = _taps_per_side(ntaps)
    acc = jnp.broadcast_to(b_ref[...].astype(jnp.float32), (m, cout))
    for t in range(ntaps):
        a, b = divmod(t, k)
        off = a * wq + b                                   # static Python int
        xs = y_ref[0, pl.ds(off, m), :]                    # (m, Cin) bf16
        acc = acc + jnp.dot(xs, w_ref[t], preferred_element_type=jnp.float32)
    return acc


def _conv_bias_relu_kernel(y_ref, w_ref, b_ref, o_ref, *, ntaps, wq, m):
    """relu(bn1(conv1(x)))"""
    cout = o_ref.shape[-1]
    acc = _accum_taps(y_ref, w_ref, b_ref, ntaps=ntaps, wq=wq, m=m, cout=cout)
    o_ref[0, :, :] = jnp.maximum(acc, 0.0).astype(o_ref.dtype)


def _conv_bias_proj_relu_kernel(y_ref, w_ref, b_ref, sc_ref, wsc_ref, bsc_ref,
                                o_ref, *, ntaps, wq, m):
    """relu(bn2(conv2(y)) + bn_sc(1x1 conv(x)))  — projection shortcut."""
    cout = o_ref.shape[-1]
    acc = _accum_taps(y_ref, w_ref, b_ref, ntaps=ntaps, wq=wq, m=m, cout=cout)
    sc = jnp.dot(sc_ref[0], wsc_ref[...], preferred_element_type=jnp.float32)
    sc = sc + bsc_ref[...].astype(jnp.float32)
    o_ref[0, :, :] = jnp.maximum(acc + sc, 0.0).astype(o_ref.dtype)


def _conv_bias_add_relu_kernel(y_ref, w_ref, b_ref, sc_ref, o_ref,
                               *, ntaps, wq, m):
    """relu(bn2(conv2(y)) + x)  — identity shortcut."""
    cout = o_ref.shape[-1]
    acc = _accum_taps(y_ref, w_ref, b_ref, ntaps=ntaps, wq=wq, m=m, cout=cout)
    acc = acc + sc_ref[0].astype(jnp.float32)
    o_ref[0, :, :] = jnp.maximum(acc, 0.0).astype(o_ref.dtype)


# ----------------------------------------------------------------------------
# pallas_call launcher
# ----------------------------------------------------------------------------
def _conv_pallas(y, w_taps, bias, *, wq, m, out_dtype,
                 shortcut=None, w_sc=None, b_sc=None):
    n, L, cin = y.shape
    ntaps, _, cout = w_taps.shape
    tco = 128 if cout % 128 == 0 else cout          # lane-dense output tile
    grid = (n, cout // tco)

    in_specs = [
        pl.BlockSpec((1, L, cin), lambda i, j: (i, 0, 0)),        # input plane
        pl.BlockSpec((ntaps, cin, tco), lambda i, j: (0, 0, j)),  # weights
        pl.BlockSpec((1, tco), lambda i, j: (0, j)),              # bias
    ]
    args = [y, w_taps, bias]

    if shortcut is not None and w_sc is not None:
        csc = shortcut.shape[-1]
        kernel = functools.partial(_conv_bias_proj_relu_kernel,
                                   ntaps=ntaps, wq=wq, m=m)
        in_specs += [
            pl.BlockSpec((1, m, csc), lambda i, j: (i, 0, 0)),
            pl.BlockSpec((csc, tco), lambda i, j: (0, j)),
            pl.BlockSpec((1, tco), lambda i, j: (0, j)),
        ]
        args += [shortcut, w_sc, b_sc]
    elif shortcut is not None:
        kernel = functools.partial(_conv_bias_add_relu_kernel,
                                   ntaps=ntaps, wq=wq, m=m)
        in_specs += [pl.BlockSpec((1, m, tco), lambda i, j: (i, 0, j))]
        args += [shortcut]
    else:
        kernel = functools.partial(_conv_bias_relu_kernel,
                                   ntaps=ntaps, wq=wq, m=m)

    return pl.pallas_call(
        kernel,
        out_shape=jax.ShapeDtypeStruct((n, m, cout), out_dtype),
        grid=grid,
        in_specs=in_specs,
        out_specs=pl.BlockSpec((1, m, tco), lambda i, j: (i, 0, j)),
        compiler_params=pltpu.CompilerParams(
            dimension_semantics=("parallel", "parallel")),
    )(*args)


# ----------------------------------------------------------------------------
# JAX glue: input / weight preparation (no HBM im2col materialization)
# ----------------------------------------------------------------------------
def _prep_conv_input(x, stride):
    """x: (N,H,W,C) NHWC -> flattened padded plane (N, L, C_eff).

    Returns (y, ktaps, wq, ho, wo).  stride 2 is handled by a space-to-depth
    rearrangement so the kernel always runs stride-1 shifted matmuls.
    """
    n, h, w, c = x.shape
    xp = jnp.pad(x, ((0, 0), (1, 1), (1, 1), (0, 0)))
    if stride == 1:
        ktaps = 3
        hq, wq = h + 2, w + 2
        ho, wo = h, w
        y = xp
    elif stride == 2:
        ktaps = 2
        hp, wp = h + 2, w + 2
        hq, wq = (hp + 1) // 2, (wp + 1) // 2
        xp = jnp.pad(xp, ((0, 0), (0, 2 * hq - hp), (0, 2 * wq - wp), (0, 0)))
        y = xp.reshape(n, hq, 2, wq, 2, c).transpose(0, 1, 3, 2, 4, 5)
        y = y.reshape(n, hq, wq, 4 * c)
        ho = (h - 1) // 2 + 1
        wo = (w - 1) // 2 + 1
    else:
        # TODO(synk): only strides 1 and 2 (the ResNet cases) are implemented.
        raise NotImplementedError(f"stride {stride} not supported")
    # flatten spatial dims; add one extra zero row so tap windows never read OOB
    y = y.reshape(n, hq * wq, y.shape[-1])
    y = jnp.pad(y, ((0, 0), (0, wq), (0, 0)))
    return y, ktaps, wq, ho, wo


def _prep_conv_weight(w, scale, stride):
    """w: (3,3,Cin,Cout) HWIO, BN scale folded in -> (ktaps^2, Cin_eff, Cout)."""
    w = w * scale[None, None, None, :]
    kh, kw, cin, cout = w.shape
    if stride == 1:
        return w.reshape(kh * kw, cin, cout)
    # stride 2: W2[a,b,(p,q,c),o] = w[2a+p, 2b+q, c, o]  (zero outside 3x3)
    w2 = jnp.zeros((2, 2, 2, 2, cin, cout), w.dtype)
    for a in range(2):
        for b in range(2):
            for p in range(2):
                for q in range(2):
                    di, dj = 2 * a + p, 2 * b + q
                    if di < kh and dj < kw:
                        w2 = w2.at[a, b, p, q].set(w[di, dj])
    return w2.reshape(4, 4 * cin, cout)


def fold_bn(gamma, beta, mean, var, eps=1e-5):
    scale = gamma / jnp.sqrt(var + eps)
    bias = beta - mean * scale
    return scale, bias


# ----------------------------------------------------------------------------
# Full _BasicBlock forward (Pallas path)
# ----------------------------------------------------------------------------
def basic_block_forward(x, params, in_planes, planes, stride):
    """x: (N, H, W, Cin) NHWC f32 -> (N, ceil(H/stride), ceil(W/stride), planes)."""
    n, h, w, _ = x.shape
    cp = _round_up(planes, 128)          # lane-dense (128-multiple) Cout
    x_bf = x.astype(jnp.bfloat16)

    s1, b1 = fold_bn(**params["bn1"])
    s2, b2 = fold_bn(**params["bn2"])

    # ---- conv1 (3x3, stride) + bn1 + relu ----
    y1, _, wq1, ho, wo = _prep_conv_input(x_bf, stride)
    w1t = _pad_last(_prep_conv_weight(params["w1"], s1, stride), cp)
    w1t = w1t.astype(jnp.bfloat16)
    b1p = _pad_last(b1.reshape(1, -1), cp)
    m1 = ho * wq1
    out1 = _conv_pallas(y1, w1t, b1p, wq=wq1, m=m1, out_dtype=jnp.bfloat16)
    out1 = out1.reshape(n, ho, wq1, cp)[:, :, :wo, :]        # (N, ho, wo, cp) bf16

    # ---- conv2 (3x3, stride 1) + bn2 + shortcut + relu ----
    y2, _, wq2, _, _ = _prep_conv_input(out1, 1)
    w2 = jnp.pad(params["w2"], ((0, 0), (0, 0), (0, cp - planes), (0, 0)))
    w2t = _pad_last(_prep_conv_weight(w2, s2, 1), cp).astype(jnp.bfloat16)
    b2p = _pad_last(b2.reshape(1, -1), cp)
    m2 = ho * wq2

    if stride != 1 or in_planes != planes:
        # projection shortcut: 1x1 conv (stride) + bn, fused into the kernel
        s_sc, b_sc = fold_bn(**params["bn_sc"])
        wsc = params["w_sc"].reshape(in_planes, planes) * s_sc[None, :]
        wsc = _pad_last(wsc, cp).astype(jnp.bfloat16)
        bscp = _pad_last(b_sc.reshape(1, -1), cp)
        sc = x_bf[:, ::stride, ::stride, :]                  # (N, ho, wo, Cin)
        sc = jnp.pad(sc, ((0, 0), (0, 0), (0, wq2 - wo), (0, 0)))
        sc = sc.reshape(n, m2, in_planes)
        out = _conv_pallas(y2, w2t, b2p, wq=wq2, m=m2, out_dtype=jnp.float32,
                           shortcut=sc, w_sc=wsc, b_sc=bscp)
    else:
        # identity shortcut (channels padded to cp so the add is lane-dense)
        sc = jnp.pad(x_bf, ((0, 0), (0, 0), (0, wq2 - w), (0, cp - planes)))
        sc = sc.reshape(n, m2, cp)
        out = _conv_pallas(y2, w2t, b2p, wq=wq2, m=m2, out_dtype=jnp.float32,
                           shortcut=sc)

    out = out.reshape(n, ho, wq2, cp)[:, :, :wo, :planes]
    return out


# ----------------------------------------------------------------------------
# Parameter init (matches the PyTorch module's structure)
# ----------------------------------------------------------------------------
def init_bn(key, c):
    k1, k2, k3, k4 = jax.random.split(key, 4)
    return {
        "gamma": 0.5 + jax.random.uniform(k1, (c,), jnp.float32),
        "beta": 0.1 * jax.random.normal(k2, (c,), jnp.float32),
        "mean": 0.1 * jax.random.normal(k3, (c,), jnp.float32),
        "var": 0.5 + jax.random.uniform(k4, (c,), jnp.float32),
    }


def init_params(key, in_planes, planes, stride):
    """Conv weights stored HWIO (kh, kw, Cin, Cout)."""
    ks = jax.random.split(key, 6)

    def conv_init(k, shape):
        fan_in = shape[0] * shape[1] * shape[2]
        return jax.random.normal(k, shape, jnp.float32) * (2.0 / fan_in) ** 0.5

    params = {
        "w1": conv_init(ks[0], (3, 3, in_planes, planes)),
        "bn1": init_bn(ks[1], planes),
        "w2": conv_init(ks[2], (3, 3, planes, planes)),
        "bn2": init_bn(ks[3], planes),
    }
    if stride != 1 or in_planes != planes:
        params["w_sc"] = conv_init(ks[4], (1, 1, in_planes, planes))
        params["bn_sc"] = init_bn(ks[5], planes)
    return params


# ----------------------------------------------------------------------------
# Pure-JAX reference (correctness only; mirrors the bf16 operand rounding)
# ----------------------------------------------------------------------------
def reference_forward(x, params, in_planes, planes, stride):
    f32 = jnp.float32
    x_bf = x.astype(jnp.bfloat16).astype(f32)

    def conv(inp, wgt, s, pad):
        return jax.lax.conv_general_dilated(
            inp, wgt.astype(jnp.bfloat16).astype(f32), (s, s),
            ((pad, pad), (pad, pad)),
            dimension_numbers=("NHWC", "HWIO", "NHWC"),
            precision=jax.lax.Precision.HIGHEST)

    s1, b1 = fold_bn(**params["bn1"])
    s2, b2 = fold_bn(**params["bn2"])
    out = jnp.maximum(conv(x_bf, params["w1"] * s1, stride, 1) + b1, 0.0)
    out = out.astype(jnp.bfloat16).astype(f32)       # mirror bf16 intermediate
    out = conv(out, params["w2"] * s2, 1, 1) + b2
    if stride != 1 or in_planes != planes:
        s_sc, b_sc = fold_bn(**params["bn_sc"])
        sc = conv(x_bf, params["w_sc"] * s_sc, stride, 0) + b_sc
    else:
        sc = x_bf
    return jnp.maximum(out + sc, 0.0)


# ----------------------------------------------------------------------------
def _run_case(name, key, n, cin, hw, planes, stride):
    kx, kp = jax.random.split(key)
    x_nchw = jax.random.normal(kx, (n, cin, hw, hw), jnp.float32)
    x = jnp.transpose(x_nchw, (0, 2, 3, 1))          # NCHW -> NHWC
    params = init_params(kp, cin, planes, stride)

    fwd = jax.jit(functools.partial(basic_block_forward,
                                    in_planes=cin, planes=planes, stride=stride))
    out = jax.block_until_ready(fwd(x, params))

    ho = (hw - 1) // stride + 1
    assert out.shape == (n, ho, ho, planes), (name, out.shape)

    ref = reference_forward(x, params, cin, planes, stride)
    err = float(jnp.max(jnp.abs(out - ref)))
    # Residual error = f32 accumulation-order differences + rare 1-ulp bf16
    # rounding differences of the intermediate; a real bug would be O(0.1-1).
    if err > 1e-2:
        raise AssertionError(f"{name}: Pallas output mismatch, max abs err = {err}")
    return err


if __name__ == "__main__":
    key = jax.random.PRNGKey(0)
    k1, k2 = jax.random.split(key)
    # projection-shortcut path (stride 2, channel expansion): x NCHW (2,4,16,16)
    _run_case("proj", k1, n=2, cin=4, hw=16, planes=8, stride=2)
    # identity-shortcut path (stride 1, same planes)
    _run_case("identity", k2, n=2, cin=8, hw=16, planes=8, stride=1)
    print("KERNEL_OK")
</pallas_src>

<mosaic_0001>
module attributes {stable_mosaic.version = 11 : i64} {
  func.func @_conv_bias_relu_kernel(%arg0: i32, %arg1: i32, %arg2: memref<1x90x16xbf16, #tpu.memory_space<vmem>>, %arg3: memref<4x16x128xbf16, #tpu.memory_space<vmem>>, %arg4: memref<1x128xf32, #tpu.memory_space<vmem>>, %arg5: memref<1x72x128xbf16, #tpu.memory_space<vmem>>) attributes {dimension_semantics = [#tpu.dimension_semantics<parallel>, #tpu.dimension_semantics<parallel>], iteration_bounds = array<i64: 2, 1>, scalar_prefetch = 0 : i64, scratch_operands = 0 : i64, tpu.core_type = #tpu.core_type<tc>, window_params = [{transform_indices = @transform_0, window_bounds = array<i64: 1, 90, 16>}, {transform_indices = @transform_1, window_bounds = array<i64: 4, 16, 128>}, {transform_indices = @transform_2, window_bounds = array<i64: 1, 128>}, {transform_indices = @transform_3, window_bounds = array<i64: 1, 72, 128>}]} {
    %c0 = arith.constant 0 : index
    %c0_0 = arith.constant 0 : index
    %0 = vector.load %arg4[%c0, %c0_0] : memref<1x128xf32, #tpu.memory_space<vmem>>, vector<1x128xf32>
    %1 = vector.shape_cast %0 : vector<1x128xf32> to vector<1x128xf32>
    %2 = vector.broadcast %1 : vector<1x128xf32> to vector<72x128xf32>
    %c0_1 = arith.constant 0 : index
    %c0_2 = arith.constant 0 : index
    %c0_3 = arith.constant 0 : index
    %3 = vector.load %arg2[%c0_1, %c0_2, %c0_3] : memref<1x90x16xbf16, #tpu.memory_space<vmem>>, vector<1x72x16xbf16>
    %4 = vector.shape_cast %3 : vector<1x72x16xbf16> to vector<72x16xbf16>
    %c0_4 = arith.constant 0 : index
    %c0_5 = arith.constant 0 : index
    %c0_6 = arith.constant 0 : index
    %5 = vector.load %arg3[%c0_4, %c0_5, %c0_6] : memref<4x16x128xbf16, #tpu.memory_space<vmem>>, vector<1x16x128xbf16>
    %6 = vector.shape_cast %5 : vector<1x16x128xbf16> to vector<16x128xbf16>
    %cst = arith.constant dense<0.000000e+00> : vector<72x128xf32>
    %7 = tpu.matmul %4, %6, %cst {dimension_numbers = #tpu.dot_dimension_numbers<[1], [0], [0], [1], [0, 0, 1, 1], [], []>} : vector<72x16xbf16>, vector<16x128xbf16>, vector<72x128xf32> -> vector<72x128xf32>
    %8 = arith.addf %2, %7 : vector<72x128xf32>
    %c0_7 = arith.constant 0 : index
    %c1 = arith.constant 1 : index
    %c0_8 = arith.constant 0 : index
    %9 = vector.load %arg2[%c0_7, %c1, %c0_8] : memref<1x90x16xbf16, #tpu.memory_space<vmem>>, vector<1x72x16xbf16>
    %10 = vector.shape_cast %9 : vector<1x72x16xbf16> to vector<72x16xbf16>
    %c1_9 = arith.constant 1 : index
    %c0_10 = arith.constant 0 : index
    %c0_11 = arith.constant 0 : index
    %11 = vector.load %arg3[%c1_9, %c0_10, %c0_11] : memref<4x16x128xbf16, #tpu.memory_space<vmem>>, vector<1x16x128xbf16>
    %12 = vector.shape_cast %11 : vector<1x16x128xbf16> to vector<16x128xbf16>
    %cst_12 = arith.constant dense<0.000000e+00> : vector<72x128xf32>
    %13 = tpu.matmul %10, %12, %cst_12 {dimension_numbers = #tpu.dot_dimension_numbers<[1], [0], [0], [1], [0, 0, 1, 1], [], []>} : vector<72x16xbf16>, vector<16x128xbf16>, vector<72x128xf32> -> vector<72x128xf32>
    %14 = arith.addf %8, %13 : vector<72x128xf32>
    %c0_13 = arith.constant 0 : index
    %c9 = arith.constant 9 : index
    %c0_14 = arith.constant 0 : index
    %15 = vector.load %arg2[%c0_13, %c9, %c0_14] : memref<1x90x16xbf16, #tpu.memory_space<vmem>>, vector<1x72x16xbf16>
    %16 = vector.shape_cast %15 : vector<1x72x16xbf16> to vector<72x16xbf16>
    %c2 = arith.constant 2 : index
    %c0_15 = arith.constant 0 : index
    %c0_16 = arith.constant 0 : index
    %17 = vector.load %arg3[%c2, %c0_15, %c0_16] : memref<4x16x128xbf16, #tpu.memory_space<vmem>>, vector<1x16x128xbf16>
    %18 = vector.shape_cast %17 : vector<1x16x128xbf16> to vector<16x128xbf16>
    %cst_17 = arith.constant dense<0.000000e+00> : vector<72x128xf32>
    %19 = tpu.matmul %16, %18, %cst_17 {dimension_numbers = #tpu.dot_dimension_numbers<[1], [0], [0], [1], [0, 0, 1, 1], [], []>} : vector<72x16xbf16>, vector<16x128xbf16>, vector<72x128xf32> -> vector<72x128xf32>
    %20 = arith.addf %14, %19 : vector<72x128xf32>
    %c0_18 = arith.constant 0 : index
    %c10 = arith.constant 10 : index
    %c0_19 = arith.constant 0 : index
    %21 = vector.load %arg2[%c0_18, %c10, %c0_19] : memref<1x90x16xbf16, #tpu.memory_space<vmem>>, vector<1x72x16xbf16>
    %22 = vector.shape_cast %21 : vector<1x72x16xbf16> to vector<72x16xbf16>
    %c3 = arith.constant 3 : index
    %c0_20 = arith.constant 0 : index
    %c0_21 = arith.constant 0 : index
    %23 = vector.load %arg3[%c3, %c0_20, %c0_21] : memref<4x16x128xbf16, #tpu.memory_space<vmem>>, vector<1x16x128xbf16>
    %24 = vector.shape_cast %23 : vector<1x16x128xbf16> to vector<16x128xbf16>
    %cst_22 = arith.constant dense<0.000000e+00> : vector<72x128xf32>
    %25 = tpu.matmul %22, %24, %cst_22 {dimension_numbers = #tpu.dot_dimension_numbers<[1], [0], [0], [1], [0, 0, 1, 1], [], []>} : vector<72x16xbf16>, vector<16x128xbf16>, vector<72x128xf32> -> vector<72x128xf32>
    %26 = arith.addf %20, %25 : vector<72x128xf32>
    %cst_23 = arith.constant 0.000000e+00 : f32
    %27 = vector.broadcast %cst_23 : f32 to vector<72x128xf32>
    %28 = arith.maximumf %26, %27 : vector<72x128xf32>
    %29 = arith.truncf %28 : vector<72x128xf32> to vector<72x128xbf16>
    %c0_24 = arith.constant 0 : index
    %c0_25 = arith.constant 0 : index
    %c0_26 = arith.constant 0 : index
    %30 = vector.load %arg5[%c0_24, %c0_25, %c0_26] : memref<1x72x128xbf16, #tpu.memory_space<vmem>>, vector<1x72x128xbf16>
    %31 = vector.shape_cast %30 : vector<1x72x128xbf16> to vector<72x128xbf16>
    %32 = vector.shape_cast %29 : vector<72x128xbf16> to vector<1x72x128xbf16>
    tpu.vector_store %arg5[%c0_24, %c0_25, %c0_26], %32 {strides = array<i32>} : memref<1x72x128xbf16, #tpu.memory_space<vmem>>, vector<1x72x128xbf16>,
    return
  }
  func.func @transform_0(%arg0: i32, %arg1: i32) -> (i32, i32, i32) {
    %c0_i32 = arith.constant 0 : i32
    %c0_i32_0 = arith.constant 0 : i32
    %c0_i32_1 = arith.constant 0 : i32
    return %arg0, %c0_i32, %c0_i32_0 : i32, i32, i32
  }
  func.func @transform_1(%arg0: i32, %arg1: i32) -> (i32, i32, i32) {
    %c0_i32 = arith.constant 0 : i32
    %c0_i32_0 = arith.constant 0 : i32
    %c0_i32_1 = arith.constant 0 : i32
    return %c0_i32, %c0_i32_0, %arg1 : i32, i32, i32
  }
  func.func @transform_2(%arg0: i32, %arg1: i32) -> (i32, i32) {
    %c0_i32 = arith.constant 0 : i32
    %c0_i32_0 = arith.constant 0 : i32
    return %c0_i32, %arg1 : i32, i32
  }
  func.func @transform_3(%arg0: i32, %arg1: i32) -> (i32, i32, i32) {
    %c0_i32 = arith.constant 0 : i32
    %c0_i32_0 = arith.constant 0 : i32
    return %arg0, %c0_i32, %arg1 : i32, i32, i32
  }
}

module attributes {stable_mosaic.version = 11 : i64} {
  func.func @_conv_bias_proj_relu_kernel(%arg0: i32, %arg1: i32, %arg2: memref<1x110x128xbf16, #tpu.memory_space<vmem>>, %arg3: memref<9x128x128xbf16, #tpu.memory_space<vmem>>, %arg4: memref<1x128xf32, #tpu.memory_space<vmem>>, %arg5: memref<1x80x4xbf16, #tpu.memory_space<vmem>>, %arg6: memref<4x128xbf16, #tpu.memory_space<vmem>>, %arg7: memref<1x128xf32, #tpu.memory_space<vmem>>, %arg8: memref<1x80x128xf32, #tpu.memory_space<vmem>>) attributes {dimension_semantics = [#tpu.dimension_semantics<parallel>, #tpu.dimension_semantics<parallel>], iteration_bounds = array<i64: 2, 1>, scalar_prefetch = 0 : i64, scratch_operands = 0 : i64, tpu.core_type = #tpu.core_type<tc>, window_params = [{transform_indices = @transform_0, window_bounds = array<i64: 1, 110, 128>}, {transform_indices = @transform_1, window_bounds = array<i64: 9, 128, 128>}, {transform_indices = @transform_2, window_bounds = array<i64: 1, 128>}, {transform_indices = @transform_3, window_bounds = array<i64: 1, 80, 4>}, {transform_indices = @transform_4, window_bounds = array<i64: 4, 128>}, {transform_indices = @transform_5, window_bounds = array<i64: 1, 128>}, {transform_indices = @transform_6, window_bounds = array<i64: 1, 80, 128>}]} {
    %c0 = arith.constant 0 : index
    %c0_0 = arith.constant 0 : index
    %0 = vector.load %arg4[%c0, %c0_0] : memref<1x128xf32, #tpu.memory_space<vmem>>, vector<1x128xf32>
    %1 = vector.shape_cast %0 : vector<1x128xf32> to vector<1x128xf32>
    %2 = vector.broadcast %1 : vector<1x128xf32> to vector<80x128xf32>
    %c0_1 = arith.constant 0 : index
    %c0_2 = arith.constant 0 : index
    %c0_3 = arith.constant 0 : index
    %3 = vector.load %arg2[%c0_1, %c0_2, %c0_3] : memref<1x110x128xbf16, #tpu.memory_space<vmem>>, vector<1x80x128xbf16>
    %4 = vector.shape_cast %3 : vector<1x80x128xbf16> to vector<80x128xbf16>
    %c0_4 = arith.constant 0 : index
    %c0_5 = arith.constant 0 : index
    %c0_6 = arith.constant 0 : index
    %5 = vector.load %arg3[%c0_4, %c0_5, %c0_6] : memref<9x128x128xbf16, #tpu.memory_space<vmem>>, vector<1x128x128xbf16>
    %6 = vector.shape_cast %5 : vector<1x128x128xbf16> to vector<128x128xbf16>
    %cst = arith.constant dense<0.000000e+00> : vector<80x128xf32>
    %7 = tpu.matmul %4, %6, %cst {dimension_numbers = #tpu.dot_dimension_numbers<[1], [0], [0], [1], [0, 0, 1, 1], [], []>} : vector<80x128xbf16>, vector<128x128xbf16>, vector<80x128xf32> -> vector<80x128xf32>
    %8 = arith.addf %2, %7 : vector<80x128xf32>
    %c0_7 = arith.constant 0 : index
    %c1 = arith.constant 1 : index
    %c0_8 = arith.constant 0 : index
    %9 = vector.load %arg2[%c0_7, %c1, %c0_8] : memref<1x110x128xbf16, #tpu.memory_space<vmem>>, vector<1x80x128xbf16>
    %10 = vector.shape_cast %9 : vector<1x80x128xbf16> to vector<80x128xbf16>
    %c1_9 = arith.constant 1 : index
    %c0_10 = arith.constant 0 : index
    %c0_11 = arith.constant 0 : index
    %11 = vector.load %arg3[%c1_9, %c0_10, %c0_11] : memref<9x128x128xbf16, #tpu.memory_space<vmem>>, vector<1x128x128xbf16>
    %12 = vector.shape_cast %11 : vector<1x128x128xbf16> to vector<128x128xbf16>
    %cst_12 = arith.constant dense<0.000000e+00> : vector<80x128xf32>
    %13 = tpu.matmul %10, %12, %cst_12 {dimension_numbers = #tpu.dot_dimension_numbers<[1], [0], [0], [1], [0, 0, 1, 1], [], []>} : vector<80x128xbf16>, vector<128x128xbf16>, vector<80x128xf32> -> vector<80x128xf32>
    %14 = arith.addf %8, %13 : vector<80x128xf32>
    %c0_13 = arith.constant 0 : index
    %c2 = arith.constant 2 : index
    %c0_14 = arith.constant 0 : index
    %15 = vector.load %arg2[%c0_13, %c2, %c0_14] : memref<1x110x128xbf16, #tpu.memory_space<vmem>>, vector<1x80x128xbf16>
    %16 = vector.shape_cast %15 : vector<1x80x128xbf16> to vector<80x128xbf16>
    %c2_15 = arith.constant 2 : index
    %c0_16 = arith.constant 0 : index
    %c0_17 = arith.constant 0 : index
    %17 = vector.load %arg3[%c2_15, %c0_16, %c0_17] : memref<9x128x128xbf16, #tpu.memory_space<vmem>>, vector<1x128x128xbf16>
    %18 = vector.shape_cast %17 : vector<1x128x128xbf16> to vector<128x128xbf16>
    %cst_18 = arith.constant dense<0.000000e+00> : vector<80x128xf32>
    %19 = tpu.matmul %16, %18, %cst_18 {dimension_numbers = #tpu.dot_dimension_numbers<[1], [0], [0], [1], [0, 0, 1, 1], [], []>} : vector<80x128xbf16>, vector<128x128xbf16>, vector<80x128xf32> -> vector<80x128xf32>
    %20 = arith.addf %14, %19 : vector<80x128xf32>
    %c0_19 = arith.constant 0 : index
    %c10 = arith.constant 10 : index
    %c0_20 = arith.constant 0 : index
    %21 = vector.load %arg2[%c0_19, %c10, %c0_20] : memref<1x110x128xbf16, #tpu.memory_space<vmem>>, vector<1x80x128xbf16>
    %22 = vector.shape_cast %21 : vector<1x80x128xbf16> to vector<80x128xbf16>
    %c3 = arith.constant 3 : index
    %c0_21 = arith.constant 0 : index
    %c0_22 = arith.constant 0 : index
    %23 = vector.load %arg3[%c3, %c0_21, %c0_22] : memref<9x128x128xbf16, #tpu.memory_space<vmem>>, vector<1x128x128xbf16>
    %24 = vector.shape_cast %23 : vector<1x128x128xbf16> to vector<128x128xbf16>
    %cst_23 = arith.constant dense<0.000000e+00> : vector<80x128xf32>
    %25 = tpu.matmul %22, %24, %cst_23 {dimension_numbers = #tpu.dot_dimension_numbers<[1], [0], [0], [1], [0, 0, 1, 1], [], []>} : vector<80x128xbf16>, vector<128x128xbf16>, vector<80x128xf32> -> vector<80x128xf32>
    %26 = arith.addf %20, %25 : vector<80x128xf32>
    %c0_24 = arith.constant 0 : index
    %c11 = arith.constant 11 : index
    %c0_25 = arith.constant 0 : index
    %27 = vector.load %arg2[%c0_24, %c11, %c0_25] : memref<1x110x128xbf16, #tpu.memory_space<vmem>>, vector<1x80x128xbf16>
    %28 = vector.shape_cast %27 : vector<1x80x128xbf16> to vector<80x128xbf16>
    %c4 = arith.constant 4 : index
    %c0_26 = arith.constant 0 : index
    %c0_27 = arith.constant 0 : index
    %29 = vector.load %arg3[%c4, %c0_26, %c0_27] : memref<9x128x128xbf16, #tpu.memory_space<vmem>>, vector<1x128x128xbf16>
    %30 = vector.shape_cast %29 : vector<1x128x128xbf16> to vector<128x128xbf16>
    %cst_28 = arith.constant dense<0.000000e+00> : vector<80x128xf32>
    %31 = tpu.matmul %28, %30, %cst_28 {dimension_numbers = #tpu.dot_dimension_numbers<[1], [0], [0], [1], [0, 0, 1, 1], [], []>} : vector<80x128xbf16>, vector<128x128xbf16>, vector<80x128xf32> -> vector<80x128xf32>
    %32 = arith.addf %26, %31 : vector<80x128xf32>
    %c0_29 = arith.constant 0 : index
    %c12 = arith.constant 12 : index
    %c0_30 = arith.constant 0 : index
    %33 = vector.load %arg2[%c0_29, %c12, %c0_30] : memref<1x110x128xbf16, #tpu.memory_space<vmem>>, vector<1x80x128xbf16>
    %34 = vector.shape_cast %33 : vector<1x80x128xbf16> to vector<80x128xbf16>
    %c5 = arith.constant 5 : index
    %c0_31 = arith.constant 0 : index
    %c0_32 = arith.constant 0 : index
    %35 = vector.load %arg3[%c5, %c0_31, %c0_32] : memref<9x128x128xbf16, #tpu.memory_space<vmem>>, vector<1x128x128xbf16>
    %36 = vector.shape_cast %35 : vector<1x128x128xbf16> to vector<128x128xbf16>
    %cst_33 = arith.constant dense<0.000000e+00> : vector<80x128xf32>
    %37 = tpu.matmul %34, %36, %cst_33 {dimension_numbers = #tpu.dot_dimension_numbers<[1], [0], [0], [1], [0, 0, 1, 1], [], []>} : vector<80x128xbf16>, vector<128x128xbf16>, vector<80x128xf32> -> vector<80x128xf32>
    %38 = arith.addf %32, %37 : vector<80x128xf32>
    %c0_34 = arith.constant 0 : index
    %c20 = arith.constant 20 : index
    %c0_35 = arith.constant 0 : index
    %39 = vector.load %arg2[%c0_34, %c20, %c0_35] : memref<1x110x128xbf16, #tpu.memory_space<vmem>>, vector<1x80x128xbf16>
    %40 = vector.shape_cast %39 : vector<1x80x128xbf16> to vector<80x128xbf16>
    %c6 = arith.constant 6 : index
    %c0_36 = arith.constant 0 : index
    %c0_37 = arith.constant 0 : index
    %41 = vector.load %arg3[%c6, %c0_36, %c0_37] : memref<9x128x128xbf16, #tpu.memory_space<vmem>>, vector<1x128x128xbf16>
    %42 = vector.shape_cast %41 : vector<1x128x128xbf16> to vector<128x128xbf16>
    %cst_38 = arith.constant dense<0.000000e+00> : vector<80x128xf32>
    %43 = tpu.matmul %40, %42, %cst_38 {dimension_numbers = #tpu.dot_dimension_numbers<[1], [0], [0], [1], [0, 0, 1, 1], [], []>} : vector<80x128xbf16>, vector<128x128xbf16>, vector<80x128xf32> -> vector<80x128xf32>
    %44 = arith.addf %38, %43 : vector<80x128xf32>
    %c0_39 = arith.constant 0 : index
    %c21 = arith.constant 21 : index
    %c0_40 = arith.constant 0 : index
    %45 = vector.load %arg2[%c0_39, %c21, %c0_40] : memref<1x110x128xbf16, #tpu.memory_space<vmem>>, vector<1x80x128xbf16>
    %46 = vector.shape_cast %45 : vector<1x80x128xbf16> to vector<80x128xbf16>
    %c7 = arith.constant 7 : index
    %c0_41 = arith.constant 0 : index
    %c0_42 = arith.constant 0 : index
    %47 = vector.load %arg3[%c7, %c0_41, %c0_42] : memref<9x128x128xbf16, #tpu.memory_space<vmem>>, vector<1x128x128xbf16>
    %48 = vector.shape_cast %47 : vector<1x128x128xbf16> to vector<128x128xbf16>
    %cst_43 = arith.constant dense<0.000000e+00> : vector<80x128xf32>
    %49 = tpu.matmul %46, %48, %cst_43 {dimension_numbers = #tpu.dot_dimension_numbers<[1], [0], [0], [1], [0, 0, 1, 1], [], []>} : vector<80x128xbf16>, vector<128x128xbf16>, vector<80x128xf32> -> vector<80x128xf32>
    %50 = arith.addf %44, %49 : vector<80x128xf32>
    %c0_44 = arith.constant 0 : index
    %c22 = arith.constant 22 : index
    %c0_45 = arith.constant 0 : index
    %51 = vector.load %arg2[%c0_44, %c22, %c0_45] : memref<1x110x128xbf16, #tpu.memory_space<vmem>>, vector<1x80x128xbf16>
    %52 = vector.shape_cast %51 : vector<1x80x128xbf16> to vector<80x128xbf16>
    %c8 = arith.constant 8 : index
    %c0_46 = arith.constant 0 : index
    %c0_47 = arith.constant 0 : index
    %53 = vector.load %arg3[%c8, %c0_46, %c0_47] : memref<9x128x128xbf16, #tpu.memory_space<vmem>>, vector<1x128x128xbf16>
    %54 = vector.shape_cast %53 : vector<1x128x128xbf16> to vector<128x128xbf16>
    %cst_48 = arith.constant dense<0.000000e+00> : vector<80x128xf32>
    %55 = tpu.matmul %52, %54, %cst_48 {dimension_numbers = #tpu.dot_dimension_numbers<[1], [0], [0], [1], [0, 0, 1, 1], [], []>} : vector<80x128xbf16>, vector<128x128xbf16>, vector<80x128xf32> -> vector<80x128xf32>
    %56 = arith.addf %50, %55 : vector<80x128xf32>
    %c0_49 = arith.constant 0 : index
    %c0_50 = arith.constant 0 : index
    %c0_51 = arith.constant 0 : index
    %57 = vector.load %arg5[%c0_49, %c0_50, %c0_51] : memref<1x80x4xbf16, #tpu.memory_space<vmem>>, vector<1x80x4xbf16>
    %58 = vector.shape_cast %57 : vector<1x80x4xbf16> to vector<80x4xbf16>
    %c0_52 = arith.constant 0 : index
    %c0_53 = arith.constant 0 : index
    %59 = vector.load %arg6[%c0_52, %c0_53] : memref<4x128xbf16, #tpu.memory_space<vmem>>, vector<4x128xbf16>
    %cst_54 = arith.constant dense<0.000000e+00> : vector<80x128xf32>
    %60 = tpu.matmul %58, %59, %cst_54 {dimension_numbers = #tpu.dot_dimension_numbers<[1], [0], [0], [1], [0, 0, 1, 1], [], []>} : vector<80x4xbf16>, vector<4x128xbf16>, vector<80x128xf32> -> vector<80x128xf32>
    %c0_55 = arith.constant 0 : index
    %c0_56 = arith.constant 0 : index
    %61 = vector.load %arg7[%c0_55, %c0_56] : memref<1x128xf32, #tpu.memory_space<vmem>>, vector<1x128xf32>
    %62 = vector.broadcast %61 : vector<1x128xf32> to vector<80x128xf32>
    %63 = arith.addf %60, %62 : vector<80x128xf32>
    %64 = arith.addf %56, %63 : vector<80x128xf32>
    %cst_57 = arith.constant 0.000000e+00 : f32
    %65 = vector.broadcast %cst_57 : f32 to vector<80x128xf32>
    %66 = arith.maximumf %64, %65 : vector<80x128xf32>
    %c0_58 = arith.constant 0 : index
    %c0_59 = arith.constant 0 : index
    %c0_60 = arith.constant 0 : index
    %67 = vector.load %arg8[%c0_58, %c0_59, %c0_60] : memref<1x80x128xf32, #tpu.memory_space<vmem>>, vector<1x80x128xf32>
    %68 = vector.shape_cast %67 : vector<1x80x128xf32> to vector<80x128xf32>
    %69 = vector.shape_cast %66 : vector<80x128xf32> to vector<1x80x128xf32>
    tpu.vector_store %arg8[%c0_58, %c0_59, %c0_60], %69 {strides = array<i32>} : memref<1x80x128xf32, #tpu.memory_space<vmem>>, vector<1x80x128xf32>,
    return
  }
  func.func @transform_0(%arg0: i32, %arg1: i32) -> (i32, i32, i32) {
    %c0_i32 = arith.constant 0 : i32
    %c0_i32_0 = arith.constant 0 : i32
    %c0_i32_1 = arith.constant 0 : i32
    return %arg0, %c0_i32, %c0_i32_0 : i32, i32, i32
  }
  func.func @transform_1(%arg0: i32, %arg1: i32) -> (i32, i32, i32) {
    %c0_i32 = arith.constant 0 : i32
    %c0_i32_0 = arith.constant 0 : i32
    %c0_i32_1 = arith.constant 0 : i32
    return %c0_i32, %c0_i32_0, %arg1 : i32, i32, i32
  }
  func.func @transform_2(%arg0: i32, %arg1: i32) -> (i32, i32) {
    %c0_i32 = arith.constant 0 : i32
    %c0_i32_0 = arith.constant 0 : i32
    return %c0_i32, %arg1 : i32, i32
  }
  func.func @transform_3(%arg0: i32, %arg1: i32) -> (i32, i32, i32) {
    %c0_i32 = arith.constant 0 : i32
    %c0_i32_0 = arith.constant 0 : i32
    %c0_i32_1 = arith.constant 0 : i32
    return %arg0, %c0_i32, %c0_i32_0 : i32, i32, i32
  }
  func.func @transform_4(%arg0: i32, %arg1: i32) -> (i32, i32) {
    %c0_i32 = arith.constant 0 : i32
    %c0_i32_0 = arith.constant 0 : i32
    return %c0_i32, %arg1 : i32, i32
  }
  func.func @transform_5(%arg0: i32, %arg1: i32) -> (i32, i32) {
    %c0_i32 = arith.constant 0 : i32
    %c0_i32_0 = arith.constant 0 : i32
    return %c0_i32, %arg1 : i32, i32
  }
  func.func @transform_6(%arg0: i32, %arg1: i32) -> (i32, i32, i32) {
    %c0_i32 = arith.constant 0 : i32
    %c0_i32_0 = arith.constant 0 : i32
    return %arg0, %c0_i32, %arg1 : i32, i32, i32
  }
}

</mosaic_0001>

<llo_original>
// kernel: basic_block_forward.2
$region0: #{basic_block_forward.2}
  #allocation0 [shape = 'u32[]', space=smem, size = 0x4, offset = 0x4, fixed_abs, tag = 'smem constant byte address 0x4 - core index']
  #allocation1 [shape = 'u32[144,128]{1,0:T(1,128)}', space=vmem, size = 0x12000, scoped, tag = 'internal scratch']
  %s0 = inlined_call_operand.vmem [shape: bf16[2,90,16], index: 0, kind: input, shape index: {}]
  %s1 = inlined_call_operand.vmem [shape: bf16[4,16,128], index: 1, kind: input, shape index: {}]
  %s2 = inlined_call_operand.vmem [shape: f32[1,128], index: 2, kind: input, shape index: {}]
  %s3 = inlined_call_operand.vmem [shape: bf16[2,72,128], index: 3, kind: output, shape index: {}]
  %s4 = sld [smem:[#allocation0]]
  $region45: #{basic_block_forward.2} parent=0
    _
  %s6 = ssub.s32 1, %s4
  %s7 = scalar_select 0, %s6, %s4
  loop: start=0, step=1, limit=4
  $region2: #{basic_block_forward.2} parent=0 // loop_pre_header
    _
  $region3: #{basic_block_forward.2} parent=0 // loop_header
    %s9 = sphi 0, %s13
    %p10 = scmp.ge.s32.totalorder %s9, 4
    %s16 = sphi 0, %s28
    %s17 = sphi 0, %s24
    %s18 = sphi 0, %s16
    %s19 = sphi 0, %s17
    %s20 = sphi 0, %s18
    %s21 = sphi 0, %s19
    %s31 = sphi 0, %s33
    %s34 = sphi 0, %s31
    %s35 = sphi 0, %s34
    %s51 = sphi 0, %s35
    %s57 = sphi 0, %s59
    %s60 = sphi 0, %s57
    %s61 = sphi 0, %s60
    %s77 = sphi 0, %s61
    %s83 = sphi 0, %s85
    %s86 = sphi 0, %s83
    %s87 = sphi 0, %s86
    %s103 = sphi 0, %s87
    %s111 = sphi 0, %s113
    %s114 = sphi 0, %s111
    %s115 = sphi 0, %s114
    %s131 = sphi 0, %s115
  $region4: #{basic_block_forward.2} parent=0 // loop_header_branch
    %12 = sbr.rel (%p10) target = $region8
  $region5: #{basic_block_forward.2} parent=0 // loop_body
    %s14 = ssub.s32 %s9, 1
    %s15 = ssub.s32 %s9, 2
    %s22 = sadd.s32 1, %s17
    %p23 = scmp.ge.s32.totalorder %s22, 1
    %s24 = scalar_select %p23, 0, %s22
    %s25 = sadd.s32 1, %s16
    %s26 = scalar_select %p23, %s25, %s16
    %p27 = scmp.ge.s32.totalorder %s26, 2
    %s28 = scalar_select %p27, 0, %s26
    %s29 = ssub.s32 %s16, %s28
    %p30 = scmp.eq.s32.totalorder %s29, 0
    %s32 = sadd.s32 %s31, 1
    %s33 = scalar_select %p30, %s31, %s32
    %p36 = pneg %p30
    %p37 = scmp.eq.s32.totalorder %s9, 1
    %p38 = por %p36, %p37
    %p39 = scmp.ne.s32.totalorder %s31, %s34
    %p40 = scmp.eq.s32.totalorder %s9, 0
    %p41 = por %p39, %p40
    %p42 = scmp.ne.s32.totalorder %s31, %s34
    %p43 = scmp.eq.s32.totalorder %s14, 1
    %p44 = por %p42, %p43
    %p45 = scmp.ne.s32.totalorder %s34, %s35
    %p46 = scmp.eq.s32.totalorder %s14, 0
    %p47 = por %p45, %p46
    %p48 = scmp.ne.s32.totalorder %s34, %s35
    %p49 = scmp.eq.s32.totalorder %s15, 1
    %p50 = por %p48, %p49
    %p52 = scmp.ne.s32.totalorder %s35, %s51
    %p53 = scmp.eq.s32.totalorder %s15, 0
    %p54 = por %p52, %p53
    %s55 = ssub.s32 %s17, %s24
    %p56 = scmp.eq.s32.totalorder %s55, 0
    %s58 = sadd.s32 %s57, 1
    %s59 = scalar_select %p56, %s57, %s58
    %p62 = pneg %p56
    %p63 = scmp.eq.s32.totalorder %s9, 1
    %p64 = por %p62, %p63
    %p65 = scmp.ne.s32.totalorder %s57, %s60
    %p66 = scmp.eq.s32.totalorder %s9, 0
    %p67 = por %p65, %p66
    %p68 = scmp.ne.s32.totalorder %s57, %s60
    %p69 = scmp.eq.s32.totalorder %s14, 1
    %p70 = por %p68, %p69
    %p71 = scmp.ne.s32.totalorder %s60, %s61
    %p72 = scmp.eq.s32.totalorder %s14, 0
    %p73 = por %p71, %p72
    %p74 = scmp.ne.s32.totalorder %s60, %s61
    %p75 = scmp.eq.s32.totalorder %s15, 1
    %p76 = por %p74, %p75
    %p78 = scmp.ne.s32.totalorder %s61, %s77
    %p79 = scmp.eq.s32.totalorder %s15, 0
    %p80 = por %p78, %p79
    %s81 = ssub.s32 %s17, %s24
    %p82 = scmp.eq.s32.totalorder %s81, 0
    %s84 = sadd.s32 %s83, 1
    %s85 = scalar_select %p82, %s83, %s84
    %p88 = pneg %p82
    %p89 = scmp.eq.s32.totalorder %s9, 1
    %p90 = por %p88, %p89
    %p91 = scmp.ne.s32.totalorder %s83, %s86
    %p92 = scmp.eq.s32.totalorder %s9, 0
    %p93 = por %p91, %p92
    %p94 = scmp.ne.s32.totalorder %s83, %s86
    %p95 = scmp.eq.s32.totalorder %s14, 1
    %p96 = por %p94, %p95
    %p97 = scmp.ne.s32.totalorder %s86, %s87
    %p98 = scmp.eq.s32.totalorder %s14, 0
    %p99 = por %p97, %p98
    %p100 = scmp.ne.s32.totalorder %s86, %s87
    %p101 = scmp.eq.s32.totalorder %s15, 1
    %p102 = por %p100, %p101
    %p104 = scmp.ne.s32.totalorder %s87, %s103
    %p105 = scmp.eq.s32.totalorder %s15, 0
    %p106 = por %p104, %p105
    %s107 = ssub.s32 %s16, %s28
    %s108 = ssub.s32 %s17, %s24
    %s109 = sor.u32 %s107, %s108
    %p110 = scmp.eq.s32.totalorder %s109, 0
    %s112 = sadd.s32 %s111, 1
    %s113 = scalar_select %p110, %s111, %s112
    %p116 = pneg %p110
    %p117 = scmp.eq.s32.totalorder %s9, 1
    %p118 = por %p116, %p117
    %p119 = scmp.ne.s32.totalorder %s111, %s114
    %p120 = scmp.eq.s32.totalorder %s9, 0
    %p121 = por %p119, %p120
    %p122 = scmp.ne.s32.totalorder %s111, %s114
    %p123 = scmp.eq.s32.totalorder %s14, 1
    %p124 = por %p122, %p123
    %p125 = scmp.ne.s32.totalorder %s114, %s115
    %p126 = scmp.eq.s32.totalorder %s14, 0
    %p127 = por %p125, %p126
    %p128 = scmp.ne.s32.totalorder %s114, %s115
    %p129 = scmp.eq.s32.totalorder %s15, 1
    %p130 = por %p128, %p129
    %p132 = scmp.ne.s32.totalorder %s115, %s131
    %p133 = scmp.eq.s32.totalorder %s15, 0
    %p134 = por %p132, %p133
    %p135 = scmp.le.s32.totalorder 1, %s9
    %p136 = scmp.lt.s32.totalorder %s9, 3
    %p137 = pnand %p135, %p136
    %p138 = pneg %p137
    // Predicated region
    $region9: #{basic_block_forward.2} parent=5 // pred_check
      _
    $region10: #{basic_block_forward.2} parent=5 // pred_check_branch
      %140 = sbr.rel (%p137) target = $region12
    $region11: #{basic_block_forward.2} parent=5 // pred_region
      %s141 = ssub.s32 %s9, 1
      // Predicated region
      $region13: #{basic_block_forward.2} parent=11 // pred_check
        %p142 = pneg %p73
      $region14: #{basic_block_forward.2} parent=11 // pred_check_branch
        %144 = sbr.rel (%p142) target = $region16
      $region15: #{basic_block_forward.2} parent=11 // pred_region
        %p145 = scmp.lt.s32.totalorder %s19, 0
        %s146 = scalar_select %p145, %s19, 0
        %s147 = smul.addr %s146, 4
        %s148 = scalar_lea.vmem %s1, %s147
      $region16: #{basic_block_forward.2} parent=11 // pred_fallthru
        _
      // Predicated region
      $region17: #{basic_block_forward.2} parent=11 // pred_check
        %p149 = pneg %p99
      $region18: #{basic_block_forward.2} parent=11 // pred_check_branch
        %151 = sbr.rel (%p149) target = $region20
      $region19: #{basic_block_forward.2} parent=11 // pred_region
        %p152 = scmp.lt.s32.totalorder %s19, 0
        %s153 = scalar_select %p152, %s19, 0
        %s154 = scalar_lea.vmem %s2, %s153
      $region20: #{basic_block_forward.2} parent=11 // pred_fallthru
        _
    $region12: #{basic_block_forward.2} parent=5 // pred_fallthru
      _
    %p155 = scmp.lt.s32.totalorder %s9, 2
    // Predicated region
    $region21: #{basic_block_forward.2} parent=5 // pred_check
      %p156 = pneg %p155
    $region22: #{basic_block_forward.2} parent=5 // pred_check_branch
      %158 = sbr.rel (%p156) target = $region24
    $region23: #{basic_block_forward.2} parent=5 // pred_region
      // Predicated region
      $region25: #{basic_block_forward.2} parent=23 // pred_check
        %p159 = pneg %p41
      $region26: #{basic_block_forward.2} parent=23 // pred_check_branch
        %161 = sbr.rel (%p159) target = $region28
      $region27: #{basic_block_forward.2} parent=23 // pred_region
        %p162 = scmp.lt.s32.totalorder %s16, 1
        %s163 = scalar_select %p162, %s16, 1
        %s164 = smul.addr %s163, 12
        %s165 = smul.addr %s164, 4
        %s166 = scalar_lea.vmem %s0, %s165
      $region28: #{basic_block_forward.2} parent=23 // pred_fallthru
        _
    $region24: #{basic_block_forward.2} parent=5 // pred_fallthru
      _
    %p167 = scmp.le.s32.totalorder 1, %s9
    %p168 = scmp.lt.s32.totalorder %s9, 3
    %p169 = pnand %p167, %p168
    %p170 = pneg %p169
    // Predicated region
    $region29: #{basic_block_forward.2} parent=5 // pred_check
      _
    $region30: #{basic_block_forward.2} parent=5 // pred_check_branch
      %172 = sbr.rel (%p169) target = $region32
    $region31: #{basic_block_forward.2} parent=5 // pred_region
      %s173 = ssub.s32 %s9, 1
      %p174 = scmp.lt.s32.totalorder %s18, 1
      %s175 = scalar_select %p174, %s18, 1
      %s176 = smul.addr %s175, 12
      %s177 = smul.addr %s176, 4
      %s178 = scalar_lea.vmem %s0, %s177
      %p179 = pneg %p47
      %p180 = pneg %p44
      %p181 = scmp.lt.s32.totalorder %s19, 0
      %s182 = scalar_select %p181, %s19, 0
      %s183 = smul.addr %s182, 4
      %s184 = scalar_lea.vmem %s1, %s183
      %p185 = pneg %p73
      %p186 = pneg %p70
      %p187 = scmp.lt.s32.totalorder %s19, 0
      %s188 = scalar_select %p187, %s19, 0
      %s189 = scalar_lea.vmem %s2, %s188
      %p190 = pneg %p99
      %p191 = pneg %p96
      %p192 = pneg %p127
      %p193 = pneg %p124
      %p194 = scmp.lt.s32.totalorder %s18, 1
      %s195 = scalar_select %p194, %s18, 1
      %p196 = scmp.lt.s32.totalorder %s19, 0
      %s197 = scalar_select %p196, %s19, 0
      %s198 = smul.addr %s195, 9
      %s199 = sadd.s32 %s197, %s198
      %s200 = smul.addr %s199, 4
      %s201 = scalar_lea.vmem %s3, %s200
      %p202 = scmp.lt.s32.totalorder %s18, 1
      %s203 = scalar_select %p202, %s18, 1
      %s204 = smul.addr %s203, 12
      %s205 = smul.addr %s204, 4
      %s206 = scalar_lea.vmem %s0, %s205
      %p207 = scmp.lt.s32.totalorder %s19, 0
      %s208 = scalar_select %p207, %s19, 0
      %s209 = smul.addr %s208, 4
      %s210 = scalar_lea.vmem %s1, %s209
      %p211 = scmp.lt.s32.totalorder %s19, 0
      %s212 = scalar_select %p211, %s19, 0
      %s213 = scalar_lea.vmem %s2, %s212
      %p214 = scmp.lt.s32.totalorder %s18, 1
      %s215 = scalar_select %p214, %s18, 1
      %p216 = scmp.lt.s32.totalorder %s19, 0
      %s217 = scalar_select %p216, %s19, 0
      %s218 = smul.addr %s215, 9
      %s219 = sadd.s32 %s217, %s218
      %s220 = smul.addr %s219, 4
      %s221 = scalar_lea.vmem %s3, %s220
      %v223 = vld [vmem:[%s213] sm:$0x1]
      %v225 = vlaneseq
      %v226 = vshrl.u32 %v225, 7
      %v227 = vsub.s32 0, %v226
      %v228 = vrot.slane %v223, %v227
      %v230 = vld [vmem:[%s206] sm:$0xf]
      %v231 = vld [vmem:[%s206 + $0x4] sm:$0xf]
      %v232 = vld [vmem:[%s206 + $0x8] sm:$0xf]
      %v233 = vld [vmem:[%s206 + $0xc] sm:$0xf]
      %v234 = vld [vmem:[%s206 + $0x10] sm:$0xf]
      %v235 = vld [vmem:[%s206 + $0x14] sm:$0xf]
      %v236 = vld [vmem:[%s206 + $0x18] sm:$0xf]
      %v237 = vld [vmem:[%s206 + $0x1c] sm:$0xf]
      %v238 = vld [vmem:[%s206 + $0x20] sm:$0xf]
      %v239 = vld [vmem:[%s210] sm:$0xf]
      %v240 = vld [vmem:[%s210 + $0x4] sm:$0xf]
      %v250 = vunpack.c.l.b16 %v230
      %v251 = vunpack.c.l.b16 %v231
      %v252 = vunpack.c.l.b16 %v232
      %v253 = vunpack.c.l.b16 %v233
      %v254 = vunpack.c.l.b16 %v234
      %v255 = vunpack.c.l.b16 %v235
      %v256 = vunpack.c.l.b16 %v236
      %v257 = vunpack.c.l.b16 %v237
      %v258 = vunpack.c.l.b16 %v238
      %v259 = vpack.c.b16 %v251, %v250
      %v260 = vpack.c.b16 %v253, %v252
      %v261 = vpack.c.b16 %v255, %v254
      %v262 = vpack.c.b16 %v257, %v256
      %v263 = vpack.c.b16 %v258, %v258
      %v266 = vunpack.c.l.b16 %v239
      %v267 = vunpack.c.l.b16 %v240
      %v268 = vpack.c.b16 %v267, %v266
      %vm270 = vcmask 130048
      %v272 = vsel %vm270, %v259, 0
      %v275 = vsel %vm270, %v260, 0
      %v278 = vsel %vm270, %v261, 0
      %v281 = vsel %vm270, %v262, 0
      %v284 = vsel %vm270, %v263, 0
      %286 = vmatprep.subr.bf16.mxu0 0
      %287 = vmatpush1.bf16.msra.mxu0 0
      %288 = vmatprep.subr.bf16.mxu0 0
      %289 = vmatpush1.bf16.msra.mxu0 0
      %290 = vmatprep.subr.bf16.mxu0 0
      %291 = vmatpush1.bf16.msra.mxu0 0
      %292 = vmatprep.subr.bf16.mxu0 0
      %293 = vmatpush1.bf16.msra.mxu0 0
      %294 = vmatprep.subr.bf16.mxu0 0
      %295 = vmatpush1.bf16.msra.mxu0 0
      %296 = vmatprep.subr.bf16.mxu0 0
      %297 = vmatpush1.bf16.msra.mxu0 0
      %298 = vmatprep.subr.bf16.mxu0 0
      %299 = vmatpush1.bf16.msra.mxu0 0
      %300 = vmatprep.subr.bf16.mxu0 0
      %301 = vmatpush1.bf16.msra.mxu0 %v268
      %302 = vmatprep.subr.bf16.mxu0 0
      %303 = vmatpush2.bf16.msra.mxu0 0
      %304 = vmatprep.subr.bf16.mxu0 0
      %305 = vmatpush2.bf16.msra.mxu0 0
      %306 = vmatprep.subr.bf16.mxu0 0
      %307 = vmatpush2.bf16.msra.mxu0 0
      %308 = vmatprep.subr.bf16.mxu0 0
      %309 = vmatpush2.bf16.msra.mxu0 0
      %310 = vmatprep.subr.bf16.mxu0 0
      %311 = vmatpush2.bf16.msra.mxu0 0
      %312 = vmatprep.subr.bf16.mxu0 0
      %313 = vmatpush2.bf16.msra.mxu0 0
      %314 = vmatprep.subr.bf16.mxu0 0
      %315 = vmatpush2.bf16.msra.mxu0 0
      %316 = vmatprep.subr.bf16.mxu0 0
      %317 = vmatpush2.bf16.msra.mxu0 0
      %318 = vmatprep.mubr.bf16.mxu0 0
      %319 = vmatmul.mubr.bf16.gmra.mxu0 %v272
      %v320 = vpop.f32.mrf.mxu0
      %v321 = vadd.f32 0.0, %v320
      %v322 = vpop.f32.mrf.mxu0
      %v323 = vpop.f32.mrf.mxu0
      %v324 = vadd.f32 0.0, %v323
      %v325 = vpop.f32.mrf.mxu0
      %326 = vmatprep.mubr.bf16.mxu0 0
      %327 = vmatmul.mubr.bf16.gmra.mxu0 %v275
      %v328 = vpop.f32.mrf.mxu0
      %v329 = vadd.f32 0.0, %v328
      %v330 = vpop.f32.mrf.mxu0
      %v331 = vpop.f32.mrf.mxu0
      %v332 = vadd.f32 0.0, %v331
      %v333 = vpop.f32.mrf.mxu0
      %334 = vmatprep.mubr.bf16.mxu0 0
      %335 = vmatmul.mubr.bf16.gmra.mxu0 %v278
      %v336 = vpop.f32.mrf.mxu0
      %v337 = vadd.f32 0.0, %v336
      %v338 = vpop.f32.mrf.mxu0
      %v339 = vpop.f32.mrf.mxu0
      %v340 = vadd.f32 0.0, %v339
      %v341 = vpop.f32.mrf.mxu0
      %342 = vmatprep.mubr.bf16.mxu0 0
      %343 = vmatmul.mubr.bf16.gmra.mxu0 %v281
      %v344 = vpop.f32.mrf.mxu0
      %v345 = vadd.f32 0.0, %v344
      %v346 = vpop.f32.mrf.mxu0
      %v347 = vpop.f32.mrf.mxu0
      %v348 = vadd.f32 0.0, %v347
      %v349 = vpop.f32.mrf.mxu0
      %350 = vmatprep.mubr.bf16.mxu0 0
      %351 = vmatmul.mubr.bf16.gmra.mxu0 %v284
      %v352 = vpop.f32.mrf.mxu0
      %v353 = vadd.f32 0.0, %v352
      %v354 = vpop.f32.mrf.mxu0
      %v355 = vpop.f32.mrf.mxu0
      %v356 = vpop.f32.mrf.mxu0
      %357 = vdwg.mxu0
      %v358 = vadd.f32 %v228, %v321
      %v359 = vadd.f32 %v228, %v324
      %v360 = vadd.f32 %v228, %v329
      %v361 = vadd.f32 %v228, %v332
      %v362 = vadd.f32 %v228, %v337
      %v363 = vadd.f32 %v228, %v340
      %v364 = vadd.f32 %v228, %v345
      %v365 = vadd.f32 %v228, %v348
      %v366 = vadd.f32 %v228, %v353
      %v367 = vld [vmem:[%s206] sm:$0xf]
      %v368 = vld [vmem:[%s206 + $0x4] sm:$0xf]
      %v369 = vld [vmem:[%s206 + $0x8] sm:$0xf]
      %v370 = vld [vmem:[%s206 + $0xc] sm:$0xf]
      %v371 = vld [vmem:[%s206 + $0x10] sm:$0xf]
      %v372 = vld [vmem:[%s206 + $0x14] sm:$0xf]
      %v373 = vld [vmem:[%s206 + $0x18] sm:$0xf]
      %v374 = vld [vmem:[%s206 + $0x1c] sm:$0xf]
      %v375 = vld [vmem:[%s206 + $0x20] sm:$0xf]
      %v376 = vld [vmem:[%s206 + $0x24] sm:$0x1]
      %s377 = scalar_lea.vmem %s210, 8
      %v378 = vld [vmem:[%s377] sm:$0xf]
      %v379 = vld [vmem:[%s377 + $0x4] sm:$0xf]
      %v390 = vunpack.c.l.b16 %v367
      %v391 = vunpack.c.l.b16 %v368
      %v392 = vunpack.c.l.b16 %v369
      %v393 = vunpack.c.l.b16 %v370
      %v394 = vunpack.c.l.b16 %v371
      %v395 = vunpack.c.l.b16 %v372
      %v396 = vunpack.c.l.b16 %v373
      %v397 = vunpack.c.l.b16 %v374
      %v398 = vunpack.c.l.b16 %v375
      %v399 = vunpack.c.l.b16 %v376
      %v400 = vpack.c.b16 %v391, %v390
      %v401 = vpack.c.b16 %v393, %v392
      %v402 = vpack.c.b16 %v395, %v394
      %v403 = vpack.c.b16 %v397, %v396
      %v404 = vpack.c.b16 %v399, %v398
      %vm405 = vsmask.f32 7424
      %v407 = vshrl.u32 %v400, 16
      %v409 = vshll.u32 %v400, 16
      %v411 = vrot.slane %v409, 1
      %v412 = vor.u32 %v407, %v411
      %v414 = vshll.u32 %v401, 16
      %v416 = vrot.slane %v414, 1
      %v417 = vsel %vm405, %v412, %v416
      %v418 = vshrl.u32 %v401, 16
      %v420 = vor.u32 %v418, %v416
      %v422 = vshll.u32 %v402, 16
      %v424 = vrot.slane %v422, 1
      %v425 = vsel %vm405, %v420, %v424
      %v426 = vshrl.u32 %v402, 16
      %v428 = vor.u32 %v426, %v424
      %v430 = vshll.u32 %v403, 16
      %v432 = vrot.slane %v430, 1
      %v433 = vsel %vm405, %v428, %v432
      %v434 = vshrl.u32 %v403, 16
      %v436 = vor.u32 %v434, %v432
      %v438 = vshll.u32 %v404, 16
      %v440 = vrot.slane %v438, 1
      %v441 = vsel %vm405, %v436, %v440
      %v442 = vshrl.u32 %v404, 16
      %v444 = vor.u32 %v442, %v440
      %v447 = vunpack.c.l.b16 %v378
      %v448 = vunpack.c.l.b16 %v379
      %v449 = vpack.c.b16 %v448, %v447
      %v452 = vsel %vm270, %v417, 0
      %v455 = vsel %vm270, %v425, 0
      %v458 = vsel %vm270, %v433, 0
      %v461 = vsel %vm270, %v441, 0
      %v464 = vsel %vm270, %v444, 0
      %466 = vmatprep.subr.bf16.mxu0 0
      %467 = vmatpush1.bf16.msra.mxu0 0
      %468 = vmatprep.subr.bf16.mxu0 0
      %469 = vmatpush1.bf16.msra.mxu0 0
      %470 = vmatprep.subr.bf16.mxu0 0
      %471 = vmatpush1.bf16.msra.mxu0 0
      %472 = vmatprep.subr.bf16.mxu0 0
      %473 = vmatpush1.bf16.msra.mxu0 0
      %474 = vmatprep.subr.bf16.mxu0 0
      %475 = vmatpush1.bf16.msra.mxu0 0
      %476 = vmatprep.subr.bf16.mxu0 0
      %477 = vmatpush1.bf16.msra.mxu0 0
      %478 = vmatprep.subr.bf16.mxu0 0
      %479 = vmatpush1.bf16.msra.mxu0 0
      %480 = vmatprep.subr.bf16.mxu0 0
      %481 = vmatpush1.bf16.msra.mxu0 %v449
      %482 = vmatprep.subr.bf16.mxu0 0
      %483 = vmatpush2.bf16.msra.mxu0 0
      %484 = vmatprep.subr.bf16.mxu0 0
      %485 = vmatpush2.bf16.msra.mxu0 0
      %486 = vmatprep.subr.bf16.mxu0 0
      %487 = vmatpush2.bf16.msra.mxu0 0
      %488 = vmatprep.subr.bf16.mxu0 0
      %489 = vmatpush2.bf16.msra.mxu0 0
      %490 = vmatprep.subr.bf16.mxu0 0
      %491 = vmatpush2.bf16.msra.mxu0 0
      %492 = vmatprep.subr.bf16.mxu0 0
      %493 = vmatpush2.bf16.msra.mxu0 0
      %494 = vmatprep.subr.bf16.mxu0 0
      %495 = vmatpush2.bf16.msra.mxu0 0
      %496 = vmatprep.subr.bf16.mxu0 0
      %497 = vmatpush2.bf16.msra.mxu0 0
      %498 = vmatprep.mubr.bf16.mxu0 0
      %499 = vmatmul.mubr.bf16.gmra.mxu0 %v452
      %v500 = vpop.f32.mrf.mxu0
      %v501 = vadd.f32 0.0, %v500
      %v502 = vpop.f32.mrf.mxu0
      %v503 = vpop.f32.mrf.mxu0
      %v504 = vadd.f32 0.0, %v503
      %v505 = vpop.f32.mrf.mxu0
      %506 = vmatprep.mubr.bf16.mxu0 0
      %507 = vmatmul.mubr.bf16.gmra.mxu0 %v455
      %v508 = vpop.f32.mrf.mxu0
      %v509 = vadd.f32 0.0, %v508
      %v510 = vpop.f32.mrf.mxu0
      %v511 = vpop.f32.mrf.mxu0
      %v512 = vadd.f32 0.0, %v511
      %v513 = vpop.f32.mrf.mxu0
      %514 = vmatprep.mubr.bf16.mxu0 0
      %515 = vmatmul.mubr.bf16.gmra.mxu0 %v458
      %v516 = vpop.f32.mrf.mxu0
      %v517 = vadd.f32 0.0, %v516
      %v518 = vpop.f32.mrf.mxu0
      %v519 = vpop.f32.mrf.mxu0
      %v520 = vadd.f32 0.0, %v519
      %v521 = vpop.f32.mrf.mxu0
      %522 = vmatprep.mubr.bf16.mxu0 0
      %523 = vmatmul.mubr.bf16.gmra.mxu0 %v461
      %v524 = vpop.f32.mrf.mxu0
      %v525 = vadd.f32 0.0, %v524
      %v526 = vpop.f32.mrf.mxu0
      %v527 = vpop.f32.mrf.mxu0
      %v528 = vadd.f32 0.0, %v527
      %v529 = vpop.f32.mrf.mxu0
      %530 = vmatprep.mubr.bf16.mxu0 0
      %531 = vmatmul.mubr.bf16.gmra.mxu0 %v464
      %v532 = vpop.f32.mrf.mxu0
      %v533 = vadd.f32 0.0, %v532
      %v534 = vpop.f32.mrf.mxu0
      %v535 = vpop.f32.mrf.mxu0
      %v536 = vpop.f32.mrf.mxu0
      %537 = vdwg.mxu0
      %v538 = vadd.f32 %v358, %v501
      %v539 = vadd.f32 %v359, %v504
      %v540 = vadd.f32 %v360, %v509
      %v541 = vadd.f32 %v361, %v512
      %v542 = vadd.f32 %v362, %v517
      %v543 = vadd.f32 %v363, %v520
      %v544 = vadd.f32 %v364, %v525
      %v545 = vadd.f32 %v365, %v528
      %v546 = vadd.f32 %v366, %v533
      %v547 = vld [vmem:[%s206 + $0x4] sm:$0xf]
      %v548 = vld [vmem:[%s206 + $0x8] sm:$0xf]
      %v549 = vld [vmem:[%s206 + $0xc] sm:$0xf]
      %v550 = vld [vmem:[%s206 + $0x10] sm:$0xf]
      %v551 = vld [vmem:[%s206 + $0x14] sm:$0xf]
      %v552 = vld [vmem:[%s206 + $0x18] sm:$0xf]
      %v553 = vld [vmem:[%s206 + $0x1c] sm:$0xf]
      %v554 = vld [vmem:[%s206 + $0x20] sm:$0xf]
      %v555 = vld [vmem:[%s206 + $0x24] sm:$0xf]
      %v556 = vld [vmem:[%s206 + $0x28] sm:$0x1]
      %s557 = scalar_lea.vmem %s210, 16
      %v558 = vld [vmem:[%s557] sm:$0xf]
      %v559 = vld [vmem:[%s557 + $0x4] sm:$0xf]
      %v570 = vunpack.c.l.b16 %v547
      %v571 = vunpack.c.l.b16 %v548
      %v572 = vunpack.c.l.b16 %v549
      %v573 = vunpack.c.l.b16 %v550
      %v574 = vunpack.c.l.b16 %v551
      %v575 = vunpack.c.l.b16 %v552
      %v576 = vunpack.c.l.b16 %v553
      %v577 = vunpack.c.l.b16 %v554
      %v578 = vunpack.c.l.b16 %v555
      %v579 = vunpack.c.l.b16 %v556
      %v580 = vpack.c.b16 %v571, %v570
      %v581 = vpack.c.b16 %v573, %v572
      %v582 = vpack.c.b16 %v575, %v574
      %v583 = vpack.c.b16 %v577, %v576
      %v584 = vpack.c.b16 %v579, %v578
      %v586 = vshrl.u32 %v580, 16
      %v588 = vshll.u32 %v580, 16
      %v590 = vrot.slane %v588, 1
      %v591 = vor.u32 %v586, %v590
      %v593 = vshll.u32 %v581, 16
      %v595 = vrot.slane %v593, 1
      %v596 = vsel %vm405, %v591, %v595
      %v597 = vshrl.u32 %v581, 16
      %v599 = vor.u32 %v597, %v595
      %v601 = vshll.u32 %v582, 16
      %v603 = vrot.slane %v601, 1
      %v604 = vsel %vm405, %v599, %v603
      %v605 = vshrl.u32 %v582, 16
      %v607 = vor.u32 %v605, %v603
      %v609 = vshll.u32 %v583, 16
      %v611 = vrot.slane %v609, 1
      %v612 = vsel %vm405, %v607, %v611
      %v613 = vshrl.u32 %v583, 16
      %v615 = vor.u32 %v613, %v611
      %v617 = vshll.u32 %v584, 16
      %v619 = vrot.slane %v617, 1
      %v620 = vsel %vm405, %v615, %v619
      %v621 = vshrl.u32 %v584, 16
      %v623 = vor.u32 %v621, %v619
      %v626 = vunpack.c.l.b16 %v558
      %v627 = vunpack.c.l.b16 %v559
      %v628 = vpack.c.b16 %v627, %v626
      %v631 = vsel %vm270, %v596, 0
      %v634 = vsel %vm270, %v604, 0
      %v637 = vsel %vm270, %v612, 0
      %v640 = vsel %vm270, %v620, 0
      %v643 = vsel %vm270, %v623, 0
      %645 = vmatprep.subr.bf16.mxu0 0
      %646 = vmatpush1.bf16.msra.mxu0 0
      %647 = vmatprep.subr.bf16.mxu0 0
      %648 = vmatpush1.bf16.msra.mxu0 0
      %649 = vmatprep.subr.bf16.mxu0 0
      %650 = vmatpush1.bf16.msra.mxu0 0
      %651 = vmatprep.subr.bf16.mxu0 0
      %652 = vmatpush1.bf16.msra.mxu0 0
      %653 = vmatprep.subr.bf16.mxu0 0
      %654 = vmatpush1.bf16.msra.mxu0 0
      %655 = vmatprep.subr.bf16.mxu0 0
      %656 = vmatpush1.bf16.msra.mxu0 0
      %657 = vmatprep.subr.bf16.mxu0 0
      %658 = vmatpush1.bf16.msra.mxu0 0
      %659 = vmatprep.subr.bf16.mxu0 0
      %660 = vmatpush1.bf16.msra.mxu0 %v628
      %661 = vmatprep.subr.bf16.mxu0 0
      %662 = vmatpush2.bf16.msra.mxu0 0
      %663 = vmatprep.subr.bf16.mxu0 0
      %664 = vmatpush2.bf16.msra.mxu0 0
      %665 = vmatprep.subr.bf16.mxu0 0
      %666 = vmatpush2.bf16.msra.mxu0 0
      %667 = vmatprep.subr.bf16.mxu0 0
      %668 = vmatpush2.bf16.msra.mxu0 0
      %669 = vmatprep.subr.bf16.mxu0 0
      %670 = vmatpush2.bf16.msra.mxu0 0
      %671 = vmatprep.subr.bf16.mxu0 0
      %672 = vmatpush2.bf16.msra.mxu0 0
      %673 = vmatprep.subr.bf16.mxu0 0
      %674 = vmatpush2.bf16.msra.mxu0 0
      %675 = vmatprep.subr.bf16.mxu0 0
      %676 = vmatpush2.bf16.msra.mxu0 0
      %677 = vmatprep.mubr.bf16.mxu0 0
      %678 = vmatmul.mubr.bf16.gmra.mxu0 %v631
      %v679 = vpop.f32.mrf.mxu0
      %v680 = vadd.f32 0.0, %v679
      %v681 = vpop.f32.mrf.mxu0
      %v682 = vpop.f32.mrf.mxu0
      %v683 = vadd.f32 0.0, %v682
      %v684 = vpop.f32.mrf.mxu0
      %685 = vmatprep.mubr.bf16.mxu0 0
      %686 = vmatmul.mubr.bf16.gmra.mxu0 %v634
      %v687 = vpop.f32.mrf.mxu0
      %v688 = vadd.f32 0.0, %v687
      %v689 = vpop.f32.mrf.mxu0
      %v690 = vpop.f32.mrf.mxu0
      %v691 = vadd.f32 0.0, %v690
      %v692 = vpop.f32.mrf.mxu0
      %693 = vmatprep.mubr.bf16.mxu0 0
      %694 = vmatmul.mubr.bf16.gmra.mxu0 %v637
      %v695 = vpop.f32.mrf.mxu0
      %v696 = vadd.f32 0.0, %v695
      %v697 = vpop.f32.mrf.mxu0
      %v698 = vpop.f32.mrf.mxu0
      %v699 = vadd.f32 0.0, %v698
      %v700 = vpop.f32.mrf.mxu0
      %701 = vmatprep.mubr.bf16.mxu0 0
      %702 = vmatmul.mubr.bf16.gmra.mxu0 %v640
      %v703 = vpop.f32.mrf.mxu0
      %v704 = vadd.f32 0.0, %v703
      %v705 = vpop.f32.mrf.mxu0
      %v706 = vpop.f32.mrf.mxu0
      %v707 = vadd.f32 0.0, %v706
      %v708 = vpop.f32.mrf.mxu0
      %709 = vmatprep.mubr.bf16.mxu0 0
      %710 = vmatmul.mubr.bf16.gmra.mxu0 %v643
      %v711 = vpop.f32.mrf.mxu0
      %v712 = vadd.f32 0.0, %v711
      %v713 = vpop.f32.mrf.mxu0
      %v714 = vpop.f32.mrf.mxu0
      %v715 = vpop.f32.mrf.mxu0
      %716 = vdwg.mxu0
      %v717 = vadd.f32 %v538, %v680
      %v718 = vadd.f32 %v539, %v683
      %v719 = vadd.f32 %v540, %v688
      %v720 = vadd.f32 %v541, %v691
      %v721 = vadd.f32 %v542, %v696
      %v722 = vadd.f32 %v543, %v699
      %v723 = vadd.f32 %v544, %v704
      %v724 = vadd.f32 %v545, %v707
      %v725 = vadd.f32 %v546, %v712
      %v726 = vld [vmem:[%s206 + $0x4] sm:$0xe]
      %s727 = scalar_lea.vmem %s210, 24
      %v728 = vld [vmem:[%s727] sm:$0xf]
      %v729 = vld [vmem:[%s727 + $0x4] sm:$0xf]
      %v731 = vunpack.c.l.b16 %v726
      %v732 = vpack.c.b16 %v571, %v731
      %vm733 = vcmask 1046528
      %v734 = vrot.slane %v732, 1
      %v735 = vrot.slane %v581, 1
      %v736 = vsel %vm733, %v734, %v735
      %v737 = vrot.slane %v582, 1
      %v738 = vsel %vm733, %v735, %v737
      %v739 = vrot.slane %v583, 1
      %v740 = vsel %vm733, %v737, %v739
      %v741 = vrot.slane %v584, 1
      %v742 = vsel %vm733, %v739, %v741
      %v745 = vunpack.c.l.b16 %v728
      %v746 = vunpack.c.l.b16 %v729
      %v747 = vpack.c.b16 %v746, %v745
      %v750 = vsel %vm270, %v736, 0
      %v753 = vsel %vm270, %v738, 0
      %v756 = vsel %vm270, %v740, 0
      %v759 = vsel %vm270, %v742, 0
      %v762 = vsel %vm270, %v741, 0
      %764 = vmatprep.subr.bf16.mxu0 0
      %765 = vmatpush1.bf16.msra.mxu0 0
      %766 = vmatprep.subr.bf16.mxu0 0
      %767 = vmatpush1.bf16.msra.mxu0 0
      %768 = vmatprep.subr.bf16.mxu0 0
      %769 = vmatpush1.bf16.msra.mxu0 0
      %770 = vmatprep.subr.bf16.mxu0 0
      %771 = vmatpush1.bf16.msra.mxu0 0
      %772 = vmatprep.subr.bf16.mxu0 0
      %773 = vmatpush1.bf16.msra.mxu0 0
      %774 = vmatprep.subr.bf16.mxu0 0
      %775 = vmatpush1.bf16.msra.mxu0 0
      %776 = vmatprep.subr.bf16.mxu0 0
      %777 = vmatpush1.bf16.msra.mxu0 0
      %778 = vmatprep.subr.bf16.mxu0 0
      %779 = vmatpush1.bf16.msra.mxu0 %v747
      %780 = vmatprep.subr.bf16.mxu0 0
      %781 = vmatpush2.bf16.msra.mxu0 0
      %782 = vmatprep.subr.bf16.mxu0 0
      %783 = vmatpush2.bf16.msra.mxu0 0
      %784 = vmatprep.subr.bf16.mxu0 0
      %785 = vmatpush2.bf16.msra.mxu0 0
      %786 = vmatprep.subr.bf16.mxu0 0
      %787 = vmatpush2.bf16.msra.mxu0 0
      %788 = vmatprep.subr.bf16.mxu0 0
      %789 = vmatpush2.bf16.msra.mxu0 0
      %790 = vmatprep.subr.bf16.mxu0 0
      %791 = vmatpush2.bf16.msra.mxu0 0
      %792 = vmatprep.subr.bf16.mxu0 0
      %793 = vmatpush2.bf16.msra.mxu0 0
      %794 = vmatprep.subr.bf16.mxu0 0
      %795 = vmatpush2.bf16.msra.mxu0 0
      %796 = vmatprep.mubr.bf16.mxu0 0
      %797 = vmatmul.mubr.bf16.gmra.mxu0 %v750
      %v798 = vpop.f32.mrf.mxu0
      %v799 = vadd.f32 0.0, %v798
      %v800 = vpop.f32.mrf.mxu0
      %v801 = vpop.f32.mrf.mxu0
      %v802 = vadd.f32 0.0, %v801
      %v803 = vpop.f32.mrf.mxu0
      %804 = vmatprep.mubr.bf16.mxu0 0
      %805 = vmatmul.mubr.bf16.gmra.mxu0 %v753
      %v806 = vpop.f32.mrf.mxu0
      %v807 = vadd.f32 0.0, %v806
      %v808 = vpop.f32.mrf.mxu0
      %v809 = vpop.f32.mrf.mxu0
      %v810 = vadd.f32 0.0, %v809
      %v811 = vpop.f32.mrf.mxu0
      %812 = vmatprep.mubr.bf16.mxu0 0
      %813 = vmatmul.mubr.bf16.gmra.mxu0 %v756
      %v814 = vpop.f32.mrf.mxu0
      %v815 = vadd.f32 0.0, %v814
      %v816 = vpop.f32.mrf.mxu0
      %v817 = vpop.f32.mrf.mxu0
      %v818 = vadd.f32 0.0, %v817
      %v819 = vpop.f32.mrf.mxu0
      %820 = vmatprep.mubr.bf16.mxu0 0
      %821 = vmatmul.mubr.bf16.gmra.mxu0 %v759
      %v822 = vpop.f32.mrf.mxu0
      %v823 = vadd.f32 0.0, %v822
      %v824 = vpop.f32.mrf.mxu0
      %v825 = vpop.f32.mrf.mxu0
      %v826 = vadd.f32 0.0, %v825
      %v827 = vpop.f32.mrf.mxu0
      %828 = vmatprep.mubr.bf16.mxu0 0
      %829 = vmatmul.mubr.bf16.gmra.mxu0 %v762
      %v830 = vpop.f32.mrf.mxu0
      %v831 = vadd.f32 0.0, %v830
      %v832 = vpop.f32.mrf.mxu0
      %v833 = vpop.f32.mrf.mxu0
      %v834 = vpop.f32.mrf.mxu0
      %835 = vdwg.mxu0
      %v836 = vadd.f32 %v717, %v799
      %v837 = vadd.f32 %v718, %v802
      %v838 = vadd.f32 %v719, %v807
      %v839 = vadd.f32 %v720, %v810
      %v840 = vadd.f32 %v721, %v815
      %v841 = vadd.f32 %v722, %v818
      %v842 = vadd.f32 %v723, %v823
      %v843 = vadd.f32 %v724, %v826
      %v844 = vadd.f32 %v725, %v831
      %v845 = vmax.f32 %v836, 0.0
      %v846 = vmax.f32 %v837, 0.0
      %v847 = vmax.f32 %v838, 0.0
      %v848 = vmax.f32 %v839, 0.0
      %v849 = vmax.f32 %v840, 0.0
      %v850 = vmax.f32 %v841, 0.0
      %v851 = vmax.f32 %v842, 0.0
      %v852 = vmax.f32 %v843, 0.0
      %v853 = vmax.f32 %v844, 0.0
      %v854 = vpack.c.bf16 %v846, %v845
      %v855 = vpack.c.bf16 %v848, %v847
      %v856 = vpack.c.bf16 %v850, %v849
      %v857 = vpack.c.bf16 %v852, %v851
      %v858 = vpack.c.bf16 %v853, %v853
      %v864 = vunpack.c.l.b16 %v854
      %v865 = vunpack.c.h.b16 %v854
      %v866 = vunpack.c.l.b16 %v855
      %v867 = vunpack.c.h.b16 %v855
      %v868 = vunpack.c.l.b16 %v856
      %v869 = vunpack.c.h.b16 %v856
      %v870 = vunpack.c.l.b16 %v857
      %v871 = vunpack.c.h.b16 %v857
      %v872 = vunpack.c.l.b16 %v858
      %v873 = vpack.c.b16 %v864, %v864
      %v874 = vpack.c.b16 %v865, %v865
      %v875 = vpack.c.b16 %v866, %v866
      %v876 = vpack.c.b16 %v867, %v867
      %v877 = vpack.c.b16 %v868, %v868
      %v878 = vpack.c.b16 %v869, %v869
      %v879 = vpack.c.b16 %v870, %v870
      %v880 = vpack.c.b16 %v871, %v871
      %v881 = vpack.c.b16 %v872, %v872
      %891 = vst [vmem:[%s221] sm:$0xf] %v873
      %892 = vst [vmem:[%s221 + $0x4] sm:$0xf] %v874
      %893 = vst [vmem:[%s221 + $0x8] sm:$0xf] %v875
      %894 = vst [vmem:[%s221 + $0xc] sm:$0xf] %v876
      %895 = vst [vmem:[%s221 + $0x10] sm:$0xf] %v877
      %896 = vst [vmem:[%s221 + $0x14] sm:$0xf] %v878
      %897 = vst [vmem:[%s221 + $0x18] sm:$0xf] %v879
      %898 = vst [vmem:[%s221 + $0x1c] sm:$0xf] %v880
      %899 = vst [vmem:[%s221 + $0x20] sm:$0xf] %v881
      %p900 = scmp.lt.s32.totalorder %s18, 1
      %s901 = scalar_select %p900, %s18, 1
      %p902 = scmp.lt.s32.totalorder %s19, 0
      %s903 = scalar_select %p902, %s19, 0
      %s904 = smul.addr %s901, 9
      %s905 = sadd.s32 %s903, %s904
      %s906 = smul.addr %s905, 4
      %s907 = scalar_lea.vmem %s3, %s906
      // Predicated region
      $region33: #{basic_block_forward.2} parent=31 // pred_check
        %p908 = pneg %p124
      $region34: #{basic_block_forward.2} parent=31 // pred_check_branch
        %910 = sbr.rel (%p908) target = $region36
      $region35: #{basic_block_forward.2} parent=31 // pred_region
        _
      $region36: #{basic_block_forward.2} parent=31 // pred_fallthru
        _
    $region32: #{basic_block_forward.2} parent=5 // pred_fallthru
      _
    %p911 = scmp.le.s32.totalorder 2, %s9
    // Predicated region
    $region37: #{basic_block_forward.2} parent=5 // pred_check
      %p912 = pneg %p911
    $region38: #{basic_block_forward.2} parent=5 // pred_check_branch
      %914 = sbr.rel (%p912) target = $region40
    $region39: #{basic_block_forward.2} parent=5 // pred_region
      %s915 = ssub.s32 %s9, 2
      // Predicated region
      $region41: #{basic_block_forward.2} parent=39 // pred_check
        %p916 = pneg %p130
      $region42: #{basic_block_forward.2} parent=39 // pred_check_branch
        %918 = sbr.rel (%p916) target = $region44
      $region43: #{basic_block_forward.2} parent=39 // pred_region
        %p919 = scmp.lt.s32.totalorder %s20, 1
        %s920 = scalar_select %p919, %s20, 1
        %p921 = scmp.lt.s32.totalorder %s21, 0
        %s922 = scalar_select %p921, %s21, 0
        %s923 = smul.addr %s920, 9
        %s924 = sadd.s32 %s922, %s923
        %s925 = smul.addr %s924, 4
        %s926 = scalar_lea.vmem %s3, %s925
      $region44: #{basic_block_forward.2} parent=39 // pred_fallthru
        _
    $region40: #{basic_block_forward.2} parent=5 // pred_fallthru
      _
  $region6: #{basic_block_forward.2} parent=0 // loop_footer
    %s13 = sadd.s32 1, %s9
  $region7: #{basic_block_forward.2} parent=0 // loop_footer_branch
    %8 = sbr.rel target = $region3
  $region8: #{basic_block_forward.2} parent=0 // loop_exit
    _

// kernel: basic_block_forward.3
$region0: #{basic_block_forward.3}
  #allocation0 [shape = 'u32[]', space=smem, size = 0x4, offset = 0x4, fixed_abs, tag = 'smem constant byte address 0x4 - core index']
  #allocation1 [shape = 'u32[144,128]{1,0:T(1,128)}', space=vmem, size = 0x12000, scoped, tag = 'internal scratch']
  %s0 = inlined_call_operand.vmem [shape: bf16[2,110,128], index: 0, kind: input, shape index: {}]
  %s1 = inlined_call_operand.vmem [shape: bf16[9,128,128], index: 1, kind: input, shape index: {}]
  %s2 = inlined_call_operand.vmem [shape: f32[1,128], index: 2, kind: input, shape index: {}]
  %s3 = inlined_call_operand.vmem [shape: bf16[2,80,4], index: 3, kind: input, shape index: {}]
  %s4 = inlined_call_operand.vmem [shape: bf16[4,128], index: 4, kind: input, shape index: {}]
  %s5 = inlined_call_operand.vmem [shape: f32[1,128], index: 5, kind: input, shape index: {}]
  %s6 = inlined_call_operand.vmem [shape: f32[2,80,128], index: 6, kind: output, shape index: {}]
  %s7 = sld [smem:[#allocation0]]
  $region57: #{basic_block_forward.3} parent=0
    _
  %s9 = ssub.s32 1, %s7
  %s10 = scalar_select 0, %s9, %s7
  loop: start=0, step=1, limit=4
  $region2: #{basic_block_forward.3} parent=0 // loop_pre_header
    _
  $region3: #{basic_block_forward.3} parent=0 // loop_header
    %s12 = sphi 0, %s16
    %p13 = scmp.ge.s32.totalorder %s12, 4
    %s19 = sphi 0, %s31
    %s20 = sphi 0, %s27
    %s21 = sphi 0, %s19
    %s22 = sphi 0, %s20
    %s23 = sphi 0, %s21
    %s24 = sphi 0, %s22
    %s34 = sphi 0, %s36
    %s37 = sphi 0, %s34
    %s38 = sphi 0, %s37
    %s54 = sphi 0, %s38
    %s60 = sphi 0, %s62
    %s63 = sphi 0, %s60
    %s64 = sphi 0, %s63
    %s80 = sphi 0, %s64
    %s86 = sphi 0, %s88
    %s89 = sphi 0, %s86
    %s90 = sphi 0, %s89
    %s106 = sphi 0, %s90
    %s112 = sphi 0, %s114
    %s115 = sphi 0, %s112
    %s116 = sphi 0, %s115
    %s132 = sphi 0, %s116
    %s138 = sphi 0, %s140
    %s141 = sphi 0, %s138
    %s142 = sphi 0, %s141
    %s158 = sphi 0, %s142
    %s164 = sphi 0, %s166
    %s167 = sphi 0, %s164
    %s168 = sphi 0, %s167
    %s184 = sphi 0, %s168
    %s192 = sphi 0, %s194
    %s195 = sphi 0, %s192
    %s196 = sphi 0, %s195
    %s212 = sphi 0, %s196
  $region4: #{basic_block_forward.3} parent=0 // loop_header_branch
    %15 = sbr.rel (%p13) target = $region8
  $region5: #{basic_block_forward.3} parent=0 // loop_body
    %s17 = ssub.s32 %s12, 1
    %s18 = ssub.s32 %s12, 2
    %s25 = sadd.s32 1, %s20
    %p26 = scmp.ge.s32.totalorder %s25, 1
    %s27 = scalar_select %p26, 0, %s25
    %s28 = sadd.s32 1, %s19
    %s29 = scalar_select %p26, %s28, %s19
    %p30 = scmp.ge.s32.totalorder %s29, 2
    %s31 = scalar_select %p30, 0, %s29
    %s32 = ssub.s32 %s19, %s31
    %p33 = scmp.eq.s32.totalorder %s32, 0
    %s35 = sadd.s32 %s34, 1
    %s36 = scalar_select %p33, %s34, %s35
    %p39 = pneg %p33
    %p40 = scmp.eq.s32.totalorder %s12, 1
    %p41 = por %p39, %p40
    %p42 = scmp.ne.s32.totalorder %s34, %s37
    %p43 = scmp.eq.s32.totalorder %s12, 0
    %p44 = por %p42, %p43
    %p45 = scmp.ne.s32.totalorder %s34, %s37
    %p46 = scmp.eq.s32.totalorder %s17, 1
    %p47 = por %p45, %p46
    %p48 = scmp.ne.s32.totalorder %s37, %s38
    %p49 = scmp.eq.s32.totalorder %s17, 0
    %p50 = por %p48, %p49
    %p51 = scmp.ne.s32.totalorder %s37, %s38
    %p52 = scmp.eq.s32.totalorder %s18, 1
    %p53 = por %p51, %p52
    %p55 = scmp.ne.s32.totalorder %s38, %s54
    %p56 = scmp.eq.s32.totalorder %s18, 0
    %p57 = por %p55, %p56
    %s58 = ssub.s32 %s20, %s27
    %p59 = scmp.eq.s32.totalorder %s58, 0
    %s61 = sadd.s32 %s60, 1
    %s62 = scalar_select %p59, %s60, %s61
    %p65 = pneg %p59
    %p66 = scmp.eq.s32.totalorder %s12, 1
    %p67 = por %p65, %p66
    %p68 = scmp.ne.s32.totalorder %s60, %s63
    %p69 = scmp.eq.s32.totalorder %s12, 0
    %p70 = por %p68, %p69
    %p71 = scmp.ne.s32.totalorder %s60, %s63
    %p72 = scmp.eq.s32.totalorder %s17, 1
    %p73 = por %p71, %p72
    %p74 = scmp.ne.s32.totalorder %s63, %s64
    %p75 = scmp.eq.s32.totalorder %s17, 0
    %p76 = por %p74, %p75
    %p77 = scmp.ne.s32.totalorder %s63, %s64
    %p78 = scmp.eq.s32.totalorder %s18, 1
    %p79 = por %p77, %p78
    %p81 = scmp.ne.s32.totalorder %s64, %s80
    %p82 = scmp.eq.s32.totalorder %s18, 0
    %p83 = por %p81, %p82
    %s84 = ssub.s32 %s20, %s27
    %p85 = scmp.eq.s32.totalorder %s84, 0
    %s87 = sadd.s32 %s86, 1
    %s88 = scalar_select %p85, %s86, %s87
    %p91 = pneg %p85
    %p92 = scmp.eq.s32.totalorder %s12, 1
    %p93 = por %p91, %p92
    %p94 = scmp.ne.s32.totalorder %s86, %s89
    %p95 = scmp.eq.s32.totalorder %s12, 0
    %p96 = por %p94, %p95
    %p97 = scmp.ne.s32.totalorder %s86, %s89
    %p98 = scmp.eq.s32.totalorder %s17, 1
    %p99 = por %p97, %p98
    %p100 = scmp.ne.s32.totalorder %s89, %s90
    %p101 = scmp.eq.s32.totalorder %s17, 0
    %p102 = por %p100, %p101
    %p103 = scmp.ne.s32.totalorder %s89, %s90
    %p104 = scmp.eq.s32.totalorder %s18, 1
    %p105 = por %p103, %p104
    %p107 = scmp.ne.s32.totalorder %s90, %s106
    %p108 = scmp.eq.s32.totalorder %s18, 0
    %p109 = por %p107, %p108
    %s110 = ssub.s32 %s19, %s31
    %p111 = scmp.eq.s32.totalorder %s110, 0
    %s113 = sadd.s32 %s112, 1
    %s114 = scalar_select %p111, %s112, %s113
    %p117 = pneg %p111
    %p118 = scmp.eq.s32.totalorder %s12, 1
    %p119 = por %p117, %p118
    %p120 = scmp.ne.s32.totalorder %s112, %s115
    %p121 = scmp.eq.s32.totalorder %s12, 0
    %p122 = por %p120, %p121
    %p123 = scmp.ne.s32.totalorder %s112, %s115
    %p124 = scmp.eq.s32.totalorder %s17, 1
    %p125 = por %p123, %p124
    %p126 = scmp.ne.s32.totalorder %s115, %s116
    %p127 = scmp.eq.s32.totalorder %s17, 0
    %p128 = por %p126, %p127
    %p129 = scmp.ne.s32.totalorder %s115, %s116
    %p130 = scmp.eq.s32.totalorder %s18, 1
    %p131 = por %p129, %p130
    %p133 = scmp.ne.s32.totalorder %s116, %s132
    %p134 = scmp.eq.s32.totalorder %s18, 0
    %p135 = por %p133, %p134
    %s136 = ssub.s32 %s20, %s27
    %p137 = scmp.eq.s32.totalorder %s136, 0
    %s139 = sadd.s32 %s138, 1
    %s140 = scalar_select %p137, %s138, %s139
    %p143 = pneg %p137
    %p144 = scmp.eq.s32.totalorder %s12, 1
    %p145 = por %p143, %p144
    %p146 = scmp.ne.s32.totalorder %s138, %s141
    %p147 = scmp.eq.s32.totalorder %s12, 0
    %p148 = por %p146, %p147
    %p149 = scmp.ne.s32.totalorder %s138, %s141
    %p150 = scmp.eq.s32.totalorder %s17, 1
    %p151 = por %p149, %p150
    %p152 = scmp.ne.s32.totalorder %s141, %s142
    %p153 = scmp.eq.s32.totalorder %s17, 0
    %p154 = por %p152, %p153
    %p155 = scmp.ne.s32.totalorder %s141, %s142
    %p156 = scmp.eq.s32.totalorder %s18, 1
    %p157 = por %p155, %p156
    %p159 = scmp.ne.s32.totalorder %s142, %s158
    %p160 = scmp.eq.s32.totalorder %s18, 0
    %p161 = por %p159, %p160
    %s162 = ssub.s32 %s20, %s27
    %p163 = scmp.eq.s32.totalorder %s162, 0
    %s165 = sadd.s32 %s164, 1
    %s166 = scalar_select %p163, %s164, %s165
    %p169 = pneg %p163
    %p170 = scmp.eq.s32.totalorder %s12, 1
    %p171 = por %p169, %p170
    %p172 = scmp.ne.s32.totalorder %s164, %s167
    %p173 = scmp.eq.s32.totalorder %s12, 0
    %p174 = por %p172, %p173
    %p175 = scmp.ne.s32.totalorder %s164, %s167
    %p176 = scmp.eq.s32.totalorder %s17, 1
    %p177 = por %p175, %p176
    %p178 = scmp.ne.s32.totalorder %s167, %s168
    %p179 = scmp.eq.s32.totalorder %s17, 0
    %p180 = por %p178, %p179
    %p181 = scmp.ne.s32.totalorder %s167, %s168
    %p182 = scmp.eq.s32.totalorder %s18, 1
    %p183 = por %p181, %p182
    %p185 = scmp.ne.s32.totalorder %s168, %s184
    %p186 = scmp.eq.s32.totalorder %s18, 0
    %p187 = por %p185, %p186
    %s188 = ssub.s32 %s19, %s31
    %s189 = ssub.s32 %s20, %s27
    %s190 = sor.u32 %s188, %s189
    %p191 = scmp.eq.s32.totalorder %s190, 0
    %s193 = sadd.s32 %s192, 1
    %s194 = scalar_select %p191, %s192, %s193
    %p197 = pneg %p191
    %p198 = scmp.eq.s32.totalorder %s12, 1
    %p199 = por %p197, %p198
    %p200 = scmp.ne.s32.totalorder %s192, %s195
    %p201 = scmp.eq.s32.totalorder %s12, 0
    %p202 = por %p200, %p201
    %p203 = scmp.ne.s32.totalorder %s192, %s195
    %p204 = scmp.eq.s32.totalorder %s17, 1
    %p205 = por %p203, %p204
    %p206 = scmp.ne.s32.totalorder %s195, %s196
    %p207 = scmp.eq.s32.totalorder %s17, 0
    %p208 = por %p206, %p207
    %p209 = scmp.ne.s32.totalorder %s195, %s196
    %p210 = scmp.eq.s32.totalorder %s18, 1
    %p211 = por %p209, %p210
    %p213 = scmp.ne.s32.totalorder %s196, %s212
    %p214 = scmp.eq.s32.totalorder %s18, 0
    %p215 = por %p213, %p214
    %p216 = scmp.le.s32.totalorder 1, %s12
    %p217 = scmp.lt.s32.totalorder %s12, 3
    %p218 = pnand %p216, %p217
    %p219 = pneg %p218
    // Predicated region
    $region9: #{basic_block_forward.3} parent=5 // pred_check
      _
    $region10: #{basic_block_forward.3} parent=5 // pred_check_branch
      %221 = sbr.rel (%p218) target = $region12
    $region11: #{basic_block_forward.3} parent=5 // pred_region
      %s222 = ssub.s32 %s12, 1
      // Predicated region
      $region13: #{basic_block_forward.3} parent=11 // pred_check
        %p223 = pneg %p76
      $region14: #{basic_block_forward.3} parent=11 // pred_check_branch
        %225 = sbr.rel (%p223) target = $region16
      $region15: #{basic_block_forward.3} parent=11 // pred_region
        %p226 = scmp.lt.s32.totalorder %s22, 0
        %s227 = scalar_select %p226, %s22, 0
        %s228 = smul.addr %s227, 4
        %s229 = scalar_lea.vmem %s1, %s228
      $region16: #{basic_block_forward.3} parent=11 // pred_fallthru
        _
      // Predicated region
      $region17: #{basic_block_forward.3} parent=11 // pred_check
        %p230 = pneg %p102
      $region18: #{basic_block_forward.3} parent=11 // pred_check_branch
        %232 = sbr.rel (%p230) target = $region20
      $region19: #{basic_block_forward.3} parent=11 // pred_region
        %p233 = scmp.lt.s32.totalorder %s22, 0
        %s234 = scalar_select %p233, %s22, 0
        %s235 = scalar_lea.vmem %s2, %s234
      $region20: #{basic_block_forward.3} parent=11 // pred_fallthru
        _
      // Predicated region
      $region21: #{basic_block_forward.3} parent=11 // pred_check
        %p236 = pneg %p154
      $region22: #{basic_block_forward.3} parent=11 // pred_check_branch
        %238 = sbr.rel (%p236) target = $region24
      $region23: #{basic_block_forward.3} parent=11 // pred_region
        %p239 = scmp.lt.s32.totalorder %s22, 0
        %s240 = scalar_select %p239, %s22, 0
        %s241 = smul.addr %s240, 2
        %s242 = scalar_lea.vmem %s4, %s241
      $region24: #{basic_block_forward.3} parent=11 // pred_fallthru
        _
      // Predicated region
      $region25: #{basic_block_forward.3} parent=11 // pred_check
        %p243 = pneg %p180
      $region26: #{basic_block_forward.3} parent=11 // pred_check_branch
        %245 = sbr.rel (%p243) target = $region28
      $region27: #{basic_block_forward.3} parent=11 // pred_region
        %p246 = scmp.lt.s32.totalorder %s22, 0
        %s247 = scalar_select %p246, %s22, 0
        %s248 = scalar_lea.vmem %s5, %s247
      $region28: #{basic_block_forward.3} parent=11 // pred_fallthru
        _
    $region12: #{basic_block_forward.3} parent=5 // pred_fallthru
      _
    %p249 = scmp.lt.s32.totalorder %s12, 2
    // Predicated region
    $region29: #{basic_block_forward.3} parent=5 // pred_check
      %p250 = pneg %p249
    $region30: #{basic_block_forward.3} parent=5 // pred_check_branch
      %252 = sbr.rel (%p250) target = $region32
    $region31: #{basic_block_forward.3} parent=5 // pred_region
      // Predicated region
      $region33: #{basic_block_forward.3} parent=31 // pred_check
        %p253 = pneg %p44
      $region34: #{basic_block_forward.3} parent=31 // pred_check_branch
        %255 = sbr.rel (%p253) target = $region36
      $region35: #{basic_block_forward.3} parent=31 // pred_region
        %p256 = scmp.lt.s32.totalorder %s19, 1
        %s257 = scalar_select %p256, %s19, 1
        %s258 = smul.addr %s257, 14
        %s259 = smul.addr %s258, 4
        %s260 = scalar_lea.vmem %s0, %s259
      $region36: #{basic_block_forward.3} parent=31 // pred_fallthru
        _
      // Predicated region
      $region37: #{basic_block_forward.3} parent=31 // pred_check
        %p261 = pneg %p122
      $region38: #{basic_block_forward.3} parent=31 // pred_check_branch
        %263 = sbr.rel (%p261) target = $region40
      $region39: #{basic_block_forward.3} parent=31 // pred_region
        %p264 = scmp.lt.s32.totalorder %s19, 1
        %s265 = scalar_select %p264, %s19, 1
        %s266 = smul.addr %s265, 10
        %s267 = smul.addr %s266, 4
        %s268 = scalar_lea.vmem %s3, %s267
      $region40: #{basic_block_forward.3} parent=31 // pred_fallthru
        _
    $region32: #{basic_block_forward.3} parent=5 // pred_fallthru
      _
    %p269 = scmp.le.s32.totalorder 1, %s12
    %p270 = scmp.lt.s32.totalorder %s12, 3
    %p271 = pnand %p269, %p270
    %p272 = pneg %p271
    // Predicated region
    $region41: #{basic_block_forward.3} parent=5 // pred_check
      _
    $region42: #{basic_block_forward.3} parent=5 // pred_check_branch
      %274 = sbr.rel (%p271) target = $region44
    $region43: #{basic_block_forward.3} parent=5 // pred_region
      %s275 = ssub.s32 %s12, 1
      %p276 = scmp.lt.s32.totalorder %s21, 1
      %s277 = scalar_select %p276, %s21, 1
      %s278 = smul.addr %s277, 14
      %s279 = smul.addr %s278, 4
      %s280 = scalar_lea.vmem %s0, %s279
      %p281 = pneg %p50
      %p282 = pneg %p47
      %p283 = scmp.lt.s32.totalorder %s22, 0
      %s284 = scalar_select %p283, %s22, 0
      %s285 = smul.addr %s284, 4
      %s286 = scalar_lea.vmem %s1, %s285
      %p287 = pneg %p76
      %p288 = pneg %p73
      %p289 = scmp.lt.s32.totalorder %s22, 0
      %s290 = scalar_select %p289, %s22, 0
      %s291 = scalar_lea.vmem %s2, %s290
      %p292 = pneg %p102
      %p293 = pneg %p99
      %p294 = scmp.lt.s32.totalorder %s21, 1
      %s295 = scalar_select %p294, %s21, 1
      %s296 = smul.addr %s295, 10
      %s297 = smul.addr %s296, 4
      %s298 = scalar_lea.vmem %s3, %s297
      %p299 = pneg %p128
      %p300 = pneg %p125
      %p301 = scmp.lt.s32.totalorder %s22, 0
      %s302 = scalar_select %p301, %s22, 0
      %s303 = smul.addr %s302, 2
      %s304 = scalar_lea.vmem %s4, %s303
      %p305 = pneg %p154
      %p306 = pneg %p151
      %p307 = scmp.lt.s32.totalorder %s22, 0
      %s308 = scalar_select %p307, %s22, 0
      %s309 = scalar_lea.vmem %s5, %s308
      %p310 = pneg %p180
      %p311 = pneg %p177
      %p312 = pneg %p208
      %p313 = pneg %p205
      %p314 = scmp.lt.s32.totalorder %s21, 1
      %s315 = scalar_select %p314, %s21, 1
      %p316 = scmp.lt.s32.totalorder %s22, 0
      %s317 = scalar_select %p316, %s22, 0
      %s318 = smul.addr %s315, 10
      %s319 = sadd.s32 %s317, %s318
      %s320 = smul.addr %s319, 8
      %s321 = scalar_lea.vmem %s6, %s320
      %p322 = scmp.lt.s32.totalorder %s21, 1
      %s323 = scalar_select %p322, %s21, 1
      %s324 = smul.addr %s323, 14
      %s325 = smul.addr %s324, 4
      %s326 = scalar_lea.vmem %s0, %s325
      %p327 = scmp.lt.s32.totalorder %s22, 0
      %s328 = scalar_select %p327, %s22, 0
      %s329 = smul.addr %s328, 4
      %s330 = scalar_lea.vmem %s1, %s329
      %p331 = scmp.lt.s32.totalorder %s22, 0
      %s332 = scalar_select %p331, %s22, 0
      %s333 = scalar_lea.vmem %s2, %s332
      %p334 = scmp.lt.s32.totalorder %s21, 1
      %s335 = scalar_select %p334, %s21, 1
      %s336 = smul.addr %s335, 10
      %s337 = smul.addr %s336, 4
      %s338 = scalar_lea.vmem %s3, %s337
      %p339 = scmp.lt.s32.totalorder %s22, 0
      %s340 = scalar_select %p339, %s22, 0
      %s341 = smul.addr %s340, 2
      %s342 = scalar_lea.vmem %s4, %s341
      %p343 = scmp.lt.s32.totalorder %s22, 0
      %s344 = scalar_select %p343, %s22, 0
      %s345 = scalar_lea.vmem %s5, %s344
      %p346 = scmp.lt.s32.totalorder %s21, 1
      %s347 = scalar_select %p346, %s21, 1
      %p348 = scmp.lt.s32.totalorder %s22, 0
      %s349 = scalar_select %p348, %s22, 0
      %s350 = smul.addr %s347, 10
      %s351 = sadd.s32 %s349, %s350
      %s352 = smul.addr %s351, 8
      %s353 = scalar_lea.vmem %s6, %s352
      %v355 = vld [vmem:[%s333] sm:$0x1]
      %v357 = vlaneseq
      %v358 = vshrl.u32 %v357, 7
      %v359 = vsub.s32 0, %v358
      %v360 = vrot.slane %v355, %v359
      %v362 = vld [vmem:[%s326] sm:$0xf]
      %v363 = vld [vmem:[%s326 + $0x4] sm:$0xf]
      %v364 = vld [vmem:[%s326 + $0x8] sm:$0xf]
      %v365 = vld [vmem:[%s326 + $0xc] sm:$0xf]
      %v366 = vld [vmem:[%s326 + $0x10] sm:$0xf]
      %v367 = vld [vmem:[%s326 + $0x14] sm:$0xf]
      %v368 = vld [vmem:[%s326 + $0x18] sm:$0xf]
      %v369 = vld [vmem:[%s326 + $0x1c] sm:$0xf]
      %v370 = vld [vmem:[%s326 + $0x20] sm:$0xf]
      %v371 = vld [vmem:[%s326 + $0x24] sm:$0xf]
      %v372 = vld [vmem:[%s330] sm:$0xf]
      %v373 = vld [vmem:[%s330 + $0x4] sm:$0xf]
      %v374 = vld [vmem:[%s330 + $0x8] sm:$0xf]
      %v375 = vld [vmem:[%s330 + $0xc] sm:$0xf]
      %v376 = vld [vmem:[%s330 + $0x10] sm:$0xf]
      %v377 = vld [vmem:[%s330 + $0x14] sm:$0xf]
      %v378 = vld [vmem:[%s330 + $0x18] sm:$0xf]
      %v379 = vld [vmem:[%s330 + $0x1c] sm:$0xf]
      %v380 = vld [vmem:[%s330 + $0x20] sm:$0xf]
      %v381 = vld [vmem:[%s330 + $0x24] sm:$0xf]
      %v382 = vld [vmem:[%s330 + $0x28] sm:$0xf]
      %v383 = vld [vmem:[%s330 + $0x2c] sm:$0xf]
      %v384 = vld [vmem:[%s330 + $0x30] sm:$0xf]
      %v385 = vld [vmem:[%s330 + $0x34] sm:$0xf]
      %v386 = vld [vmem:[%s330 + $0x38] sm:$0xf]
      %v387 = vld [vmem:[%s330 + $0x3c] sm:$0xf]
      %v398 = vunpack.c.l.b16 %v362
      %v399 = vunpack.c.l.b16 %v363
      %v400 = vunpack.c.l.b16 %v364
      %v401 = vunpack.c.l.b16 %v365
      %v402 = vunpack.c.l.b16 %v366
      %v403 = vunpack.c.l.b16 %v367
      %v404 = vunpack.c.l.b16 %v368
      %v405 = vunpack.c.l.b16 %v369
      %v406 = vunpack.c.l.b16 %v370
      %v407 = vunpack.c.l.b16 %v371
      %v408 = vpack.c.b16 %v399, %v398
      %v409 = vpack.c.b16 %v401, %v400
      %v410 = vpack.c.b16 %v403, %v402
      %v411 = vpack.c.b16 %v405, %v404
      %v412 = vpack.c.b16 %v407, %v406
      %v434 = vunpack.c.l.b16 %v372
      %v435 = vunpack.c.l.b16 %v373
      %v436 = vunpack.c.l.b16 %v374
      %v437 = vunpack.c.l.b16 %v375
      %v438 = vunpack.c.l.b16 %v376
      %v439 = vunpack.c.l.b16 %v377
      %v440 = vunpack.c.l.b16 %v378
      %v441 = vunpack.c.l.b16 %v379
      %v442 = vunpack.c.l.b16 %v380
      %v443 = vunpack.c.l.b16 %v381
      %v444 = vunpack.c.l.b16 %v382
      %v445 = vunpack.c.l.b16 %v383
      %v446 = vunpack.c.l.b16 %v384
      %v447 = vunpack.c.l.b16 %v385
      %v448 = vunpack.c.l.b16 %v386
      %v449 = vunpack.c.l.b16 %v387
      %v450 = vpack.c.b16 %v435, %v434
      %v451 = vpack.c.b16 %v437, %v436
      %v452 = vpack.c.b16 %v439, %v438
      %v453 = vpack.c.b16 %v441, %v440
      %v454 = vpack.c.b16 %v443, %v442
      %v455 = vpack.c.b16 %v445, %v444
      %v456 = vpack.c.b16 %v447, %v446
      %v457 = vpack.c.b16 %v449, %v448
      %466 = vmatprep.subr.bf16.mxu0 0
      %467 = vmatpush1.bf16.msra.mxu0 %v457
      %468 = vmatprep.subr.bf16.mxu0 0
      %469 = vmatpush1.bf16.msra.mxu0 %v456
      %470 = vmatprep.subr.bf16.mxu0 0
      %471 = vmatpush1.bf16.msra.mxu0 %v455
      %472 = vmatprep.subr.bf16.mxu0 0
      %473 = vmatpush1.bf16.msra.mxu0 %v454
      %474 = vmatprep.subr.bf16.mxu0 0
      %475 = vmatpush1.bf16.msra.mxu0 %v453
      %476 = vmatprep.subr.bf16.mxu0 0
      %477 = vmatpush1.bf16.msra.mxu0 %v452
      %478 = vmatprep.subr.bf16.mxu0 0
      %479 = vmatpush1.bf16.msra.mxu0 %v451
      %480 = vmatprep.subr.bf16.mxu0 0
      %481 = vmatpush1.bf16.msra.mxu0 %v450
      %482 = vmatprep.subr.bf16.mxu0 0
      %483 = vmatpush2.bf16.msra.mxu0 0
      %484 = vmatprep.subr.bf16.mxu0 0
      %485 = vmatpush2.bf16.msra.mxu0 0
      %486 = vmatprep.subr.bf16.mxu0 0
      %487 = vmatpush2.bf16.msra.mxu0 0
      %488 = vmatprep.subr.bf16.mxu0 0
      %489 = vmatpush2.bf16.msra.mxu0 0
      %490 = vmatprep.subr.bf16.mxu0 0
      %491 = vmatpush2.bf16.msra.mxu0 0
      %492 = vmatprep.subr.bf16.mxu0 0
      %493 = vmatpush2.bf16.msra.mxu0 0
      %494 = vmatprep.subr.bf16.mxu0 0
      %495 = vmatpush2.bf16.msra.mxu0 0
      %496 = vmatprep.subr.bf16.mxu0 0
      %497 = vmatpush2.bf16.msra.mxu0 0
      %498 = vmatprep.mubr.bf16.mxu0 0
      %499 = vmatmul.mubr.bf16.gmra.mxu0 %v408
      %v500 = vpop.f32.mrf.mxu0
      %v501 = vadd.f32 0.0, %v500
      %v502 = vpop.f32.mrf.mxu0
      %v503 = vpop.f32.mrf.mxu0
      %v504 = vadd.f32 0.0, %v503
      %v505 = vpop.f32.mrf.mxu0
      %506 = vmatprep.mubr.bf16.mxu0 0
      %507 = vmatmul.mubr.bf16.gmra.mxu0 %v409
      %v508 = vpop.f32.mrf.mxu0
      %v509 = vadd.f32 0.0, %v508
      %v510 = vpop.f32.mrf.mxu0
      %v511 = vpop.f32.mrf.mxu0
      %v512 = vadd.f32 0.0, %v511
      %v513 = vpop.f32.mrf.mxu0
      %514 = vmatprep.mubr.bf16.mxu0 0
      %515 = vmatmul.mubr.bf16.gmra.mxu0 %v410
      %v516 = vpop.f32.mrf.mxu0
      %v517 = vadd.f32 0.0, %v516
      %v518 = vpop.f32.mrf.mxu0
      %v519 = vpop.f32.mrf.mxu0
      %v520 = vadd.f32 0.0, %v519
      %v521 = vpop.f32.mrf.mxu0
      %522 = vmatprep.mubr.bf16.mxu0 0
      %523 = vmatmul.mubr.bf16.gmra.mxu0 %v411
      %v524 = vpop.f32.mrf.mxu0
      %v525 = vadd.f32 0.0, %v524
      %v526 = vpop.f32.mrf.mxu0
      %v527 = vpop.f32.mrf.mxu0
      %v528 = vadd.f32 0.0, %v527
      %v529 = vpop.f32.mrf.mxu0
      %530 = vmatprep.mubr.bf16.mxu0 0
      %531 = vmatmul.mubr.bf16.gmra.mxu0 %v412
      %v532 = vpop.f32.mrf.mxu0
      %v533 = vadd.f32 0.0, %v532
      %v534 = vpop.f32.mrf.mxu0
      %v535 = vpop.f32.mrf.mxu0
      %v536 = vadd.f32 0.0, %v535
      %v537 = vpop.f32.mrf.mxu0
      %538 = vdwg.mxu0
      %v539 = vadd.f32 %v360, %v501
      %v540 = vadd.f32 %v360, %v504
      %v541 = vadd.f32 %v360, %v509
      %v542 = vadd.f32 %v360, %v512
      %v543 = vadd.f32 %v360, %v517
      %v544 = vadd.f32 %v360, %v520
      %v545 = vadd.f32 %v360, %v525
      %v546 = vadd.f32 %v360, %v528
      %v547 = vadd.f32 %v360, %v533
      %v548 = vadd.f32 %v360, %v536
      %v549 = vld [vmem:[%s326] sm:$0xf]
      %v550 = vld [vmem:[%s326 + $0x4] sm:$0xf]
      %v551 = vld [vmem:[%s326 + $0x8] sm:$0xf]
      %v552 = vld [vmem:[%s326 + $0xc] sm:$0xf]
      %v553 = vld [vmem:[%s326 + $0x10] sm:$0xf]
      %v554 = vld [vmem:[%s326 + $0x14] sm:$0xf]
      %v555 = vld [vmem:[%s326 + $0x18] sm:$0xf]
      %v556 = vld [vmem:[%s326 + $0x1c] sm:$0xf]
      %v557 = vld [vmem:[%s326 + $0x20] sm:$0xf]
      %v558 = vld [vmem:[%s326 + $0x24] sm:$0xf]
      %v559 = vld [vmem:[%s326 + $0x28] sm:$0x1]
      %s560 = scalar_lea.vmem %s330, 64
      %v561 = vld [vmem:[%s560] sm:$0xf]
      %v562 = vld [vmem:[%s560 + $0x4] sm:$0xf]
      %v563 = vld [vmem:[%s560 + $0x8] sm:$0xf]
      %v564 = vld [vmem:[%s560 + $0xc] sm:$0xf]
      %v565 = vld [vmem:[%s560 + $0x10] sm:$0xf]
      %v566 = vld [vmem:[%s560 + $0x14] sm:$0xf]
      %v567 = vld [vmem:[%s560 + $0x18] sm:$0xf]
      %v568 = vld [vmem:[%s560 + $0x1c] sm:$0xf]
      %v569 = vld [vmem:[%s560 + $0x20] sm:$0xf]
      %v570 = vld [vmem:[%s560 + $0x24] sm:$0xf]
      %v571 = vld [vmem:[%s560 + $0x28] sm:$0xf]
      %v572 = vld [vmem:[%s560 + $0x2c] sm:$0xf]
      %v573 = vld [vmem:[%s560 + $0x30] sm:$0xf]
      %v574 = vld [vmem:[%s560 + $0x34] sm:$0xf]
      %v575 = vld [vmem:[%s560 + $0x38] sm:$0xf]
      %v576 = vld [vmem:[%s560 + $0x3c] sm:$0xf]
      %v588 = vunpack.c.l.b16 %v549
      %v589 = vunpack.c.l.b16 %v550
      %v590 = vunpack.c.l.b16 %v551
      %v591 = vunpack.c.l.b16 %v552
      %v592 = vunpack.c.l.b16 %v553
      %v593 = vunpack.c.l.b16 %v554
      %v594 = vunpack.c.l.b16 %v555
      %v595 = vunpack.c.l.b16 %v556
      %v596 = vunpack.c.l.b16 %v557
      %v597 = vunpack.c.l.b16 %v558
      %v598 = vunpack.c.l.b16 %v559
      %v599 = vpack.c.b16 %v589, %v588
      %v600 = vpack.c.b16 %v591, %v590
      %v601 = vpack.c.b16 %v593, %v592
      %v602 = vpack.c.b16 %v595, %v594
      %v603 = vpack.c.b16 %v597, %v596
      %v604 = vpack.c.b16 %v598, %v598
      %vm605 = vsmask.f32 7424
      %v607 = vshrl.u32 %v599, 16
      %v609 = vshll.u32 %v599, 16
      %v611 = vrot.slane %v609, 1
      %v612 = vor.u32 %v607, %v611
      %v614 = vshll.u32 %v600, 16
      %v616 = vrot.slane %v614, 1
      %v617 = vsel %vm605, %v612, %v616
      %v618 = vshrl.u32 %v600, 16
      %v620 = vor.u32 %v618, %v616
      %v622 = vshll.u32 %v601, 16
      %v624 = vrot.slane %v622, 1
      %v625 = vsel %vm605, %v620, %v624
      %v626 = vshrl.u32 %v601, 16
      %v628 = vor.u32 %v626, %v624
      %v630 = vshll.u32 %v602, 16
      %v632 = vrot.slane %v630, 1
      %v633 = vsel %vm605, %v628, %v632
      %v634 = vshrl.u32 %v602, 16
      %v636 = vor.u32 %v634, %v632
      %v638 = vshll.u32 %v603, 16
      %v640 = vrot.slane %v638, 1
      %v641 = vsel %vm605, %v636, %v640
      %v642 = vshrl.u32 %v603, 16
      %v644 = vor.u32 %v642, %v640
      %v646 = vshll.u32 %v604, 16
      %v648 = vrot.slane %v646, 1
      %v649 = vsel %vm605, %v644, %v648
      %v671 = vunpack.c.l.b16 %v561
      %v672 = vunpack.c.l.b16 %v562
      %v673 = vunpack.c.l.b16 %v563
      %v674 = vunpack.c.l.b16 %v564
      %v675 = vunpack.c.l.b16 %v565
      %v676 = vunpack.c.l.b16 %v566
      %v677 = vunpack.c.l.b16 %v567
      %v678 = vunpack.c.l.b16 %v568
      %v679 = vunpack.c.l.b16 %v569
      %v680 = vunpack.c.l.b16 %v570
      %v681 = vunpack.c.l.b16 %v571
      %v682 = vunpack.c.l.b16 %v572
      %v683 = vunpack.c.l.b16 %v573
      %v684 = vunpack.c.l.b16 %v574
      %v685 = vunpack.c.l.b16 %v575
      %v686 = vunpack.c.l.b16 %v576
      %v687 = vpack.c.b16 %v672, %v671
      %v688 = vpack.c.b16 %v674, %v673
      %v689 = vpack.c.b16 %v676, %v675
      %v690 = vpack.c.b16 %v678, %v677
      %v691 = vpack.c.b16 %v680, %v679
      %v692 = vpack.c.b16 %v682, %v681
      %v693 = vpack.c.b16 %v684, %v683
      %v694 = vpack.c.b16 %v686, %v685
      %703 = vmatprep.subr.bf16.mxu0 0
      %704 = vmatpush1.bf16.msra.mxu0 %v694
      %705 = vmatprep.subr.bf16.mxu0 0
      %706 = vmatpush1.bf16.msra.mxu0 %v693
      %707 = vmatprep.subr.bf16.mxu0 0
      %708 = vmatpush1.bf16.msra.mxu0 %v692
      %709 = vmatprep.subr.bf16.mxu0 0
      %710 = vmatpush1.bf16.msra.mxu0 %v691
      %711 = vmatprep.subr.bf16.mxu0 0
      %712 = vmatpush1.bf16.msra.mxu0 %v690
      %713 = vmatprep.subr.bf16.mxu0 0
      %714 = vmatpush1.bf16.msra.mxu0 %v689
      %715 = vmatprep.subr.bf16.mxu0 0
      %716 = vmatpush1.bf16.msra.mxu0 %v688
      %717 = vmatprep.subr.bf16.mxu0 0
      %718 = vmatpush1.bf16.msra.mxu0 %v687
      %719 = vmatprep.subr.bf16.mxu0 0
      %720 = vmatpush2.bf16.msra.mxu0 0
      %721 = vmatprep.subr.bf16.mxu0 0
      %722 = vmatpush2.bf16.msra.mxu0 0
      %723 = vmatprep.subr.bf16.mxu0 0
      %724 = vmatpush2.bf16.msra.mxu0 0
      %725 = vmatprep.subr.bf16.mxu0 0
      %726 = vmatpush2.bf16.msra.mxu0 0
      %727 = vmatprep.subr.bf16.mxu0 0
      %728 = vmatpush2.bf16.msra.mxu0 0
      %729 = vmatprep.subr.bf16.mxu0 0
      %730 = vmatpush2.bf16.msra.mxu0 0
      %731 = vmatprep.subr.bf16.mxu0 0
      %732 = vmatpush2.bf16.msra.mxu0 0
      %733 = vmatprep.subr.bf16.mxu0 0
      %734 = vmatpush2.bf16.msra.mxu0 0
      %735 = vmatprep.mubr.bf16.mxu0 0
      %736 = vmatmul.mubr.bf16.gmra.mxu0 %v617
      %v737 = vpop.f32.mrf.mxu0
      %v738 = vadd.f32 0.0, %v737
      %v739 = vpop.f32.mrf.mxu0
      %v740 = vpop.f32.mrf.mxu0
      %v741 = vadd.f32 0.0, %v740
      %v742 = vpop.f32.mrf.mxu0
      %743 = vmatprep.mubr.bf16.mxu0 0
      %744 = vmatmul.mubr.bf16.gmra.mxu0 %v625
      %v745 = vpop.f32.mrf.mxu0
      %v746 = vadd.f32 0.0, %v745
      %v747 = vpop.f32.mrf.mxu0
      %v748 = vpop.f32.mrf.mxu0
      %v749 = vadd.f32 0.0, %v748
      %v750 = vpop.f32.mrf.mxu0
      %751 = vmatprep.mubr.bf16.mxu0 0
      %752 = vmatmul.mubr.bf16.gmra.mxu0 %v633
      %v753 = vpop.f32.mrf.mxu0
      %v754 = vadd.f32 0.0, %v753
      %v755 = vpop.f32.mrf.mxu0
      %v756 = vpop.f32.mrf.mxu0
      %v757 = vadd.f32 0.0, %v756
      %v758 = vpop.f32.mrf.mxu0
      %759 = vmatprep.mubr.bf16.mxu0 0
      %760 = vmatmul.mubr.bf16.gmra.mxu0 %v641
      %v761 = vpop.f32.mrf.mxu0
      %v762 = vadd.f32 0.0, %v761
      %v763 = vpop.f32.mrf.mxu0
      %v764 = vpop.f32.mrf.mxu0
      %v765 = vadd.f32 0.0, %v764
      %v766 = vpop.f32.mrf.mxu0
      %767 = vmatprep.mubr.bf16.mxu0 0
      %768 = vmatmul.mubr.bf16.gmra.mxu0 %v649
      %v769 = vpop.f32.mrf.mxu0
      %v770 = vadd.f32 0.0, %v769
      %v771 = vpop.f32.mrf.mxu0
      %v772 = vpop.f32.mrf.mxu0
      %v773 = vadd.f32 0.0, %v772
      %v774 = vpop.f32.mrf.mxu0
      %775 = vdwg.mxu0
      %v776 = vadd.f32 %v539, %v738
      %v777 = vadd.f32 %v540, %v741
      %v778 = vadd.f32 %v541, %v746
      %v779 = vadd.f32 %v542, %v749
      %v780 = vadd.f32 %v543, %v754
      %v781 = vadd.f32 %v544, %v757
      %v782 = vadd.f32 %v545, %v762
      %v783 = vadd.f32 %v546, %v765
      %v784 = vadd.f32 %v547, %v770
      %v785 = vadd.f32 %v548, %v773
      %v786 = vld [vmem:[%s326] sm:$0xe]
      %s787 = scalar_lea.vmem %s330, 128
      %v788 = vld [vmem:[%s787] sm:$0xf]
      %v789 = vld [vmem:[%s787 + $0x4] sm:$0xf]
      %v790 = vld [vmem:[%s787 + $0x8] sm:$0xf]
      %v791 = vld [vmem:[%s787 + $0xc] sm:$0xf]
      %v792 = vld [vmem:[%s787 + $0x10] sm:$0xf]
      %v793 = vld [vmem:[%s787 + $0x14] sm:$0xf]
      %v794 = vld [vmem:[%s787 + $0x18] sm:$0xf]
      %v795 = vld [vmem:[%s787 + $0x1c] sm:$0xf]
      %v796 = vld [vmem:[%s787 + $0x20] sm:$0xf]
      %v797 = vld [vmem:[%s787 + $0x24] sm:$0xf]
      %v798 = vld [vmem:[%s787 + $0x28] sm:$0xf]
      %v799 = vld [vmem:[%s787 + $0x2c] sm:$0xf]
      %v800 = vld [vmem:[%s787 + $0x30] sm:$0xf]
      %v801 = vld [vmem:[%s787 + $0x34] sm:$0xf]
      %v802 = vld [vmem:[%s787 + $0x38] sm:$0xf]
      %v803 = vld [vmem:[%s787 + $0x3c] sm:$0xf]
      %v805 = vunpack.c.l.b16 %v786
      %v806 = vpack.c.b16 %v589, %v805
      %vm807 = vcmask 1046528
      %v808 = vrot.slane %v806, 1
      %v809 = vrot.slane %v600, 1
      %v810 = vsel %vm807, %v808, %v809
      %v811 = vrot.slane %v601, 1
      %v812 = vsel %vm807, %v809, %v811
      %v813 = vrot.slane %v602, 1
      %v814 = vsel %vm807, %v811, %v813
      %v815 = vrot.slane %v603, 1
      %v816 = vsel %vm807, %v813, %v815
      %v817 = vrot.slane %v604, 1
      %v818 = vsel %vm807, %v815, %v817
      %v840 = vunpack.c.l.b16 %v788
      %v841 = vunpack.c.l.b16 %v789
      %v842 = vunpack.c.l.b16 %v790
      %v843 = vunpack.c.l.b16 %v791
      %v844 = vunpack.c.l.b16 %v792
      %v845 = vunpack.c.l.b16 %v793
      %v846 = vunpack.c.l.b16 %v794
      %v847 = vunpack.c.l.b16 %v795
      %v848 = vunpack.c.l.b16 %v796
      %v849 = vunpack.c.l.b16 %v797
      %v850 = vunpack.c.l.b16 %v798
      %v851 = vunpack.c.l.b16 %v799
      %v852 = vunpack.c.l.b16 %v800
      %v853 = vunpack.c.l.b16 %v801
      %v854 = vunpack.c.l.b16 %v802
      %v855 = vunpack.c.l.b16 %v803
      %v856 = vpack.c.b16 %v841, %v840
      %v857 = vpack.c.b16 %v843, %v842
      %v858 = vpack.c.b16 %v845, %v844
      %v859 = vpack.c.b16 %v847, %v846
      %v860 = vpack.c.b16 %v849, %v848
      %v861 = vpack.c.b16 %v851, %v850
      %v862 = vpack.c.b16 %v853, %v852
      %v863 = vpack.c.b16 %v855, %v854
      %872 = vmatprep.subr.bf16.mxu0 0
      %873 = vmatpush1.bf16.msra.mxu0 %v863
      %874 = vmatprep.subr.bf16.mxu0 0
      %875 = vmatpush1.bf16.msra.mxu0 %v862
      %876 = vmatprep.subr.bf16.mxu0 0
      %877 = vmatpush1.bf16.msra.mxu0 %v861
      %878 = vmatprep.subr.bf16.mxu0 0
      %879 = vmatpush1.bf16.msra.mxu0 %v860
      %880 = vmatprep.subr.bf16.mxu0 0
      %881 = vmatpush1.bf16.msra.mxu0 %v859
      %882 = vmatprep.subr.bf16.mxu0 0
      %883 = vmatpush1.bf16.msra.mxu0 %v858
      %884 = vmatprep.subr.bf16.mxu0 0
      %885 = vmatpush1.bf16.msra.mxu0 %v857
      %886 = vmatprep.subr.bf16.mxu0 0
      %887 = vmatpush1.bf16.msra.mxu0 %v856
      %888 = vmatprep.subr.bf16.mxu0 0
      %889 = vmatpush2.bf16.msra.mxu0 0
      %890 = vmatprep.subr.bf16.mxu0 0
      %891 = vmatpush2.bf16.msra.mxu0 0
      %892 = vmatprep.subr.bf16.mxu0 0
      %893 = vmatpush2.bf16.msra.mxu0 0
      %894 = vmatprep.subr.bf16.mxu0 0
      %895 = vmatpush2.bf16.msra.mxu0 0
      %896 = vmatprep.subr.bf16.mxu0 0
      %897 = vmatpush2.bf16.msra.mxu0 0
      %898 = vmatprep.subr.bf16.mxu0 0
      %899 = vmatpush2.bf16.msra.mxu0 0
      %900 = vmatprep.subr.bf16.mxu0 0
      %901 = vmatpush2.bf16.msra.mxu0 0
      %902 = vmatprep.subr.bf16.mxu0 0
      %903 = vmatpush2.bf16.msra.mxu0 0
      %904 = vmatprep.mubr.bf16.mxu0 0
      %905 = vmatmul.mubr.bf16.gmra.mxu0 %v810
      %v906 = vpop.f32.mrf.mxu0
      %v907 = vadd.f32 0.0, %v906
      %v908 = vpop.f32.mrf.mxu0
      %v909 = vpop.f32.mrf.mxu0
      %v910 = vadd.f32 0.0, %v909
      %v911 = vpop.f32.mrf.mxu0
      %912 = vmatprep.mubr.bf16.mxu0 0
      %913 = vmatmul.mubr.bf16.gmra.mxu0 %v812
      %v914 = vpop.f32.mrf.mxu0
      %v915 = vadd.f32 0.0, %v914
      %v916 = vpop.f32.mrf.mxu0
      %v917 = vpop.f32.mrf.mxu0
      %v918 = vadd.f32 0.0, %v917
      %v919 = vpop.f32.mrf.mxu0
      %920 = vmatprep.mubr.bf16.mxu0 0
      %921 = vmatmul.mubr.bf16.gmra.mxu0 %v814
      %v922 = vpop.f32.mrf.mxu0
      %v923 = vadd.f32 0.0, %v922
      %v924 = vpop.f32.mrf.mxu0
      %v925 = vpop.f32.mrf.mxu0
      %v926 = vadd.f32 0.0, %v925
      %v927 = vpop.f32.mrf.mxu0
      %928 = vmatprep.mubr.bf16.mxu0 0
      %929 = vmatmul.mubr.bf16.gmra.mxu0 %v816
      %v930 = vpop.f32.mrf.mxu0
      %v931 = vadd.f32 0.0, %v930
      %v932 = vpop.f32.mrf.mxu0
      %v933 = vpop.f32.mrf.mxu0
      %v934 = vadd.f32 0.0, %v933
      %v935 = vpop.f32.mrf.mxu0
      %936 = vmatprep.mubr.bf16.mxu0 0
      %937 = vmatmul.mubr.bf16.gmra.mxu0 %v818
      %v938 = vpop.f32.mrf.mxu0
      %v939 = vadd.f32 0.0, %v938
      %v940 = vpop.f32.mrf.mxu0
      %v941 = vpop.f32.mrf.mxu0
      %v942 = vadd.f32 0.0, %v941
      %v943 = vpop.f32.mrf.mxu0
      %944 = vdwg.mxu0
      %v945 = vadd.f32 %v776, %v907
      %v946 = vadd.f32 %v777, %v910
      %v947 = vadd.f32 %v778, %v915
      %v948 = vadd.f32 %v779, %v918
      %v949 = vadd.f32 %v780, %v923
      %v950 = vadd.f32 %v781, %v926
      %v951 = vadd.f32 %v782, %v931
      %v952 = vadd.f32 %v783, %v934
      %v953 = vadd.f32 %v784, %v939
      %v954 = vadd.f32 %v785, %v942
      %v955 = vld [vmem:[%s326 + $0x4] sm:$0xe]
      %v956 = vld [vmem:[%s326 + $0x8] sm:$0xf]
      %v957 = vld [vmem:[%s326 + $0xc] sm:$0xf]
      %v958 = vld [vmem:[%s326 + $0x10] sm:$0xf]
      %v959 = vld [vmem:[%s326 + $0x14] sm:$0xf]
      %v960 = vld [vmem:[%s326 + $0x18] sm:$0xf]
      %v961 = vld [vmem:[%s326 + $0x1c] sm:$0xf]
      %v962 = vld [vmem:[%s326 + $0x20] sm:$0xf]
      %v963 = vld [vmem:[%s326 + $0x24] sm:$0xf]
      %v964 = vld [vmem:[%s326 + $0x28] sm:$0xf]
      %v965 = vld [vmem:[%s326 + $0x2c] sm:$0x1]
      %s966 = scalar_lea.vmem %s330, 192
      %v967 = vld [vmem:[%s966] sm:$0xf]
      %v968 = vld [vmem:[%s966 + $0x4] sm:$0xf]
      %v969 = vld [vmem:[%s966 + $0x8] sm:$0xf]
      %v970 = vld [vmem:[%s966 + $0xc] sm:$0xf]
      %v971 = vld [vmem:[%s966 + $0x10] sm:$0xf]
      %v972 = vld [vmem:[%s966 + $0x14] sm:$0xf]
      %v973 = vld [vmem:[%s966 + $0x18] sm:$0xf]
      %v974 = vld [vmem:[%s966 + $0x1c] sm:$0xf]
      %v975 = vld [vmem:[%s966 + $0x20] sm:$0xf]
      %v976 = vld [vmem:[%s966 + $0x24] sm:$0xf]
      %v977 = vld [vmem:[%s966 + $0x28] sm:$0xf]
      %v978 = vld [vmem:[%s966 + $0x2c] sm:$0xf]
      %v979 = vld [vmem:[%s966 + $0x30] sm:$0xf]
      %v980 = vld [vmem:[%s966 + $0x34] sm:$0xf]
      %v981 = vld [vmem:[%s966 + $0x38] sm:$0xf]
      %v982 = vld [vmem:[%s966 + $0x3c] sm:$0xf]
      %v994 = vunpack.c.l.b16 %v955
      %v995 = vunpack.c.l.b16 %v956
      %v996 = vunpack.c.l.b16 %v957
      %v997 = vunpack.c.l.b16 %v958
      %v998 = vunpack.c.l.b16 %v959
      %v999 = vunpack.c.l.b16 %v960
      %v1000 = vunpack.c.l.b16 %v961
      %v1001 = vunpack.c.l.b16 %v962
      %v1002 = vunpack.c.l.b16 %v963
      %v1003 = vunpack.c.l.b16 %v964
      %v1004 = vunpack.c.l.b16 %v965
      %v1005 = vpack.c.b16 %v995, %v994
      %v1006 = vpack.c.b16 %v997, %v996
      %v1007 = vpack.c.b16 %v999, %v998
      %v1008 = vpack.c.b16 %v1001, %v1000
      %v1009 = vpack.c.b16 %v1003, %v1002
      %v1010 = vpack.c.b16 %v1004, %v1004
      %v1011 = vrot.slane %v1005, 1
      %v1012 = vrot.slane %v1006, 1
      %v1013 = vsel %vm807, %v1011, %v1012
      %v1014 = vrot.slane %v1007, 1
      %v1015 = vsel %vm807, %v1012, %v1014
      %v1016 = vrot.slane %v1008, 1
      %v1017 = vsel %vm807, %v1014, %v1016
      %v1018 = vrot.slane %v1009, 1
      %v1019 = vsel %vm807, %v1016, %v1018
      %v1020 = vrot.slane %v1010, 1
      %v1021 = vsel %vm807, %v1018, %v1020
      %v1043 = vunpack.c.l.b16 %v967
      %v1044 = vunpack.c.l.b16 %v968
      %v1045 = vunpack.c.l.b16 %v969
      %v1046 = vunpack.c.l.b16 %v970
      %v1047 = vunpack.c.l.b16 %v971
      %v1048 = vunpack.c.l.b16 %v972
      %v1049 = vunpack.c.l.b16 %v973
      %v1050 = vunpack.c.l.b16 %v974
      %v1051 = vunpack.c.l.b16 %v975
      %v1052 = vunpack.c.l.b16 %v976
      %v1053 = vunpack.c.l.b16 %v977
      %v1054 = vunpack.c.l.b16 %v978
      %v1055 = vunpack.c.l.b16 %v979
      %v1056 = vunpack.c.l.b16 %v980
      %v1057 = vunpack.c.l.b16 %v981
      %v1058 = vunpack.c.l.b16 %v982
      %v1059 = vpack.c.b16 %v1044, %v1043
      %v1060 = vpack.c.b16 %v1046, %v1045
      %v1061 = vpack.c.b16 %v1048, %v1047
      %v1062 = vpack.c.b16 %v1050, %v1049
      %v1063 = vpack.c.b16 %v1052, %v1051
      %v1064 = vpack.c.b16 %v1054, %v1053
      %v1065 = vpack.c.b16 %v1056, %v1055
      %v1066 = vpack.c.b16 %v1058, %v1057
      %1075 = vmatprep.subr.bf16.mxu0 0
      %1076 = vmatpush1.bf16.msra.mxu0 %v1066
      %1077 = vmatprep.subr.bf16.mxu0 0
      %1078 = vmatpush1.bf16.msra.mxu0 %v1065
      %1079 = vmatprep.subr.bf16.mxu0 0
      %1080 = vmatpush1.bf16.msra.mxu0 %v1064
      %1081 = vmatprep.subr.bf16.mxu0 0
      %1082 = vmatpush1.bf16.msra.mxu0 %v1063
      %1083 = vmatprep.subr.bf16.mxu0 0
      %1084 = vmatpush1.bf16.msra.mxu0 %v1062
      %1085 = vmatprep.subr.bf16.mxu0 0
      %1086 = vmatpush1.bf16.msra.mxu0 %v1061
      %1087 = vmatprep.subr.bf16.mxu0 0
      %1088 = vmatpush1.bf16.msra.mxu0 %v1060
      %1089 = vmatprep.subr.bf16.mxu0 0
      %1090 = vmatpush1.bf16.msra.mxu0 %v1059
      %1091 = vmatprep.subr.bf16.mxu0 0
      %1092 = vmatpush2.bf16.msra.mxu0 0
      %1093 = vmatprep.subr.bf16.mxu0 0
      %1094 = vmatpush2.bf16.msra.mxu0 0
      %1095 = vmatprep.subr.bf16.mxu0 0
      %1096 = vmatpush2.bf16.msra.mxu0 0
      %1097 = vmatprep.subr.bf16.mxu0 0
      %1098 = vmatpush2.bf16.msra.mxu0 0
      %1099 = vmatprep.subr.bf16.mxu0 0
      %1100 = vmatpush2.bf16.msra.mxu0 0
      %1101 = vmatprep.subr.bf16.mxu0 0
      %1102 = vmatpush2.bf16.msra.mxu0 0
      %1103 = vmatprep.subr.bf16.mxu0 0
      %1104 = vmatpush2.bf16.msra.mxu0 0
      %1105 = vmatprep.subr.bf16.mxu0 0
      %1106 = vmatpush2.bf16.msra.mxu0 0
      %1107 = vmatprep.mubr.bf16.mxu0 0
      %1108 = vmatmul.mubr.bf16.gmra.mxu0 %v1013
      %v1109 = vpop.f32.mrf.mxu0
      %v1110 = vadd.f32 0.0, %v1109
      %v1111 = vpop.f32.mrf.mxu0
      %v1112 = vpop.f32.mrf.mxu0
      %v1113 = vadd.f32 0.0, %v1112
      %v1114 = vpop.f32.mrf.mxu0
      %1115 = vmatprep.mubr.bf16.mxu0 0
      %1116 = vmatmul.mubr.bf16.gmra.mxu0 %v1015
      %v1117 = vpop.f32.mrf.mxu0
      %v1118 = vadd.f32 0.0, %v1117
      %v1119 = vpop.f32.mrf.mxu0
      %v1120 = vpop.f32.mrf.mxu0
      %v1121 = vadd.f32 0.0, %v1120
      %v1122 = vpop.f32.mrf.mxu0
      %1123 = vmatprep.mubr.bf16.mxu0 0
      %1124 = vmatmul.mubr.bf16.gmra.mxu0 %v1017
      %v1125 = vpop.f32.mrf.mxu0
      %v1126 = vadd.f32 0.0, %v1125
      %v1127 = vpop.f32.mrf.mxu0
      %v1128 = vpop.f32.mrf.mxu0
      %v1129 = vadd.f32 0.0, %v1128
      %v1130 = vpop.f32.mrf.mxu0
      %1131 = vmatprep.mubr.bf16.mxu0 0
      %1132 = vmatmul.mubr.bf16.gmra.mxu0 %v1019
      %v1133 = vpop.f32.mrf.mxu0
      %v1134 = vadd.f32 0.0, %v1133
      %v1135 = vpop.f32.mrf.mxu0
      %v1136 = vpop.f32.mrf.mxu0
      %v1137 = vadd.f32 0.0, %v1136
      %v1138 = vpop.f32.mrf.mxu0
      %1139 = vmatprep.mubr.bf16.mxu0 0
      %1140 = vmatmul.mubr.bf16.gmra.mxu0 %v1021
      %v1141 = vpop.f32.mrf.mxu0
      %v1142 = vadd.f32 0.0, %v1141
      %v1143 = vpop.f32.mrf.mxu0
      %v1144 = vpop.f32.mrf.mxu0
      %v1145 = vadd.f32 0.0, %v1144
      %v1146 = vpop.f32.mrf.mxu0
      %1147 = vdwg.mxu0
      %v1148 = vadd.f32 %v945, %v1110
      %v1149 = vadd.f32 %v946, %v1113
      %v1150 = vadd.f32 %v947, %v1118
      %v1151 = vadd.f32 %v948, %v1121
      %v1152 = vadd.f32 %v949, %v1126
      %v1153 = vadd.f32 %v950, %v1129
      %v1154 = vadd.f32 %v951, %v1134
      %v1155 = vadd.f32 %v952, %v1137
      %v1156 = vadd.f32 %v953, %v1142
      %v1157 = vadd.f32 %v954, %v1145
      %v1158 = vld [vmem:[%s326 + $0x2c] sm:$0x3]
      %s1159 = scalar_lea.vmem %s330, 256
      %v1160 = vld [vmem:[%s1159] sm:$0xf]
      %v1161 = vld [vmem:[%s1159 + $0x4] sm:$0xf]
      %v1162 = vld [vmem:[%s1159 + $0x8] sm:$0xf]
      %v1163 = vld [vmem:[%s1159 + $0xc] sm:$0xf]
      %v1164 = vld [vmem:[%s1159 + $0x10] sm:$0xf]
      %v1165 = vld [vmem:[%s1159 + $0x14] sm:$0xf]
      %v1166 = vld [vmem:[%s1159 + $0x18] sm:$0xf]
      %v1167 = vld [vmem:[%s1159 + $0x1c] sm:$0xf]
      %v1168 = vld [vmem:[%s1159 + $0x20] sm:$0xf]
      %v1169 = vld [vmem:[%s1159 + $0x24] sm:$0xf]
      %v1170 = vld [vmem:[%s1159 + $0x28] sm:$0xf]
      %v1171 = vld [vmem:[%s1159 + $0x2c] sm:$0xf]
      %v1172 = vld [vmem:[%s1159 + $0x30] sm:$0xf]
      %v1173 = vld [vmem:[%s1159 + $0x34] sm:$0xf]
      %v1174 = vld [vmem:[%s1159 + $0x38] sm:$0xf]
      %v1175 = vld [vmem:[%s1159 + $0x3c] sm:$0xf]
      %v1177 = vunpack.c.l.b16 %v1158
      %v1178 = vpack.c.b16 %v1177, %v1177
      %vm1179 = vsmask.f32 6400
      %v1181 = vshrl.u32 %v1005, 16
      %v1183 = vrot.slane %v1181, 1
      %v1184 = vshll.u32 %v1005, 16
      %v1186 = vrot.slane %v1184, 2
      %v1187 = vor.u32 %v1183, %v1186
      %v1189 = vshrl.u32 %v1006, 16
      %v1191 = vrot.slane %v1189, 1
      %v1192 = vshll.u32 %v1006, 16
      %v1194 = vrot.slane %v1192, 2
      %v1195 = vor.u32 %v1191, %v1194
      %v1196 = vsel %vm1179, %v1187, %v1195
      %v1198 = vshrl.u32 %v1007, 16
      %v1200 = vrot.slane %v1198, 1
      %v1201 = vshll.u32 %v1007, 16
      %v1203 = vrot.slane %v1201, 2
      %v1204 = vor.u32 %v1200, %v1203
      %v1205 = vsel %vm1179, %v1195, %v1204
      %v1207 = vshrl.u32 %v1008, 16
      %v1209 = vrot.slane %v1207, 1
      %v1210 = vshll.u32 %v1008, 16
      %v1212 = vrot.slane %v1210, 2
      %v1213 = vor.u32 %v1209, %v1212
      %v1214 = vsel %vm1179, %v1204, %v1213
      %v1216 = vshrl.u32 %v1009, 16
      %v1218 = vrot.slane %v1216, 1
      %v1219 = vshll.u32 %v1009, 16
      %v1221 = vrot.slane %v1219, 2
      %v1222 = vor.u32 %v1218, %v1221
      %v1223 = vsel %vm1179, %v1213, %v1222
      %v1225 = vshrl.u32 %v1178, 16
      %v1227 = vrot.slane %v1225, 1
      %v1228 = vshll.u32 %v1178, 16
      %v1230 = vrot.slane %v1228, 2
      %v1231 = vor.u32 %v1227, %v1230
      %v1232 = vsel %vm1179, %v1222, %v1231
      %v1254 = vunpack.c.l.b16 %v1160
      %v1255 = vunpack.c.l.b16 %v1161
      %v1256 = vunpack.c.l.b16 %v1162
      %v1257 = vunpack.c.l.b16 %v1163
      %v1258 = vunpack.c.l.b16 %v1164
      %v1259 = vunpack.c.l.b16 %v1165
      %v1260 = vunpack.c.l.b16 %v1166
      %v1261 = vunpack.c.l.b16 %v1167
      %v1262 = vunpack.c.l.b16 %v1168
      %v1263 = vunpack.c.l.b16 %v1169
      %v1264 = vunpack.c.l.b16 %v1170
      %v1265 = vunpack.c.l.b16 %v1171
      %v1266 = vunpack.c.l.b16 %v1172
      %v1267 = vunpack.c.l.b16 %v1173
      %v1268 = vunpack.c.l.b16 %v1174
      %v1269 = vunpack.c.l.b16 %v1175
      %v1270 = vpack.c.b16 %v1255, %v1254
      %v1271 = vpack.c.b16 %v1257, %v1256
      %v1272 = vpack.c.b16 %v1259, %v1258
      %v1273 = vpack.c.b16 %v1261, %v1260
      %v1274 = vpack.c.b16 %v1263, %v1262
      %v1275 = vpack.c.b16 %v1265, %v1264
      %v1276 = vpack.c.b16 %v1267, %v1266
      %v1277 = vpack.c.b16 %v1269, %v1268
      %1286 = vmatprep.subr.bf16.mxu0 0
      %1287 = vmatpush1.bf16.msra.mxu0 %v1277
      %1288 = vmatprep.subr.bf16.mxu0 0
      %1289 = vmatpush1.bf16.msra.mxu0 %v1276
      %1290 = vmatprep.subr.bf16.mxu0 0
      %1291 = vmatpush1.bf16.msra.mxu0 %v1275
      %1292 = vmatprep.subr.bf16.mxu0 0
      %1293 = vmatpush1.bf16.msra.mxu0 %v1274
      %1294 = vmatprep.subr.bf16.mxu0 0
      %1295 = vmatpush1.bf16.msra.mxu0 %v1273
      %1296 = vmatprep.subr.bf16.mxu0 0
      %1297 = vmatpush1.bf16.msra.mxu0 %v1272
      %1298 = vmatprep.subr.bf16.mxu0 0
      %1299 = vmatpush1.bf16.msra.mxu0 %v1271
      %1300 = vmatprep.subr.bf16.mxu0 0
      %1301 = vmatpush1.bf16.msra.mxu0 %v1270
      %1302 = vmatprep.subr.bf16.mxu0 0
      %1303 = vmatpush2.bf16.msra.mxu0 0
      %1304 = vmatprep.subr.bf16.mxu0 0
      %1305 = vmatpush2.bf16.msra.mxu0 0
      %1306 = vmatprep.subr.bf16.mxu0 0
      %1307 = vmatpush2.bf16.msra.mxu0 0
      %1308 = vmatprep.subr.bf16.mxu0 0
      %1309 = vmatpush2.bf16.msra.mxu0 0
      %1310 = vmatprep.subr.bf16.mxu0 0
      %1311 = vmatpush2.bf16.msra.mxu0 0
      %1312 = vmatprep.subr.bf16.mxu0 0
      %1313 = vmatpush2.bf16.msra.mxu0 0
      %1314 = vmatprep.subr.bf16.mxu0 0
      %1315 = vmatpush2.bf16.msra.mxu0 0
      %1316 = vmatprep.subr.bf16.mxu0 0
      %1317 = vmatpush2.bf16.msra.mxu0 0
      %1318 = vmatprep.mubr.bf16.mxu0 0
      %1319 = vmatmul.mubr.bf16.gmra.mxu0 %v1196
      %v1320 = vpop.f32.mrf.mxu0
      %v1321 = vadd.f32 0.0, %v1320
      %v1322 = vpop.f32.mrf.mxu0
      %v1323 = vpop.f32.mrf.mxu0
      %v1324 = vadd.f32 0.0, %v1323
      %v1325 = vpop.f32.mrf.mxu0
      %1326 = vmatprep.mubr.bf16.mxu0 0
      %1327 = vmatmul.mubr.bf16.gmra.mxu0 %v1205
      %v1328 = vpop.f32.mrf.mxu0
      %v1329 = vadd.f32 0.0, %v1328
      %v1330 = vpop.f32.mrf.mxu0
      %v1331 = vpop.f32.mrf.mxu0
      %v1332 = vadd.f32 0.0, %v1331
      %v1333 = vpop.f32.mrf.mxu0
      %1334 = vmatprep.mubr.bf16.mxu0 0
      %1335 = vmatmul.mubr.bf16.gmra.mxu0 %v1214
      %v1336 = vpop.f32.mrf.mxu0
      %v1337 = vadd.f32 0.0, %v1336
      %v1338 = vpop.f32.mrf.mxu0
      %v1339 = vpop.f32.mrf.mxu0
      %v1340 = vadd.f32 0.0, %v1339
      %v1341 = vpop.f32.mrf.mxu0
      %1342 = vmatprep.mubr.bf16.mxu0 0
      %1343 = vmatmul.mubr.bf16.gmra.mxu0 %v1223
      %v1344 = vpop.f32.mrf.mxu0
      %v1345 = vadd.f32 0.0, %v1344
      %v1346 = vpop.f32.mrf.mxu0
      %v1347 = vpop.f32.mrf.mxu0
      %v1348 = vadd.f32 0.0, %v1347
      %v1349 = vpop.f32.mrf.mxu0
      %1350 = vmatprep.mubr.bf16.mxu0 0
      %1351 = vmatmul.mubr.bf16.gmra.mxu0 %v1232
      %v1352 = vpop.f32.mrf.mxu0
      %v1353 = vadd.f32 0.0, %v1352
      %v1354 = vpop.f32.mrf.mxu0
      %v1355 = vpop.f32.mrf.mxu0
      %v1356 = vadd.f32 0.0, %v1355
      %v1357 = vpop.f32.mrf.mxu0
      %1358 = vdwg.mxu0
      %v1359 = vadd.f32 %v1148, %v1321
      %v1360 = vadd.f32 %v1149, %v1324
      %v1361 = vadd.f32 %v1150, %v1329
      %v1362 = vadd.f32 %v1151, %v1332
      %v1363 = vadd.f32 %v1152, %v1337
      %v1364 = vadd.f32 %v1153, %v1340
      %v1365 = vadd.f32 %v1154, %v1345
      %v1366 = vadd.f32 %v1155, %v1348
      %v1367 = vadd.f32 %v1156, %v1353
      %v1368 = vadd.f32 %v1157, %v1356
      %v1369 = vld [vmem:[%s326 + $0x4] sm:$0xc]
      %s1370 = scalar_lea.vmem %s330, 320
      %v1371 = vld [vmem:[%s1370] sm:$0xf]
      %v1372 = vld [vmem:[%s1370 + $0x4] sm:$0xf]
      %v1373 = vld [vmem:[%s1370 + $0x8] sm:$0xf]
      %v1374 = vld [vmem:[%s1370 + $0xc] sm:$0xf]
      %v1375 = vld [vmem:[%s1370 + $0x10] sm:$0xf]
      %v1376 = vld [vmem:[%s1370 + $0x14] sm:$0xf]
      %v1377 = vld [vmem:[%s1370 + $0x18] sm:$0xf]
      %v1378 = vld [vmem:[%s1370 + $0x1c] sm:$0xf]
      %v1379 = vld [vmem:[%s1370 + $0x20] sm:$0xf]
      %v1380 = vld [vmem:[%s1370 + $0x24] sm:$0xf]
      %v1381 = vld [vmem:[%s1370 + $0x28] sm:$0xf]
      %v1382 = vld [vmem:[%s1370 + $0x2c] sm:$0xf]
      %v1383 = vld [vmem:[%s1370 + $0x30] sm:$0xf]
      %v1384 = vld [vmem:[%s1370 + $0x34] sm:$0xf]
      %v1385 = vld [vmem:[%s1370 + $0x38] sm:$0xf]
      %v1386 = vld [vmem:[%s1370 + $0x3c] sm:$0xf]
      %v1388 = vunpack.c.l.b16 %v1369
      %v1389 = vpack.c.b16 %v995, %v1388
      %vm1390 = vcmask 1045504
      %v1391 = vrot.slane %v1389, 2
      %v1392 = vrot.slane %v1006, 2
      %v1393 = vsel %vm1390, %v1391, %v1392
      %v1394 = vrot.slane %v1007, 2
      %v1395 = vsel %vm1390, %v1392, %v1394
      %v1396 = vrot.slane %v1008, 2
      %v1397 = vsel %vm1390, %v1394, %v1396
      %v1398 = vrot.slane %v1009, 2
      %v1399 = vsel %vm1390, %v1396, %v1398
      %v1400 = vrot.slane %v1178, 2
      %v1401 = vsel %vm1390, %v1398, %v1400
      %v1423 = vunpack.c.l.b16 %v1371
      %v1424 = vunpack.c.l.b16 %v1372
      %v1425 = vunpack.c.l.b16 %v1373
      %v1426 = vunpack.c.l.b16 %v1374
      %v1427 = vunpack.c.l.b16 %v1375
      %v1428 = vunpack.c.l.b16 %v1376
      %v1429 = vunpack.c.l.b16 %v1377
      %v1430 = vunpack.c.l.b16 %v1378
      %v1431 = vunpack.c.l.b16 %v1379
      %v1432 = vunpack.c.l.b16 %v1380
      %v1433 = vunpack.c.l.b16 %v1381
      %v1434 = vunpack.c.l.b16 %v1382
      %v1435 = vunpack.c.l.b16 %v1383
      %v1436 = vunpack.c.l.b16 %v1384
      %v1437 = vunpack.c.l.b16 %v1385
      %v1438 = vunpack.c.l.b16 %v1386
      %v1439 = vpack.c.b16 %v1424, %v1423
      %v1440 = vpack.c.b16 %v1426, %v1425
      %v1441 = vpack.c.b16 %v1428, %v1427
      %v1442 = vpack.c.b16 %v1430, %v1429
      %v1443 = vpack.c.b16 %v1432, %v1431
      %v1444 = vpack.c.b16 %v1434, %v1433
      %v1445 = vpack.c.b16 %v1436, %v1435
      %v1446 = vpack.c.b16 %v1438, %v1437
      %1455 = vmatprep.subr.bf16.mxu0 0
      %1456 = vmatpush1.bf16.msra.mxu0 %v1446
      %1457 = vmatprep.subr.bf16.mxu0 0
      %1458 = vmatpush1.bf16.msra.mxu0 %v1445
      %1459 = vmatprep.subr.bf16.mxu0 0
      %1460 = vmatpush1.bf16.msra.mxu0 %v1444
      %1461 = vmatprep.subr.bf16.mxu0 0
      %1462 = vmatpush1.bf16.msra.mxu0 %v1443
      %1463 = vmatprep.subr.bf16.mxu0 0
      %1464 = vmatpush1.bf16.msra.mxu0 %v1442
      %1465 = vmatprep.subr.bf16.mxu0 0
      %1466 = vmatpush1.bf16.msra.mxu0 %v1441
      %1467 = vmatprep.subr.bf16.mxu0 0
      %1468 = vmatpush1.bf16.msra.mxu0 %v1440
      %1469 = vmatprep.subr.bf16.mxu0 0
      %1470 = vmatpush1.bf16.msra.mxu0 %v1439
      %1471 = vmatprep.subr.bf16.mxu0 0
      %1472 = vmatpush2.bf16.msra.mxu0 0
      %1473 = vmatprep.subr.bf16.mxu0 0
      %1474 = vmatpush2.bf16.msra.mxu0 0
      %1475 = vmatprep.subr.bf16.mxu0 0
      %1476 = vmatpush2.bf16.msra.mxu0 0
      %1477 = vmatprep.subr.bf16.mxu0 0
      %1478 = vmatpush2.bf16.msra.mxu0 0
      %1479 = vmatprep.subr.bf16.mxu0 0
      %1480 = vmatpush2.bf16.msra.mxu0 0
      %1481 = vmatprep.subr.bf16.mxu0 0
      %1482 = vmatpush2.bf16.msra.mxu0 0
      %1483 = vmatprep.subr.bf16.mxu0 0
      %1484 = vmatpush2.bf16.msra.mxu0 0
      %1485 = vmatprep.subr.bf16.mxu0 0
      %1486 = vmatpush2.bf16.msra.mxu0 0
      %1487 = vmatprep.mubr.bf16.mxu0 0
      %1488 = vmatmul.mubr.bf16.gmra.mxu0 %v1393
      %v1489 = vpop.f32.mrf.mxu0
      %v1490 = vadd.f32 0.0, %v1489
      %v1491 = vpop.f32.mrf.mxu0
      %v1492 = vpop.f32.mrf.mxu0
      %v1493 = vadd.f32 0.0, %v1492
      %v1494 = vpop.f32.mrf.mxu0
      %1495 = vmatprep.mubr.bf16.mxu0 0
      %1496 = vmatmul.mubr.bf16.gmra.mxu0 %v1395
      %v1497 = vpop.f32.mrf.mxu0
      %v1498 = vadd.f32 0.0, %v1497
      %v1499 = vpop.f32.mrf.mxu0
      %v1500 = vpop.f32.mrf.mxu0
      %v1501 = vadd.f32 0.0, %v1500
      %v1502 = vpop.f32.mrf.mxu0
      %1503 = vmatprep.mubr.bf16.mxu0 0
      %1504 = vmatmul.mubr.bf16.gmra.mxu0 %v1397
      %v1505 = vpop.f32.mrf.mxu0
      %v1506 = vadd.f32 0.0, %v1505
      %v1507 = vpop.f32.mrf.mxu0
      %v1508 = vpop.f32.mrf.mxu0
      %v1509 = vadd.f32 0.0, %v1508
      %v1510 = vpop.f32.mrf.mxu0
      %1511 = vmatprep.mubr.bf16.mxu0 0
      %1512 = vmatmul.mubr.bf16.gmra.mxu0 %v1399
      %v1513 = vpop.f32.mrf.mxu0
      %v1514 = vadd.f32 0.0, %v1513
      %v1515 = vpop.f32.mrf.mxu0
      %v1516 = vpop.f32.mrf.mxu0
      %v1517 = vadd.f32 0.0, %v1516
      %v1518 = vpop.f32.mrf.mxu0
      %1519 = vmatprep.mubr.bf16.mxu0 0
      %1520 = vmatmul.mubr.bf16.gmra.mxu0 %v1401
      %v1521 = vpop.f32.mrf.mxu0
      %v1522 = vadd.f32 0.0, %v1521
      %v1523 = vpop.f32.mrf.mxu0
      %v1524 = vpop.f32.mrf.mxu0
      %v1525 = vadd.f32 0.0, %v1524
      %v1526 = vpop.f32.mrf.mxu0
      %1527 = vdwg.mxu0
      %v1528 = vadd.f32 %v1359, %v1490
      %v1529 = vadd.f32 %v1360, %v1493
      %v1530 = vadd.f32 %v1361, %v1498
      %v1531 = vadd.f32 %v1362, %v1501
      %v1532 = vadd.f32 %v1363, %v1506
      %v1533 = vadd.f32 %v1364, %v1509
      %v1534 = vadd.f32 %v1365, %v1514
      %v1535 = vadd.f32 %v1366, %v1517
      %v1536 = vadd.f32 %v1367, %v1522
      %v1537 = vadd.f32 %v1368, %v1525
      %v1538 = vld [vmem:[%s326 + $0x8] sm:$0xc]
      %v1539 = vld [vmem:[%s326 + $0xc] sm:$0xf]
      %v1540 = vld [vmem:[%s326 + $0x10] sm:$0xf]
      %v1541 = vld [vmem:[%s326 + $0x14] sm:$0xf]
      %v1542 = vld [vmem:[%s326 + $0x18] sm:$0xf]
      %v1543 = vld [vmem:[%s326 + $0x1c] sm:$0xf]
      %v1544 = vld [vmem:[%s326 + $0x20] sm:$0xf]
      %v1545 = vld [vmem:[%s326 + $0x24] sm:$0xf]
      %v1546 = vld [vmem:[%s326 + $0x28] sm:$0xf]
      %v1547 = vld [vmem:[%s326 + $0x2c] sm:$0xf]
      %v1548 = vld [vmem:[%s326 + $0x30] sm:$0x3]
      %s1549 = scalar_lea.vmem %s330, 384
      %v1550 = vld [vmem:[%s1549] sm:$0xf]
      %v1551 = vld [vmem:[%s1549 + $0x4] sm:$0xf]
      %v1552 = vld [vmem:[%s1549 + $0x8] sm:$0xf]
      %v1553 = vld [vmem:[%s1549 + $0xc] sm:$0xf]
      %v1554 = vld [vmem:[%s1549 + $0x10] sm:$0xf]
      %v1555 = vld [vmem:[%s1549 + $0x14] sm:$0xf]
      %v1556 = vld [vmem:[%s1549 + $0x18] sm:$0xf]
      %v1557 = vld [vmem:[%s1549 + $0x1c] sm:$0xf]
      %v1558 = vld [vmem:[%s1549 + $0x20] sm:$0xf]
      %v1559 = vld [vmem:[%s1549 + $0x24] sm:$0xf]
      %v1560 = vld [vmem:[%s1549 + $0x28] sm:$0xf]
      %v1561 = vld [vmem:[%s1549 + $0x2c] sm:$0xf]
      %v1562 = vld [vmem:[%s1549 + $0x30] sm:$0xf]
      %v1563 = vld [vmem:[%s1549 + $0x34] sm:$0xf]
      %v1564 = vld [vmem:[%s1549 + $0x38] sm:$0xf]
      %v1565 = vld [vmem:[%s1549 + $0x3c] sm:$0xf]
      %v1577 = vunpack.c.l.b16 %v1538
      %v1578 = vunpack.c.l.b16 %v1539
      %v1579 = vunpack.c.l.b16 %v1540
      %v1580 = vunpack.c.l.b16 %v1541
      %v1581 = vunpack.c.l.b16 %v1542
      %v1582 = vunpack.c.l.b16 %v1543
      %v1583 = vunpack.c.l.b16 %v1544
      %v1584 = vunpack.c.l.b16 %v1545
      %v1585 = vunpack.c.l.b16 %v1546
      %v1586 = vunpack.c.l.b16 %v1547
      %v1587 = vunpack.c.l.b16 %v1548
      %v1588 = vpack.c.b16 %v1578, %v1577
      %v1589 = vpack.c.b16 %v1580, %v1579
      %v1590 = vpack.c.b16 %v1582, %v1581
      %v1591 = vpack.c.b16 %v1584, %v1583
      %v1592 = vpack.c.b16 %v1586, %v1585
      %v1593 = vpack.c.b16 %v1587, %v1587
      %v1594 = vrot.slane %v1588, 2
      %v1595 = vrot.slane %v1589, 2
      %v1596 = vsel %vm1390, %v1594, %v1595
      %v1597 = vrot.slane %v1590, 2
      %v1598 = vsel %vm1390, %v1595, %v1597
      %v1599 = vrot.slane %v1591, 2
      %v1600 = vsel %vm1390, %v1597, %v1599
      %v1601 = vrot.slane %v1592, 2
      %v1602 = vsel %vm1390, %v1599, %v1601
      %v1603 = vrot.slane %v1593, 2
      %v1604 = vsel %vm1390, %v1601, %v1603
      %v1626 = vunpack.c.l.b16 %v1550
      %v1627 = vunpack.c.l.b16 %v1551
      %v1628 = vunpack.c.l.b16 %v1552
      %v1629 = vunpack.c.l.b16 %v1553
      %v1630 = vunpack.c.l.b16 %v1554
      %v1631 = vunpack.c.l.b16 %v1555
      %v1632 = vunpack.c.l.b16 %v1556
      %v1633 = vunpack.c.l.b16 %v1557
      %v1634 = vunpack.c.l.b16 %v1558
      %v1635 = vunpack.c.l.b16 %v1559
      %v1636 = vunpack.c.l.b16 %v1560
      %v1637 = vunpack.c.l.b16 %v1561
      %v1638 = vunpack.c.l.b16 %v1562
      %v1639 = vunpack.c.l.b16 %v1563
      %v1640 = vunpack.c.l.b16 %v1564
      %v1641 = vunpack.c.l.b16 %v1565
      %v1642 = vpack.c.b16 %v1627, %v1626
      %v1643 = vpack.c.b16 %v1629, %v1628
      %v1644 = vpack.c.b16 %v1631, %v1630
      %v1645 = vpack.c.b16 %v1633, %v1632
      %v1646 = vpack.c.b16 %v1635, %v1634
      %v1647 = vpack.c.b16 %v1637, %v1636
      %v1648 = vpack.c.b16 %v1639, %v1638
      %v1649 = vpack.c.b16 %v1641, %v1640
      %1658 = vmatprep.subr.bf16.mxu0 0
      %1659 = vmatpush1.bf16.msra.mxu0 %v1649
      %1660 = vmatprep.subr.bf16.mxu0 0
      %1661 = vmatpush1.bf16.msra.mxu0 %v1648
      %1662 = vmatprep.subr.bf16.mxu0 0
      %1663 = vmatpush1.bf16.msra.mxu0 %v1647
      %1664 = vmatprep.subr.bf16.mxu0 0
      %1665 = vmatpush1.bf16.msra.mxu0 %v1646
      %1666 = vmatprep.subr.bf16.mxu0 0
      %1667 = vmatpush1.bf16.msra.mxu0 %v1645
      %1668 = vmatprep.subr.bf16.mxu0 0
      %1669 = vmatpush1.bf16.msra.mxu0 %v1644
      %1670 = vmatprep.subr.bf16.mxu0 0
      %1671 = vmatpush1.bf16.msra.mxu0 %v1643
      %1672 = vmatprep.subr.bf16.mxu0 0
      %1673 = vmatpush1.bf16.msra.mxu0 %v1642
      %1674 = vmatprep.subr.bf16.mxu0 0
      %1675 = vmatpush2.bf16.msra.mxu0 0
      %1676 = vmatprep.subr.bf16.mxu0 0
      %1677 = vmatpush2.bf16.msra.mxu0 0
      %1678 = vmatprep.subr.bf16.mxu0 0
      %1679 = vmatpush2.bf16.msra.mxu0 0
      %1680 = vmatprep.subr.bf16.mxu0 0
      %1681 = vmatpush2.bf16.msra.mxu0 0
      %1682 = vmatprep.subr.bf16.mxu0 0
      %1683 = vmatpush2.bf16.msra.mxu0 0
      %1684 = vmatprep.subr.bf16.mxu0 0
      %1685 = vmatpush2.bf16.msra.mxu0 0
      %1686 = vmatprep.subr.bf16.mxu0 0
      %1687 = vmatpush2.bf16.msra.mxu0 0
      %1688 = vmatprep.subr.bf16.mxu0 0
      %1689 = vmatpush2.bf16.msra.mxu0 0
      %1690 = vmatprep.mubr.bf16.mxu0 0
      %1691 = vmatmul.mubr.bf16.gmra.mxu0 %v1596
      %v1692 = vpop.f32.mrf.mxu0
      %v1693 = vadd.f32 0.0, %v1692
      %v1694 = vpop.f32.mrf.mxu0
      %v1695 = vpop.f32.mrf.mxu0
      %v1696 = vadd.f32 0.0, %v1695
      %v1697 = vpop.f32.mrf.mxu0
      %1698 = vmatprep.mubr.bf16.mxu0 0
      %1699 = vmatmul.mubr.bf16.gmra.mxu0 %v1598
      %v1700 = vpop.f32.mrf.mxu0
      %v1701 = vadd.f32 0.0, %v1700
      %v1702 = vpop.f32.mrf.mxu0
      %v1703 = vpop.f32.mrf.mxu0
      %v1704 = vadd.f32 0.0, %v1703
      %v1705 = vpop.f32.mrf.mxu0
      %1706 = vmatprep.mubr.bf16.mxu0 0
      %1707 = vmatmul.mubr.bf16.gmra.mxu0 %v1600
      %v1708 = vpop.f32.mrf.mxu0
      %v1709 = vadd.f32 0.0, %v1708
      %v1710 = vpop.f32.mrf.mxu0
      %v1711 = vpop.f32.mrf.mxu0
      %v1712 = vadd.f32 0.0, %v1711
      %v1713 = vpop.f32.mrf.mxu0
      %1714 = vmatprep.mubr.bf16.mxu0 0
      %1715 = vmatmul.mubr.bf16.gmra.mxu0 %v1602
      %v1716 = vpop.f32.mrf.mxu0
      %v1717 = vadd.f32 0.0, %v1716
      %v1718 = vpop.f32.mrf.mxu0
      %v1719 = vpop.f32.mrf.mxu0
      %v1720 = vadd.f32 0.0, %v1719
      %v1721 = vpop.f32.mrf.mxu0
      %1722 = vmatprep.mubr.bf16.mxu0 0
      %1723 = vmatmul.mubr.bf16.gmra.mxu0 %v1604
      %v1724 = vpop.f32.mrf.mxu0
      %v1725 = vadd.f32 0.0, %v1724
      %v1726 = vpop.f32.mrf.mxu0
      %v1727 = vpop.f32.mrf.mxu0
      %v1728 = vadd.f32 0.0, %v1727
      %v1729 = vpop.f32.mrf.mxu0
      %1730 = vdwg.mxu0
      %v1731 = vadd.f32 %v1528, %v1693
      %v1732 = vadd.f32 %v1529, %v1696
      %v1733 = vadd.f32 %v1530, %v1701
      %v1734 = vadd.f32 %v1531, %v1704
      %v1735 = vadd.f32 %v1532, %v1709
      %v1736 = vadd.f32 %v1533, %v1712
      %v1737 = vadd.f32 %v1534, %v1717
      %v1738 = vadd.f32 %v1535, %v1720
      %v1739 = vadd.f32 %v1536, %v1725
      %v1740 = vadd.f32 %v1537, %v1728
      %v1741 = vld [vmem:[%s326 + $0x30] sm:$0x7]
      %s1742 = scalar_lea.vmem %s330, 448
      %v1743 = vld [vmem:[%s1742] sm:$0xf]
      %v1744 = vld [vmem:[%s1742 + $0x4] sm:$0xf]
      %v1745 = vld [vmem:[%s1742 + $0x8] sm:$0xf]
      %v1746 = vld [vmem:[%s1742 + $0xc] sm:$0xf]
      %v1747 = vld [vmem:[%s1742 + $0x10] sm:$0xf]
      %v1748 = vld [vmem:[%s1742 + $0x14] sm:$0xf]
      %v1749 = vld [vmem:[%s1742 + $0x18] sm:$0xf]
      %v1750 = vld [vmem:[%s1742 + $0x1c] sm:$0xf]
      %v1751 = vld [vmem:[%s1742 + $0x20] sm:$0xf]
      %v1752 = vld [vmem:[%s1742 + $0x24] sm:$0xf]
      %v1753 = vld [vmem:[%s1742 + $0x28] sm:$0xf]
      %v1754 = vld [vmem:[%s1742 + $0x2c] sm:$0xf]
      %v1755 = vld [vmem:[%s1742 + $0x30] sm:$0xf]
      %v1756 = vld [vmem:[%s1742 + $0x34] sm:$0xf]
      %v1757 = vld [vmem:[%s1742 + $0x38] sm:$0xf]
      %v1758 = vld [vmem:[%s1742 + $0x3c] sm:$0xf]
      %v1760 = vunpack.c.l.b16 %v1741
      %v1761 = vpack.c.b16 %v1760, %v1760
      %vm1762 = vsmask.f32 5376
      %v1764 = vshrl.u32 %v1588, 16
      %v1766 = vrot.slane %v1764, 2
      %v1767 = vshll.u32 %v1588, 16
      %v1769 = vrot.slane %v1767, 3
      %v1770 = vor.u32 %v1766, %v1769
      %v1772 = vshrl.u32 %v1589, 16
      %v1774 = vrot.slane %v1772, 2
      %v1775 = vshll.u32 %v1589, 16
      %v1777 = vrot.slane %v1775, 3
      %v1778 = vor.u32 %v1774, %v1777
      %v1779 = vsel %vm1762, %v1770, %v1778
      %v1781 = vshrl.u32 %v1590, 16
      %v1783 = vrot.slane %v1781, 2
      %v1784 = vshll.u32 %v1590, 16
      %v1786 = vrot.slane %v1784, 3
      %v1787 = vor.u32 %v1783, %v1786
      %v1788 = vsel %vm1762, %v1778, %v1787
      %v1790 = vshrl.u32 %v1591, 16
      %v1792 = vrot.slane %v1790, 2
      %v1793 = vshll.u32 %v1591, 16
      %v1795 = vrot.slane %v1793, 3
      %v1796 = vor.u32 %v1792, %v1795
      %v1797 = vsel %vm1762, %v1787, %v1796
      %v1799 = vshrl.u32 %v1592, 16
      %v1801 = vrot.slane %v1799, 2
      %v1802 = vshll.u32 %v1592, 16
      %v1804 = vrot.slane %v1802, 3
      %v1805 = vor.u32 %v1801, %v1804
      %v1806 = vsel %vm1762, %v1796, %v1805
      %v1808 = vshrl.u32 %v1761, 16
      %v1810 = vrot.slane %v1808, 2
      %v1811 = vshll.u32 %v1761, 16
      %v1813 = vrot.slane %v1811, 3
      %v1814 = vor.u32 %v1810, %v1813
      %v1815 = vsel %vm1762, %v1805, %v1814
      %v1837 = vunpack.c.l.b16 %v1743
      %v1838 = vunpack.c.l.b16 %v1744
      %v1839 = vunpack.c.l.b16 %v1745
      %v1840 = vunpack.c.l.b16 %v1746
      %v1841 = vunpack.c.l.b16 %v1747
      %v1842 = vunpack.c.l.b16 %v1748
      %v1843 = vunpack.c.l.b16 %v1749
      %v1844 = vunpack.c.l.b16 %v1750
      %v1845 = vunpack.c.l.b16 %v1751
      %v1846 = vunpack.c.l.b16 %v1752
      %v1847 = vunpack.c.l.b16 %v1753
      %v1848 = vunpack.c.l.b16 %v1754
      %v1849 = vunpack.c.l.b16 %v1755
      %v1850 = vunpack.c.l.b16 %v1756
      %v1851 = vunpack.c.l.b16 %v1757
      %v1852 = vunpack.c.l.b16 %v1758
      %v1853 = vpack.c.b16 %v1838, %v1837
      %v1854 = vpack.c.b16 %v1840, %v1839
      %v1855 = vpack.c.b16 %v1842, %v1841
      %v1856 = vpack.c.b16 %v1844, %v1843
      %v1857 = vpack.c.b16 %v1846, %v1845
      %v1858 = vpack.c.b16 %v1848, %v1847
      %v1859 = vpack.c.b16 %v1850, %v1849
      %v1860 = vpack.c.b16 %v1852, %v1851
      %1869 = vmatprep.subr.bf16.mxu0 0
      %1870 = vmatpush1.bf16.msra.mxu0 %v1860
      %1871 = vmatprep.subr.bf16.mxu0 0
      %1872 = vmatpush1.bf16.msra.mxu0 %v1859
      %1873 = vmatprep.subr.bf16.mxu0 0
      %1874 = vmatpush1.bf16.msra.mxu0 %v1858
      %1875 = vmatprep.subr.bf16.mxu0 0
      %1876 = vmatpush1.bf16.msra.mxu0 %v1857
      %1877 = vmatprep.subr.bf16.mxu0 0
      %1878 = vmatpush1.bf16.msra.mxu0 %v1856
      %1879 = vmatprep.subr.bf16.mxu0 0
      %1880 = vmatpush1.bf16.msra.mxu0 %v1855
      %1881 = vmatprep.subr.bf16.mxu0 0
      %1882 = vmatpush1.bf16.msra.mxu0 %v1854
      %1883 = vmatprep.subr.bf16.mxu0 0
      %1884 = vmatpush1.bf16.msra.mxu0 %v1853
      %1885 = vmatprep.subr.bf16.mxu0 0
      %1886 = vmatpush2.bf16.msra.mxu0 0
      %1887 = vmatprep.subr.bf16.mxu0 0
      %1888 = vmatpush2.bf16.msra.mxu0 0
      %1889 = vmatprep.subr.bf16.mxu0 0
      %1890 = vmatpush2.bf16.msra.mxu0 0
      %1891 = vmatprep.subr.bf16.mxu0 0
      %1892 = vmatpush2.bf16.msra.mxu0 0
      %1893 = vmatprep.subr.bf16.mxu0 0
      %1894 = vmatpush2.bf16.msra.mxu0 0
      %1895 = vmatprep.subr.bf16.mxu0 0
      %1896 = vmatpush2.bf16.msra.mxu0 0
      %1897 = vmatprep.subr.bf16.mxu0 0
      %1898 = vmatpush2.bf16.msra.mxu0 0
      %1899 = vmatprep.subr.bf16.mxu0 0
      %1900 = vmatpush2.bf16.msra.mxu0 0
      %1901 = vmatprep.mubr.bf16.mxu0 0
      %1902 = vmatmul.mubr.bf16.gmra.mxu0 %v1779
      %v1903 = vpop.f32.mrf.mxu0
      %v1904 = vadd.f32 0.0, %v1903
      %v1905 = vpop.f32.mrf.mxu0
      %v1906 = vpop.f32.mrf.mxu0
      %v1907 = vadd.f32 0.0, %v1906
      %v1908 = vpop.f32.mrf.mxu0
      %1909 = vmatprep.mubr.bf16.mxu0 0
      %1910 = vmatmul.mubr.bf16.gmra.mxu0 %v1788
      %v1911 = vpop.f32.mrf.mxu0
      %v1912 = vadd.f32 0.0, %v1911
      %v1913 = vpop.f32.mrf.mxu0
      %v1914 = vpop.f32.mrf.mxu0
      %v1915 = vadd.f32 0.0, %v1914
      %v1916 = vpop.f32.mrf.mxu0
      %1917 = vmatprep.mubr.bf16.mxu0 0
      %1918 = vmatmul.mubr.bf16.gmra.mxu0 %v1797
      %v1919 = vpop.f32.mrf.mxu0
      %v1920 = vadd.f32 0.0, %v1919
      %v1921 = vpop.f32.mrf.mxu0
      %v1922 = vpop.f32.mrf.mxu0
      %v1923 = vadd.f32 0.0, %v1922
      %v1924 = vpop.f32.mrf.mxu0
      %1925 = vmatprep.mubr.bf16.mxu0 0
      %1926 = vmatmul.mubr.bf16.gmra.mxu0 %v1806
      %v1927 = vpop.f32.mrf.mxu0
      %v1928 = vadd.f32 0.0, %v1927
      %v1929 = vpop.f32.mrf.mxu0
      %v1930 = vpop.f32.mrf.mxu0
      %v1931 = vadd.f32 0.0, %v1930
      %v1932 = vpop.f32.mrf.mxu0
      %1933 = vmatprep.mubr.bf16.mxu0 0
      %1934 = vmatmul.mubr.bf16.gmra.mxu0 %v1815
      %v1935 = vpop.f32.mrf.mxu0
      %v1936 = vadd.f32 0.0, %v1935
      %v1937 = vpop.f32.mrf.mxu0
      %v1938 = vpop.f32.mrf.mxu0
      %v1939 = vadd.f32 0.0, %v1938
      %v1940 = vpop.f32.mrf.mxu0
      %1941 = vdwg.mxu0
      %v1942 = vadd.f32 %v1731, %v1904
      %v1943 = vadd.f32 %v1732, %v1907
      %v1944 = vadd.f32 %v1733, %v1912
      %v1945 = vadd.f32 %v1734, %v1915
      %v1946 = vadd.f32 %v1735, %v1920
      %v1947 = vadd.f32 %v1736, %v1923
      %v1948 = vadd.f32 %v1737, %v1928
      %v1949 = vadd.f32 %v1738, %v1931
      %v1950 = vadd.f32 %v1739, %v1936
      %v1951 = vadd.f32 %v1740, %v1939
      %v1952 = vld [vmem:[%s326 + $0x8] sm:$0x8]
      %s1953 = scalar_lea.vmem %s330, 512
      %v1954 = vld [vmem:[%s1953] sm:$0xf]
      %v1955 = vld [vmem:[%s1953 + $0x4] sm:$0xf]
      %v1956 = vld [vmem:[%s1953 + $0x8] sm:$0xf]
      %v1957 = vld [vmem:[%s1953 + $0xc] sm:$0xf]
      %v1958 = vld [vmem:[%s1953 + $0x10] sm:$0xf]
      %v1959 = vld [vmem:[%s1953 + $0x14] sm:$0xf]
      %v1960 = vld [vmem:[%s1953 + $0x18] sm:$0xf]
      %v1961 = vld [vmem:[%s1953 + $0x1c] sm:$0xf]
      %v1962 = vld [vmem:[%s1953 + $0x20] sm:$0xf]
      %v1963 = vld [vmem:[%s1953 + $0x24] sm:$0xf]
      %v1964 = vld [vmem:[%s1953 + $0x28] sm:$0xf]
      %v1965 = vld [vmem:[%s1953 + $0x2c] sm:$0xf]
      %v1966 = vld [vmem:[%s1953 + $0x30] sm:$0xf]
      %v1967 = vld [vmem:[%s1953 + $0x34] sm:$0xf]
      %v1968 = vld [vmem:[%s1953 + $0x38] sm:$0xf]
      %v1969 = vld [vmem:[%s1953 + $0x3c] sm:$0xf]
      %v1971 = vunpack.c.l.b16 %v1952
      %v1972 = vpack.c.b16 %v1578, %v1971
      %vm1973 = vcmask 1044480
      %v1974 = vrot.slane %v1972, 3
      %v1975 = vrot.slane %v1589, 3
      %v1976 = vsel %vm1973, %v1974, %v1975
      %v1977 = vrot.slane %v1590, 3
      %v1978 = vsel %vm1973, %v1975, %v1977
      %v1979 = vrot.slane %v1591, 3
      %v1980 = vsel %vm1973, %v1977, %v1979
      %v1981 = vrot.slane %v1592, 3
      %v1982 = vsel %vm1973, %v1979, %v1981
      %v1983 = vrot.slane %v1761, 3
      %v1984 = vsel %vm1973, %v1981, %v1983
      %v2006 = vunpack.c.l.b16 %v1954
      %v2007 = vunpack.c.l.b16 %v1955
      %v2008 = vunpack.c.l.b16 %v1956
      %v2009 = vunpack.c.l.b16 %v1957
      %v2010 = vunpack.c.l.b16 %v1958
      %v2011 = vunpack.c.l.b16 %v1959
      %v2012 = vunpack.c.l.b16 %v1960
      %v2013 = vunpack.c.l.b16 %v1961
      %v2014 = vunpack.c.l.b16 %v1962
      %v2015 = vunpack.c.l.b16 %v1963
      %v2016 = vunpack.c.l.b16 %v1964
      %v2017 = vunpack.c.l.b16 %v1965
      %v2018 = vunpack.c.l.b16 %v1966
      %v2019 = vunpack.c.l.b16 %v1967
      %v2020 = vunpack.c.l.b16 %v1968
      %v2021 = vunpack.c.l.b16 %v1969
      %v2022 = vpack.c.b16 %v2007, %v2006
      %v2023 = vpack.c.b16 %v2009, %v2008
      %v2024 = vpack.c.b16 %v2011, %v2010
      %v2025 = vpack.c.b16 %v2013, %v2012
      %v2026 = vpack.c.b16 %v2015, %v2014
      %v2027 = vpack.c.b16 %v2017, %v2016
      %v2028 = vpack.c.b16 %v2019, %v2018
      %v2029 = vpack.c.b16 %v2021, %v2020
      %2038 = vmatprep.subr.bf16.mxu0 0
      %2039 = vmatpush1.bf16.msra.mxu0 %v2029
      %2040 = vmatprep.subr.bf16.mxu0 0
      %2041 = vmatpush1.bf16.msra.mxu0 %v2028
      %2042 = vmatprep.subr.bf16.mxu0 0
      %2043 = vmatpush1.bf16.msra.mxu0 %v2027
      %2044 = vmatprep.subr.bf16.mxu0 0
      %2045 = vmatpush1.bf16.msra.mxu0 %v2026
      %2046 = vmatprep.subr.bf16.mxu0 0
      %2047 = vmatpush1.bf16.msra.mxu0 %v2025
      %2048 = vmatprep.subr.bf16.mxu0 0
      %2049 = vmatpush1.bf16.msra.mxu0 %v2024
      %2050 = vmatprep.subr.bf16.mxu0 0
      %2051 = vmatpush1.bf16.msra.mxu0 %v2023
      %2052 = vmatprep.subr.bf16.mxu0 0
      %2053 = vmatpush1.bf16.msra.mxu0 %v2022
      %2054 = vmatprep.subr.bf16.mxu0 0
      %2055 = vmatpush2.bf16.msra.mxu0 0
      %2056 = vmatprep.subr.bf16.mxu0 0
      %2057 = vmatpush2.bf16.msra.mxu0 0
      %2058 = vmatprep.subr.bf16.mxu0 0
      %2059 = vmatpush2.bf16.msra.mxu0 0
      %2060 = vmatprep.subr.bf16.mxu0 0
      %2061 = vmatpush2.bf16.msra.mxu0 0
      %2062 = vmatprep.subr.bf16.mxu0 0
      %2063 = vmatpush2.bf16.msra.mxu0 0
      %2064 = vmatprep.subr.bf16.mxu0 0
      %2065 = vmatpush2.bf16.msra.mxu0 0
      %2066 = vmatprep.subr.bf16.mxu0 0
      %2067 = vmatpush2.bf16.msra.mxu0 0
      %2068 = vmatprep.subr.bf16.mxu0 0
      %2069 = vmatpush2.bf16.msra.mxu0 0
      %2070 = vmatprep.mubr.bf16.mxu0 0
      %2071 = vmatmul.mubr.bf16.gmra.mxu0 %v1976
      %v2072 = vpop.f32.mrf.mxu0
      %v2073 = vadd.f32 0.0, %v2072
      %v2074 = vpop.f32.mrf.mxu0
      %v2075 = vpop.f32.mrf.mxu0
      %v2076 = vadd.f32 0.0, %v2075
      %v2077 = vpop.f32.mrf.mxu0
      %2078 = vmatprep.mubr.bf16.mxu0 0
      %2079 = vmatmul.mubr.bf16.gmra.mxu0 %v1978
      %v2080 = vpop.f32.mrf.mxu0
      %v2081 = vadd.f32 0.0, %v2080
      %v2082 = vpop.f32.mrf.mxu0
      %v2083 = vpop.f32.mrf.mxu0
      %v2084 = vadd.f32 0.0, %v2083
      %v2085 = vpop.f32.mrf.mxu0
      %2086 = vmatprep.mubr.bf16.mxu0 0
      %2087 = vmatmul.mubr.bf16.gmra.mxu0 %v1980
      %v2088 = vpop.f32.mrf.mxu0
      %v2089 = vadd.f32 0.0, %v2088
      %v2090 = vpop.f32.mrf.mxu0
      %v2091 = vpop.f32.mrf.mxu0
      %v2092 = vadd.f32 0.0, %v2091
      %v2093 = vpop.f32.mrf.mxu0
      %2094 = vmatprep.mubr.bf16.mxu0 0
      %2095 = vmatmul.mubr.bf16.gmra.mxu0 %v1982
      %v2096 = vpop.f32.mrf.mxu0
      %v2097 = vadd.f32 0.0, %v2096
      %v2098 = vpop.f32.mrf.mxu0
      %v2099 = vpop.f32.mrf.mxu0
      %v2100 = vadd.f32 0.0, %v2099
      %v2101 = vpop.f32.mrf.mxu0
      %2102 = vmatprep.mubr.bf16.mxu0 0
      %2103 = vmatmul.mubr.bf16.gmra.mxu0 %v1984
      %v2104 = vpop.f32.mrf.mxu0
      %v2105 = vadd.f32 0.0, %v2104
      %v2106 = vpop.f32.mrf.mxu0
      %v2107 = vpop.f32.mrf.mxu0
      %v2108 = vadd.f32 0.0, %v2107
      %v2109 = vpop.f32.mrf.mxu0
      %2110 = vdwg.mxu0
      %v2111 = vadd.f32 %v1942, %v2073
      %v2112 = vadd.f32 %v1943, %v2076
      %v2113 = vadd.f32 %v1944, %v2081
      %v2114 = vadd.f32 %v1945, %v2084
      %v2115 = vadd.f32 %v1946, %v2089
      %v2116 = vadd.f32 %v1947, %v2092
      %v2117 = vadd.f32 %v1948, %v2097
      %v2118 = vadd.f32 %v1949, %v2100
      %v2119 = vadd.f32 %v1950, %v2105
      %v2120 = vadd.f32 %v1951, %v2108
      %v2121 = vld [vmem:[%s338] sm:$0xf]
      %v2122 = vld [vmem:[%s338 + $0x4] sm:$0xf]
      %v2123 = vld [vmem:[%s338 + $0x8] sm:$0xf]
      %v2124 = vld [vmem:[%s338 + $0xc] sm:$0xf]
      %v2125 = vld [vmem:[%s338 + $0x10] sm:$0xf]
      %v2126 = vld [vmem:[%s338 + $0x14] sm:$0xf]
      %v2127 = vld [vmem:[%s338 + $0x18] sm:$0xf]
      %v2128 = vld [vmem:[%s338 + $0x1c] sm:$0xf]
      %v2129 = vld [vmem:[%s338 + $0x20] sm:$0xf]
      %v2130 = vld [vmem:[%s338 + $0x24] sm:$0xf]
      %v2131 = vld [vmem:[%s342] sm:$0x3]
      %v2132 = vld [vmem:[%s345] sm:$0x1]
      %v2134 = vlaneseq
      %v2135 = vshrl.u32 %v2134, 7
      %v2136 = vsub.s32 0, %v2135
      %v2137 = vrot.slane %v2132, %v2136
      %v2149 = vunpack.c.l.b16 %v2121
      %v2150 = vunpack.c.l.b16 %v2122
      %v2151 = vunpack.c.l.b16 %v2123
      %v2152 = vunpack.c.l.b16 %v2124
      %v2153 = vunpack.c.l.b16 %v2125
      %v2154 = vunpack.c.l.b16 %v2126
      %v2155 = vunpack.c.l.b16 %v2127
      %v2156 = vunpack.c.l.b16 %v2128
      %v2157 = vunpack.c.l.b16 %v2129
      %v2158 = vunpack.c.l.b16 %v2130
      %v2159 = vpack.c.b16 %v2150, %v2149
      %v2160 = vpack.c.b16 %v2152, %v2151
      %v2161 = vpack.c.b16 %v2154, %v2153
      %v2162 = vpack.c.b16 %v2156, %v2155
      %v2163 = vpack.c.b16 %v2158, %v2157
      %vm2164 = vcmask 31744
      %v2166 = vsel %vm2164, %v2159, 0
      %v2169 = vsel %vm2164, %v2160, 0
      %v2172 = vsel %vm2164, %v2161, 0
      %v2175 = vsel %vm2164, %v2162, 0
      %v2178 = vsel %vm2164, %v2163, 0
      %vm2180 = vcmask 1041408
      %v2182 = vsel %vm2180, %v2131, 0
      %2184 = vmatprep.subr.bf16.mxu0 0
      %2185 = vmatpush1.bf16.msra.mxu0 0
      %2186 = vmatprep.subr.bf16.mxu0 0
      %2187 = vmatpush1.bf16.msra.mxu0 0
      %2188 = vmatprep.subr.bf16.mxu0 0
      %2189 = vmatpush1.bf16.msra.mxu0 0
      %2190 = vmatprep.subr.bf16.mxu0 0
      %2191 = vmatpush1.bf16.msra.mxu0 0
      %2192 = vmatprep.subr.bf16.mxu0 0
      %2193 = vmatpush1.bf16.msra.mxu0 0
      %2194 = vmatprep.subr.bf16.mxu0 0
      %2195 = vmatpush1.bf16.msra.mxu0 0
      %2196 = vmatprep.subr.bf16.mxu0 0
      %2197 = vmatpush1.bf16.msra.mxu0 0
      %2198 = vmatprep.subr.bf16.mxu0 0
      %2199 = vmatpush1.bf16.msra.mxu0 %v2182
      %2200 = vmatprep.subr.bf16.mxu0 0
      %2201 = vmatpush2.bf16.msra.mxu0 0
      %2202 = vmatprep.subr.bf16.mxu0 0
      %2203 = vmatpush2.bf16.msra.mxu0 0
      %2204 = vmatprep.subr.bf16.mxu0 0
      %2205 = vmatpush2.bf16.msra.mxu0 0
      %2206 = vmatprep.subr.bf16.mxu0 0
      %2207 = vmatpush2.bf16.msra.mxu0 0
      %2208 = vmatprep.subr.bf16.mxu0 0
      %2209 = vmatpush2.bf16.msra.mxu0 0
      %2210 = vmatprep.subr.bf16.mxu0 0
      %2211 = vmatpush2.bf16.msra.mxu0 0
      %2212 = vmatprep.subr.bf16.mxu0 0
      %2213 = vmatpush2.bf16.msra.mxu0 0
      %2214 = vmatprep.subr.bf16.mxu0 0
      %2215 = vmatpush2.bf16.msra.mxu0 0
      %2216 = vmatprep.mubr.bf16.mxu0 0
      %2217 = vmatmul.mubr.bf16.gmra.mxu0 %v2166
      %v2218 = vpop.f32.mrf.mxu0
      %v2219 = vadd.f32 %v2137, %v2218
      %v2220 = vpop.f32.mrf.mxu0
      %v2221 = vpop.f32.mrf.mxu0
      %v2222 = vadd.f32 %v2137, %v2221
      %v2223 = vpop.f32.mrf.mxu0
      %2224 = vmatprep.mubr.bf16.mxu0 0
      %2225 = vmatmul.mubr.bf16.gmra.mxu0 %v2169
      %v2226 = vpop.f32.mrf.mxu0
      %v2227 = vadd.f32 %v2137, %v2226
      %v2228 = vpop.f32.mrf.mxu0
      %v2229 = vpop.f32.mrf.mxu0
      %v2230 = vadd.f32 %v2137, %v2229
      %v2231 = vpop.f32.mrf.mxu0
      %2232 = vmatprep.mubr.bf16.mxu0 0
      %2233 = vmatmul.mubr.bf16.gmra.mxu0 %v2172
      %v2234 = vpop.f32.mrf.mxu0
      %v2235 = vadd.f32 %v2137, %v2234
      %v2236 = vpop.f32.mrf.mxu0
      %v2237 = vpop.f32.mrf.mxu0
      %v2238 = vadd.f32 %v2137, %v2237
      %v2239 = vpop.f32.mrf.mxu0
      %2240 = vmatprep.mubr.bf16.mxu0 0
      %2241 = vmatmul.mubr.bf16.gmra.mxu0 %v2175
      %v2242 = vpop.f32.mrf.mxu0
      %v2243 = vadd.f32 %v2137, %v2242
      %v2244 = vpop.f32.mrf.mxu0
      %v2245 = vpop.f32.mrf.mxu0
      %v2246 = vadd.f32 %v2137, %v2245
      %v2247 = vpop.f32.mrf.mxu0
      %2248 = vmatprep.mubr.bf16.mxu0 0
      %2249 = vmatmul.mubr.bf16.gmra.mxu0 %v2178
      %v2250 = vpop.f32.mrf.mxu0
      %v2251 = vadd.f32 %v2137, %v2250
      %v2252 = vpop.f32.mrf.mxu0
      %v2253 = vpop.f32.mrf.mxu0
      %v2254 = vadd.f32 %v2137, %v2253
      %v2255 = vpop.f32.mrf.mxu0
      %2256 = vdwg.mxu0
      %v2257 = vadd.f32 %v2111, %v2219
      %v2258 = vadd.f32 %v2112, %v2222
      %v2259 = vadd.f32 %v2113, %v2227
      %v2260 = vadd.f32 %v2114, %v2230
      %v2261 = vadd.f32 %v2115, %v2235
      %v2262 = vadd.f32 %v2116, %v2238
      %v2263 = vadd.f32 %v2117, %v2243
      %v2264 = vadd.f32 %v2118, %v2246
      %v2265 = vadd.f32 %v2119, %v2251
      %v2266 = vadd.f32 %v2120, %v2254
      %v2267 = vmax.f32 %v2257, 0.0
      %v2268 = vmax.f32 %v2258, 0.0
      %v2269 = vmax.f32 %v2259, 0.0
      %v2270 = vmax.f32 %v2260, 0.0
      %v2271 = vmax.f32 %v2261, 0.0
      %v2272 = vmax.f32 %v2262, 0.0
      %v2273 = vmax.f32 %v2263, 0.0
      %v2274 = vmax.f32 %v2264, 0.0
      %v2275 = vmax.f32 %v2265, 0.0
      %v2276 = vmax.f32 %v2266, 0.0
      %2277 = vst [vmem:[%s353] sm:$0xff] %v2267
      %2278 = vst [vmem:[%s353 + $0x8] sm:$0xff] %v2268
      %2279 = vst [vmem:[%s353 + $0x10] sm:$0xff] %v2269
      %2280 = vst [vmem:[%s353 + $0x18] sm:$0xff] %v2270
      %2281 = vst [vmem:[%s353 + $0x20] sm:$0xff] %v2271
      %2282 = vst [vmem:[%s353 + $0x28] sm:$0xff] %v2272
      %2283 = vst [vmem:[%s353 + $0x30] sm:$0xff] %v2273
      %2284 = vst [vmem:[%s353 + $0x38] sm:$0xff] %v2274
      %2285 = vst [vmem:[%s353 + $0x40] sm:$0xff] %v2275
      %2286 = vst [vmem:[%s353 + $0x48] sm:$0xff] %v2276
      %p2287 = scmp.lt.s32.totalorder %s21, 1
      %s2288 = scalar_select %p2287, %s21, 1
      %p2289 = scmp.lt.s32.totalorder %s22, 0
      %s2290 = scalar_select %p2289, %s22, 0
      %s2291 = smul.addr %s2288, 10
      %s2292 = sadd.s32 %s2290, %s2291
      %s2293 = smul.addr %s2292, 8
      %s2294 = scalar_lea.vmem %s6, %s2293
      // Predicated region
      $region45: #{basic_block_forward.3} parent=43 // pred_check
        %p2295 = pneg %p205
      $region46: #{basic_block_forward.3} parent=43 // pred_check_branch
        %2297 = sbr.rel (%p2295) target = $region48
      $region47: #{basic_block_forward.3} parent=43 // pred_region
        _
      $region48: #{basic_block_forward.3} parent=43 // pred_fallthru
        _
    $region44: #{basic_block_forward.3} parent=5 // pred_fallthru
      _
    %p2298 = scmp.le.s32.totalorder 2, %s12
    // Predicated region
    $region49: #{basic_block_forward.3} parent=5 // pred_check
      %p2299 = pneg %p2298
    $region50: #{basic_block_forward.3} parent=5 // pred_check_branch
      %2301 = sbr.rel (%p2299) target = $region52
    $region51: #{basic_block_forward.3} parent=5 // pred_region
      %s2302 = ssub.s32 %s12, 2
      // Predicated region
      $region53: #{basic_block_forward.3} parent=51 // pred_check
        %p2303 = pneg %p211
      $region54: #{basic_block_forward.3} parent=51 // pred_check_branch
        %2305 = sbr.rel (%p2303) target = $region56
      $region55: #{basic_block_forward.3} parent=51 // pred_region
        %p2306 = scmp.lt.s32.totalorder %s23, 1
        %s2307 = scalar_select %p2306, %s23, 1
        %p2308 = scmp.lt.s32.totalorder %s24, 0
        %s2309 = scalar_select %p2308, %s24, 0
        %s2310 = smul.addr %s2307, 10
        %s2311 = sadd.s32 %s2309, %s2310
        %s2312 = smul.addr %s2311, 8
        %s2313 = scalar_lea.vmem %s6, %s2312
      $region56: #{basic_block_forward.3} parent=51 // pred_fallthru
        _
    $region52: #{basic_block_forward.3} parent=5 // pred_fallthru
      _
  $region6: #{basic_block_forward.3} parent=0 // loop_footer
    %s16 = sadd.s32 1, %s12
  $region7: #{basic_block_forward.3} parent=0 // loop_footer_branch
    %11 = sbr.rel target = $region3
  $region8: #{basic_block_forward.3} parent=0 // loop_exit
    _

</llo_original>
